<compile_context>
chip_gen: v7x
topology: tpu7x:2x2x1
jax: 0.10.0
libtpu: 0.0.40
codegen_flags: <defaults>
</compile_context>

<pallas_src>
import functools

import jax
import jax.numpy as jnp
from jax.experimental import pallas as pl
from jax.experimental.pallas import tpu as pltpu


def _round_up(x, m):
    return ((x + m - 1) // m) * m


# ---------------------------------------------------------------------------
# Fused kernel (feature-major: batch on the lane axis).
# ---------------------------------------------------------------------------
def critic_kernel(xo_ref, hist_ref, whT_ref, w1oT_ref, w1hT_ref,
                  w2T_ref, w3T_ref, w4T_ref, pp_ref, out_ref):
    f32 = jnp.float32
    cdt = xo_ref.dtype                      # compute dtype for MXU inputs

    SE = whT_ref.shape[0]
    H1 = w1oT_ref.shape[0]
    H2 = w2T_ref.shape[0]
    H3 = w3T_ref.shape[0]

    # Packed per-feature epilogue params (f32 columns): [t1 | t2 | t3 | bh | b4]
    t1 = pp_ref[0:H1, 0:1]
    t2 = pp_ref[0:H2, 1:2]
    t3 = pp_ref[0:H3, 2:3]
    bh = pp_ref[0:SE, 3:4]
    b4 = pp_ref[0:1, 4:5]

    # History embedder: mean-pool over N is folded into the stacked weight,
    # so this is one lane-dense K = N*SE MXU matmul + f32 bias + ReLU.
    h = jnp.dot(whT_ref[...], hist_ref[...], preferred_element_type=f32) + bh
    h = jnp.maximum(h, 0.0).astype(cdt)                       # [SE, TB]

    # Layer 1: concat([user, hist_emb, mask, action]) @ W1 expressed as the
    # pre-concatenated [user|mask|action] chunk (single wide-K matmul) plus
    # the history-embedding chunk.  BN scale is folded into the weights,
    # BN shift + Linear bias are in t1 (f32 epilogue).
    z1 = (jnp.dot(w1oT_ref[...], xo_ref[...], preferred_element_type=f32)
          + jnp.dot(w1hT_ref[...], h, preferred_element_type=f32))
    x1 = jnp.maximum(z1 + t1, 0.0).astype(cdt)                # [H1, TB]

    # Layer 2
    z2 = jnp.dot(w2T_ref[...], x1, preferred_element_type=f32)
    x2 = jnp.maximum(z2 + t2, 0.0).astype(cdt)                # [H2, TB]

    # Layer 3
    z3 = jnp.dot(w3T_ref[...], x2, preferred_element_type=f32)
    x3 = jnp.maximum(z3 + t3, 0.0).astype(cdt)                # [H3, TB]

    # Output head: w4 is zero-padded to 8 rows (row 0 is the real head);
    # result row 0 is the lane-dense [1, TB] output (unmasked store).
    z4 = jnp.dot(w4T_ref[...], x3, preferred_element_type=f32)  # [8, TB]
    out_ref[...] = z4[0:1, :] + b4


# ---------------------------------------------------------------------------
# Parameter construction (PyTorch-style layout) and kernel-side folding.
# ---------------------------------------------------------------------------
def make_params(key, UE, SE, I, K, layer_sizes=(256, 512, 256)):
    """PyTorch-layout parameters (Linear weights stored as [in, out])."""
    D_in = UE + SE + I + K * SE
    H1, H2, H3 = layer_sizes
    ks = jax.random.split(key, 12)
    g = functools.partial(jax.random.normal, dtype=jnp.float32)

    def bn(k, H):
        k1, k2, k3, k4 = jax.random.split(k, 4)
        return (1.0 + 0.1 * g(k1, (H,)),           # gamma
                0.01 * g(k2, (H,)),                # beta
                0.05 * g(k3, (H,)),                # running_mean
                jnp.abs(g(k4, (H,))) + 0.5)        # running_var

    p = dict(
        # history embedder dense (stand-in: mean-pool + Linear(SE, SE) + ReLU)
        wh=g(ks[0], (SE, SE)) * 0.1,
        bh=jnp.full((SE,), 0.01, jnp.float32),
        w1=g(ks[1], (D_in, H1)) / jnp.sqrt(D_in),
        b1=0.01 * g(ks[2], (H1,)),
        w2=g(ks[3], (H1, H2)) / jnp.sqrt(H1),
        b2=0.01 * g(ks[4], (H2,)),
        w3=g(ks[5], (H2, H3)) / jnp.sqrt(H2),
        b3=0.01 * g(ks[6], (H3,)),
        w4=g(ks[7], (H3, 1)) / jnp.sqrt(H3),
        b4=jnp.full((1,), 0.02, jnp.float32),
    )
    p["g1"], p["be1"], p["m1"], p["v1"] = bn(ks[8], H1)
    p["g2"], p["be2"], p["m2"], p["v2"] = bn(ks[9], H2)
    p["g3"], p["be3"], p["m3"], p["v3"] = bn(ks[10], H3)
    return p


def prepare_kernel_params(p, UE, SE, I, K, N, eps=1e-5,
                          compute_dtype=jnp.bfloat16):
    """Fold eval-mode BN + bias, split/fuse W1 by concat chunks, transpose to
    feature-major, cast matmul operands to the compute dtype (parameter glue)."""
    H1 = p["w1"].shape[1]
    H2 = p["w2"].shape[1]
    H3 = p["w3"].shape[1]

    def bn_fold(b, g, be, m, v):
        s = g / jnp.sqrt(v + eps)
        return s, be + (b - m) * s

    s1, t1 = bn_fold(p["b1"], p["g1"], p["be1"], p["m1"], p["v1"])
    s2, t2 = bn_fold(p["b2"], p["g2"], p["be2"], p["m2"], p["v2"])
    s3, t3 = bn_fold(p["b3"], p["g3"], p["be3"], p["m3"], p["v3"])

    # Fold BN scale into the Linear weights (in f32, before the bf16 cast).
    w1s = p["w1"] * s1[None, :]
    w2s = p["w2"] * s2[None, :]
    w3s = p["w3"] * s3[None, :]

    # Split W1 rows by the concat order [user | hist_emb | mask | action] and
    # regroup the static inputs into one contiguous chunk [user | mask | action].
    w1u = w1s[:UE]
    w1h = w1s[UE:UE + SE]
    w1m = w1s[UE + SE:UE + SE + I]
    w1a = w1s[UE + SE + I:]
    w1o = jnp.concatenate([w1u, w1m, w1a], axis=0)       # [UE+I+K*SE, H1]

    # Mean-pool over N folded into a stacked history weight: [N*SE, SE].
    wh_stacked = jnp.tile(p["wh"] / N, (N, 1))

    # Output head padded to 8 rows (row 0 = real head) so the head matmul has
    # a non-degenerate M dimension.
    w4_row = jnp.zeros((8, H3), jnp.float32).at[0].set(p["w4"][:, 0])

    cdt = compute_dtype
    kp = dict(
        whT=wh_stacked.T.astype(cdt),                    # [SE, N*SE]
        w1oT=w1o.T.astype(cdt),                          # [H1, UE+I+K*SE]
        w1hT=w1h.T.astype(cdt),                          # [H1, SE]
        w2T=w2s.T.astype(cdt),                           # [H2, H1]
        w3T=w3s.T.astype(cdt),                           # [H3, H2]
        w4T=w4_row.astype(cdt),                          # [8, H3]
    )

    # Pack all per-feature epilogue vectors into ONE f32 ref:
    #   col 0: t1, col 1: t2, col 2: t3, col 3: bh, col 4: [b4, 0, ...]
    R = _round_up(max(H1, H2, H3, SE), 8)
    pp = jnp.zeros((R, 5), jnp.float32)
    pp = pp.at[:H1, 0].set(t1).at[:H2, 1].set(t2).at[:H3, 2].set(t3)
    pp = pp.at[:SE, 3].set(p["bh"]).at[0, 4].set(p["b4"][0])
    kp["pp"] = pp
    return kp


# ---------------------------------------------------------------------------
# Wrapper
# ---------------------------------------------------------------------------
def critic_forward(user, services_history, mask, action, params,
                   *, batch_tile=256, compute_dtype=jnp.bfloat16):
    B, UE = user.shape
    _, N, SE = services_history.shape
    I = mask.shape[1]
    K = action.shape[1]

    kp = prepare_kernel_params(params, UE, SE, I, K, N,
                               compute_dtype=compute_dtype)
    H1 = kp["w1oT"].shape[0]
    H2 = kp["w2T"].shape[0]
    H3 = kp["w3T"].shape[0]
    DO = UE + I + K * SE                 # width of the pre-concatenated chunk
    NSE = N * SE

    # --- wrapper-side layout plumbing (pure glue, no compute hoisting) -----
    act_flat = action.reshape(B, K * SE)
    xo = jnp.concatenate([user, mask, act_flat], axis=1)       # [B, DO]
    hist = services_history.reshape(B, NSE)                    # [B, N*SE]

    TB = batch_tile
    Bp = _round_up(B, TB)
    pad = Bp - B
    xo_t = jnp.pad(xo, ((0, pad), (0, 0))).T.astype(compute_dtype)      # [DO, Bp]
    hist_t = jnp.pad(hist, ((0, pad), (0, 0))).T.astype(compute_dtype)  # [NSE, Bp]

    grid = (Bp // TB,)

    def act_spec(rows):
        return pl.BlockSpec((rows, TB), lambda i: (0, i))

    def w_spec(shape):
        return pl.BlockSpec(shape, lambda i: (0, 0))

    flops = 2 * Bp * (SE * NSE + H1 * DO + H1 * SE + H2 * H1 + H3 * H2 + 8 * H3)
    bytes_accessed = (
        xo_t.size * xo_t.dtype.itemsize
        + hist_t.size * hist_t.dtype.itemsize
        + sum(int(v.size) * v.dtype.itemsize for v in kp.values())
        + Bp * 4)

    out = pl.pallas_call(
        critic_kernel,
        out_shape=jax.ShapeDtypeStruct((1, Bp), jnp.float32),
        grid=grid,
        in_specs=[
            act_spec(DO),                 # xo_t      [DO, Bp]   -> (DO, TB)
            act_spec(NSE),                # hist_t    [NSE, Bp]  -> (NSE, TB)
            w_spec(kp["whT"].shape),      # weights: constant index -> VMEM-resident
            w_spec(kp["w1oT"].shape),
            w_spec(kp["w1hT"].shape),
            w_spec(kp["w2T"].shape),
            w_spec(kp["w3T"].shape),
            w_spec(kp["w4T"].shape),
            w_spec(kp["pp"].shape),
        ],
        out_specs=pl.BlockSpec((1, TB), lambda i: (0, i)),      # lane-dense row
        compiler_params=pltpu.CompilerParams(
            dimension_semantics=("parallel",)),
        cost_estimate=pl.CostEstimate(
            flops=int(flops), transcendentals=0,
            bytes_accessed=int(bytes_accessed)),
    )(xo_t, hist_t, kp["whT"], kp["w1oT"], kp["w1hT"],
      kp["w2T"], kp["w3T"], kp["w4T"], kp["pp"])

    return out[0, :B].reshape(B, 1)


# ---------------------------------------------------------------------------
# Pure-JAX f32 reference mirroring the PyTorch module's forward.
# ---------------------------------------------------------------------------
def critic_forward_ref(user, services_history, mask, action, p, eps=1e-5):
    B = user.shape[0]
    h = jnp.maximum(jnp.mean(services_history, axis=1) @ p["wh"] + p["bh"], 0.0)
    x = jnp.concatenate([user, h, mask, action.reshape(B, -1)], axis=1)

    def block(x, w, b, g, be, m, v):
        z = x @ w + b
        z = (z - m) / jnp.sqrt(v + eps) * g + be       # eval-mode BatchNorm1d
        return jnp.maximum(z, 0.0)

    x = block(x, p["w1"], p["b1"], p["g1"], p["be1"], p["m1"], p["v1"])
    x = block(x, p["w2"], p["b2"], p["g2"], p["be2"], p["m2"], p["v2"])
    x = block(x, p["w3"], p["b3"], p["g3"], p["be3"], p["m3"], p["v3"])
    return x @ p["w4"] + p["b4"]


if __name__ == "__main__":
    # Small shapes consistent with the module's forward signature.
    B, UE, SE, I, K, N = 2, 32, 32, 64, 4, 8     # input_dim = 32+32+64+128 = 256

    key = jax.random.PRNGKey(0)
    k_u, k_h, k_m, k_a, k_p = jax.random.split(key, 5)

    user = jax.random.normal(k_u, (B, UE), jnp.float32)
    services_history = jax.random.normal(k_h, (B, N, SE), jnp.float32)
    mask = (jax.random.uniform(k_m, (B, I)) > 0.5).astype(jnp.float32)
    action = jax.random.normal(k_a, (B, K, SE), jnp.float32)

    params = make_params(k_p, UE, SE, I, K)

    out = critic_forward(user, services_history, mask, action, params)
    out = jax.block_until_ready(out)

    ref = critic_forward_ref(user, services_history, mask, action, params)
    assert out.shape == (B, 1), out.shape
    # bf16 MXU inputs with f32 accumulation -> loosened tolerance vs f32 ref.
    assert jnp.allclose(out, ref, atol=5e-2, rtol=5e-2), (out, ref)

    print("KERNEL_OK")
</pallas_src>

<mosaic_0001>
module attributes {stable_mosaic.version = 11 : i64} {
  func.func @critic_kernel(%arg0: i32, %arg1: memref<224x256xbf16, #tpu.memory_space<vmem>>, %arg2: memref<256x256xbf16, #tpu.memory_space<vmem>>, %arg3: memref<32x256xbf16, #tpu.memory_space<vmem>>, %arg4: memref<256x224xbf16, #tpu.memory_space<vmem>>, %arg5: memref<256x32xbf16, #tpu.memory_space<vmem>>, %arg6: memref<512x256xbf16, #tpu.memory_space<vmem>>, %arg7: memref<256x512xbf16, #tpu.memory_space<vmem>>, %arg8: memref<8x256xbf16, #tpu.memory_space<vmem>>, %arg9: memref<512x5xf32, #tpu.memory_space<vmem>>, %arg10: memref<1x256xf32, #tpu.memory_space<vmem>>) attributes {dimension_semantics = [#tpu.dimension_semantics<parallel>], iteration_bounds = array<i64: 1>, scalar_prefetch = 0 : i64, scratch_operands = 0 : i64, tpu.core_type = #tpu.core_type<tc>, window_params = [{transform_indices = @transform_0, window_bounds = array<i64: 224, 256>}, {transform_indices = @transform_1, window_bounds = array<i64: 256, 256>}, {pipeline_mode = #tpu.pipeline_mode<synchronous>, transform_indices = @transform_2, window_bounds = array<i64: 32, 256>}, {pipeline_mode = #tpu.pipeline_mode<synchronous>, transform_indices = @transform_3, window_bounds = array<i64: 256, 224>}, {pipeline_mode = #tpu.pipeline_mode<synchronous>, transform_indices = @transform_4, window_bounds = array<i64: 256, 32>}, {pipeline_mode = #tpu.pipeline_mode<synchronous>, transform_indices = @transform_5, window_bounds = array<i64: 512, 256>}, {pipeline_mode = #tpu.pipeline_mode<synchronous>, transform_indices = @transform_6, window_bounds = array<i64: 256, 512>}, {pipeline_mode = #tpu.pipeline_mode<synchronous>, transform_indices = @transform_7, window_bounds = array<i64: 8, 256>}, {pipeline_mode = #tpu.pipeline_mode<synchronous>, transform_indices = @transform_8, window_bounds = array<i64: 512, 5>}, {transform_indices = @transform_9, window_bounds = array<i64: 1, 256>}]} {
    %c0 = arith.constant 0 : index
    %c0_0 = arith.constant 0 : index
    %0 = vector.load %arg9[%c0, %c0_0] : memref<512x5xf32, #tpu.memory_space<vmem>>, vector<256x1xf32>
    %c0_1 = arith.constant 0 : index
    %c1 = arith.constant 1 : index
    %1 = vector.load %arg9[%c0_1, %c1] : memref<512x5xf32, #tpu.memory_space<vmem>>, vector<512x1xf32>
    %c0_2 = arith.constant 0 : index
    %c2 = arith.constant 2 : index
    %2 = vector.load %arg9[%c0_2, %c2] : memref<512x5xf32, #tpu.memory_space<vmem>>, vector<256x1xf32>
    %c0_3 = arith.constant 0 : index
    %c3 = arith.constant 3 : index
    %3 = vector.load %arg9[%c0_3, %c3] : memref<512x5xf32, #tpu.memory_space<vmem>>, vector<32x1xf32>
    %c0_4 = arith.constant 0 : index
    %c4 = arith.constant 4 : index
    %4 = vector.load %arg9[%c0_4, %c4] : memref<512x5xf32, #tpu.memory_space<vmem>>, vector<1x1xf32>
    %c0_5 = arith.constant 0 : index
    %c0_6 = arith.constant 0 : index
    %5 = vector.load %arg3[%c0_5, %c0_6] : memref<32x256xbf16, #tpu.memory_space<vmem>>, vector<32x256xbf16>
    %c0_7 = arith.constant 0 : index
    %c0_8 = arith.constant 0 : index
    %6 = vector.load %arg2[%c0_7, %c0_8] : memref<256x256xbf16, #tpu.memory_space<vmem>>, vector<256x256xbf16>
    %cst = arith.constant dense<0.000000e+00> : vector<32x256xf32>
    %7 = tpu.matmul %5, %6, %cst {dimension_numbers = #tpu.dot_dimension_numbers<[1], [0], [0], [1], [0, 0, 1, 1], [], []>} : vector<32x256xbf16>, vector<256x256xbf16>, vector<32x256xf32> -> vector<32x256xf32>
    %8 = vector.broadcast %3 : vector<32x1xf32> to vector<32x256xf32>
    %9 = arith.addf %7, %8 : vector<32x256xf32>
    %cst_9 = arith.constant 0.000000e+00 : f32
    %10 = vector.broadcast %cst_9 : f32 to vector<32x256xf32>
    %11 = arith.maximumf %9, %10 : vector<32x256xf32>
    %12 = arith.truncf %11 : vector<32x256xf32> to vector<32x256xbf16>
    %c0_10 = arith.constant 0 : index
    %c0_11 = arith.constant 0 : index
    %13 = vector.load %arg4[%c0_10, %c0_11] : memref<256x224xbf16, #tpu.memory_space<vmem>>, vector<256x224xbf16>
    %c0_12 = arith.constant 0 : index
    %c0_13 = arith.constant 0 : index
    %14 = vector.load %arg1[%c0_12, %c0_13] : memref<224x256xbf16, #tpu.memory_space<vmem>>, vector<224x256xbf16>
    %cst_14 = arith.constant dense<0.000000e+00> : vector<256x256xf32>
    %15 = tpu.matmul %13, %14, %cst_14 {dimension_numbers = #tpu.dot_dimension_numbers<[1], [0], [0], [1], [0, 0, 1, 1], [], []>} : vector<256x224xbf16>, vector<224x256xbf16>, vector<256x256xf32> -> vector<256x256xf32>
    %c0_15 = arith.constant 0 : index
    %c0_16 = arith.constant 0 : index
    %16 = vector.load %arg5[%c0_15, %c0_16] : memref<256x32xbf16, #tpu.memory_space<vmem>>, vector<256x32xbf16>
    %cst_17 = arith.constant dense<0.000000e+00> : vector<256x256xf32>
    %17 = tpu.matmul %16, %12, %cst_17 {dimension_numbers = #tpu.dot_dimension_numbers<[1], [0], [0], [1], [0, 0, 1, 1], [], []>} : vector<256x32xbf16>, vector<32x256xbf16>, vector<256x256xf32> -> vector<256x256xf32>
    %18 = arith.addf %15, %17 : vector<256x256xf32>
    %19 = vector.broadcast %0 : vector<256x1xf32> to vector<256x256xf32>
    %20 = arith.addf %18, %19 : vector<256x256xf32>
    %cst_18 = arith.constant 0.000000e+00 : f32
    %21 = vector.broadcast %cst_18 : f32 to vector<256x256xf32>
    %22 = arith.maximumf %20, %21 : vector<256x256xf32>
    %23 = arith.truncf %22 : vector<256x256xf32> to vector<256x256xbf16>
    %c0_19 = arith.constant 0 : index
    %c0_20 = arith.constant 0 : index
    %24 = vector.load %arg6[%c0_19, %c0_20] : memref<512x256xbf16, #tpu.memory_space<vmem>>, vector<512x256xbf16>
    %cst_21 = arith.constant dense<0.000000e+00> : vector<512x256xf32>
    %25 = tpu.matmul %24, %23, %cst_21 {dimension_numbers = #tpu.dot_dimension_numbers<[1], [0], [0], [1], [0, 0, 1, 1], [], []>} : vector<512x256xbf16>, vector<256x256xbf16>, vector<512x256xf32> -> vector<512x256xf32>
    %26 = vector.broadcast %1 : vector<512x1xf32> to vector<512x256xf32>
    %27 = arith.addf %25, %26 : vector<512x256xf32>
    %cst_22 = arith.constant 0.000000e+00 : f32
    %28 = vector.broadcast %cst_22 : f32 to vector<512x256xf32>
    %29 = arith.maximumf %27, %28 : vector<512x256xf32>
    %30 = arith.truncf %29 : vector<512x256xf32> to vector<512x256xbf16>
    %c0_23 = arith.constant 0 : index
    %c0_24 = arith.constant 0 : index
    %31 = vector.load %arg7[%c0_23, %c0_24] : memref<256x512xbf16, #tpu.memory_space<vmem>>, vector<256x512xbf16>
    %cst_25 = arith.constant dense<0.000000e+00> : vector<256x256xf32>
    %32 = tpu.matmul %31, %30, %cst_25 {dimension_numbers = #tpu.dot_dimension_numbers<[1], [0], [0], [1], [0, 0, 1, 1], [], []>} : vector<256x512xbf16>, vector<512x256xbf16>, vector<256x256xf32> -> vector<256x256xf32>
    %33 = vector.broadcast %2 : vector<256x1xf32> to vector<256x256xf32>
    %34 = arith.addf %32, %33 : vector<256x256xf32>
    %cst_26 = arith.constant 0.000000e+00 : f32
    %35 = vector.broadcast %cst_26 : f32 to vector<256x256xf32>
    %36 = arith.maximumf %34, %35 : vector<256x256xf32>
    %37 = arith.truncf %36 : vector<256x256xf32> to vector<256x256xbf16>
    %c0_27 = arith.constant 0 : index
    %c0_28 = arith.constant 0 : index
    %38 = vector.load %arg8[%c0_27, %c0_28] : memref<8x256xbf16, #tpu.memory_space<vmem>>, vector<8x256xbf16>
    %cst_29 = arith.constant dense<0.000000e+00> : vector<8x256xf32>
    %39 = tpu.matmul %38, %37, %cst_29 {dimension_numbers = #tpu.dot_dimension_numbers<[1], [0], [0], [1], [0, 0, 1, 1], [], []>} : vector<8x256xbf16>, vector<256x256xbf16>, vector<8x256xf32> -> vector<8x256xf32>
    %40 = vector.extract_strided_slice %39 {offsets = [0, 0], sizes = [1, 256], strides = [1, 1]} : vector<8x256xf32> to vector<1x256xf32>
    %41 = vector.broadcast %4 : vector<1x1xf32> to vector<1x256xf32>
    %42 = arith.addf %40, %41 : vector<1x256xf32>
    %c0_30 = arith.constant 0 : index
    %c0_31 = arith.constant 0 : index
    %43 = vector.load %arg10[%c0_30, %c0_31] : memref<1x256xf32, #tpu.memory_space<vmem>>, vector<1x256xf32>
    tpu.vector_store %arg10[%c0_30, %c0_31], %42 {strides = array<i32>} : memref<1x256xf32, #tpu.memory_space<vmem>>, vector<1x256xf32>,
    return
  }
  func.func @transform_0(%arg0: i32) -> (i32, i32) {
    %c0_i32 = arith.constant 0 : i32
    %c0_i32_0 = arith.constant 0 : i32
    return %c0_i32, %arg0 : i32, i32
  }
  func.func @transform_1(%arg0: i32) -> (i32, i32) {
    %c0_i32 = arith.constant 0 : i32
    %c0_i32_0 = arith.constant 0 : i32
    return %c0_i32, %arg0 : i32, i32
  }
  func.func @transform_2(%arg0: i32) -> (i32, i32) {
    %c0_i32 = arith.constant 0 : i32
    %c0_i32_0 = arith.constant 0 : i32
    %c0_i32_1 = arith.constant 0 : i32
    return %c0_i32, %c0_i32_0 : i32, i32
  }
  func.func @transform_3(%arg0: i32) -> (i32, i32) {
    %c0_i32 = arith.constant 0 : i32
    %c0_i32_0 = arith.constant 0 : i32
    %c0_i32_1 = arith.constant 0 : i32
    return %c0_i32, %c0_i32_0 : i32, i32
  }
  func.func @transform_4(%arg0: i32) -> (i32, i32) {
    %c0_i32 = arith.constant 0 : i32
    %c0_i32_0 = arith.constant 0 : i32
    %c0_i32_1 = arith.constant 0 : i32
    return %c0_i32, %c0_i32_0 : i32, i32
  }
  func.func @transform_5(%arg0: i32) -> (i32, i32) {
    %c0_i32 = arith.constant 0 : i32
    %c0_i32_0 = arith.constant 0 : i32
    %c0_i32_1 = arith.constant 0 : i32
    return %c0_i32, %c0_i32_0 : i32, i32
  }
  func.func @transform_6(%arg0: i32) -> (i32, i32) {
    %c0_i32 = arith.constant 0 : i32
    %c0_i32_0 = arith.constant 0 : i32
    %c0_i32_1 = arith.constant 0 : i32
    return %c0_i32, %c0_i32_0 : i32, i32
  }
  func.func @transform_7(%arg0: i32) -> (i32, i32) {
    %c0_i32 = arith.constant 0 : i32
    %c0_i32_0 = arith.constant 0 : i32
    %c0_i32_1 = arith.constant 0 : i32
    return %c0_i32, %c0_i32_0 : i32, i32
  }
  func.func @transform_8(%arg0: i32) -> (i32, i32) {
    %c0_i32 = arith.constant 0 : i32
    %c0_i32_0 = arith.constant 0 : i32
    %c0_i32_1 = arith.constant 0 : i32
    return %c0_i32, %c0_i32_0 : i32, i32
  }
  func.func @transform_9(%arg0: i32) -> (i32, i32) {
    %c0_i32 = arith.constant 0 : i32
    %c0_i32_0 = arith.constant 0 : i32
    return %c0_i32, %arg0 : i32, i32
  }
}

</mosaic_0001>

<llo_original>
// kernel: tpu_custom_call.1
$region0: #{tpu_custom_call.1}
  #allocation0 [shape = 'u32[]', space=smem, size = 0x4, offset = 0x4, fixed_abs, tag = 'smem constant byte address 0x4 - core index']
  #allocation1 [shape = 'u32[144,128]{1,0:T(1,128)}', space=vmem, size = 0x12000, scoped, tag = 'internal scratch']
  %s0 = inlined_call_operand.hbm [shape: bf16[224,256], index: 0, kind: input, shape index: {}]
  %s1 = inlined_call_operand.hbm [shape: bf16[256,256], index: 1, kind: input, shape index: {}]
  %s2 = inlined_call_operand.vmem [shape: bf16[32,256], index: 2, kind: input, shape index: {}]
  %s3 = inlined_call_operand.vmem [shape: bf16[256,224], index: 3, kind: input, shape index: {}]
  %s4 = inlined_call_operand.vmem [shape: bf16[256,32], index: 4, kind: input, shape index: {}]
  %s5 = inlined_call_operand.vmem [shape: bf16[512,256], index: 5, kind: input, shape index: {}]
  %s6 = inlined_call_operand.vmem [shape: bf16[256,512], index: 6, kind: input, shape index: {}]
  %s7 = inlined_call_operand.vmem [shape: bf16[8,256], index: 7, kind: input, shape index: {}]
  %s8 = inlined_call_operand.vmem [shape: f32[512,5], index: 8, kind: input, shape index: {}]
  %s9 = inlined_call_operand.hbm [shape: f32[1,256], index: 9, kind: output, shape index: {}]
  %s10 = sld [smem:[#allocation0]]
  $region54: #{tpu_custom_call.1} parent=0
    _
  %s12 = ssub.s32 1, %s10
  %s13 = scalar_select 0, %s12, %s10
  $region1: #{tpu_custom_call.1} parent=0
    #allocation2 [shape = 'u8[114688]{0}', space=vmem, size = 0x1c000, scoped, tag = 'input window, operand 0, single buffered']
    #allocation3 [shape = 's32[1]{0}', space=sflag, size = 0x4, scoped, tag = 'scoped memory for tpu_custom_call.1']
    #allocation4 [shape = 's32[1]{0}', space=sflag, size = 0x4, scoped, tag = 'scoped memory for tpu_custom_call.1']
    #allocation5 [shape = 'u8[131072]{0}', space=vmem, size = 0x20000, scoped, tag = 'input window, operand 1, single buffered']
    #allocation6 [shape = 's32[1]{0}', space=sflag, size = 0x4, scoped, tag = 'scoped memory for tpu_custom_call.1']
    #allocation7 [shape = 'u8[1024]{0}', space=vmem, size = 0x400, scoped, tag = 'output window, operand 0, single buffered']
    %14 = vsyncpa [#allocation3], 0
    %15 = vsyncpa [#allocation6], 0
    %16 = vsyncpa [#allocation4], 0
    // Predicated region
    $region2: #{tpu_custom_call.1} parent=1 // pred_check
      _
    $region3: #{tpu_custom_call.1} parent=1 // pred_check_branch
      %18 = sbr.rel (0) target = $region5
    $region4: #{tpu_custom_call.1} parent=1 // pred_region
      %s20 = ssub.s32 3584, 3584
      %21 = vsyncadd [#allocation3], %s20
      %s22 = sshll.u32 [#allocation2], 4
      %s23 = int_to_ptr.vmem [resolvable:$true] %s22
      %28 = dma.hbm_to_vmem [thread:$0]  %s0, 3584, %s23, [#allocation3], 128, 128, 8
    $region5: #{tpu_custom_call.1} parent=1 // pred_fallthru
      _
    // Predicated region
    $region6: #{tpu_custom_call.1} parent=1 // pred_check
      _
    $region7: #{tpu_custom_call.1} parent=1 // pred_check_branch
      %30 = sbr.rel (0) target = $region9
    $region8: #{tpu_custom_call.1} parent=1 // pred_region
      %s32 = ssub.s32 4096, 4096
      %33 = vsyncadd [#allocation6], %s32
      %s34 = sshll.u32 [#allocation5], 4
      %s35 = int_to_ptr.vmem [resolvable:$true] %s34
      %40 = dma.hbm_to_vmem [thread:$0]  %s1, 4096, %s35, [#allocation6], 128, 128, 8
    $region9: #{tpu_custom_call.1} parent=1 // pred_fallthru
      _
    // Predicated region
    $region10: #{tpu_custom_call.1} parent=1 // pred_check
      _
    $region11: #{tpu_custom_call.1} parent=1 // pred_check_branch
      %42 = sbr.rel (0) target = $region13
    $region12: #{tpu_custom_call.1} parent=1 // pred_region
      _
    $region13: #{tpu_custom_call.1} parent=1 // pred_fallthru
      _
    // Predicated region
    $region14: #{tpu_custom_call.1} parent=1 // pred_check
      _
    $region15: #{tpu_custom_call.1} parent=1 // pred_check_branch
      %44 = sbr.rel (0) target = $region17
    $region16: #{tpu_custom_call.1} parent=1 // pred_region
      _
    $region17: #{tpu_custom_call.1} parent=1 // pred_fallthru
      _
    // Predicated region
    $region18: #{tpu_custom_call.1} parent=1 // pred_check
      _
    $region19: #{tpu_custom_call.1} parent=1 // pred_check_branch
      %46 = sbr.rel (0) target = $region21
    $region20: #{tpu_custom_call.1} parent=1 // pred_region
      _
    $region21: #{tpu_custom_call.1} parent=1 // pred_fallthru
      _
    // Predicated region
    $region22: #{tpu_custom_call.1} parent=1 // pred_check
      _
    $region23: #{tpu_custom_call.1} parent=1 // pred_check_branch
      %48 = sbr.rel (0) target = $region25
    $region24: #{tpu_custom_call.1} parent=1 // pred_region
      _
    $region25: #{tpu_custom_call.1} parent=1 // pred_fallthru
      _
    // Predicated region
    $region26: #{tpu_custom_call.1} parent=1 // pred_check
      _
    $region27: #{tpu_custom_call.1} parent=1 // pred_check_branch
      %50 = sbr.rel (0) target = $region29
    $region28: #{tpu_custom_call.1} parent=1 // pred_region
      _
    $region29: #{tpu_custom_call.1} parent=1 // pred_fallthru
      _
    // Predicated region
    $region30: #{tpu_custom_call.1} parent=1 // pred_check
      _
    $region31: #{tpu_custom_call.1} parent=1 // pred_check_branch
      %52 = sbr.rel (0) target = $region33
    $region32: #{tpu_custom_call.1} parent=1 // pred_region
      _
    $region33: #{tpu_custom_call.1} parent=1 // pred_fallthru
      _
    // Predicated region
    $region34: #{tpu_custom_call.1} parent=1 // pred_check
      _
    $region35: #{tpu_custom_call.1} parent=1 // pred_check_branch
      %54 = sbr.rel (0) target = $region37
    $region36: #{tpu_custom_call.1} parent=1 // pred_region
      _
    $region37: #{tpu_custom_call.1} parent=1 // pred_fallthru
      _
    // Predicated region
    $region38: #{tpu_custom_call.1} parent=1 // pred_check
      _
    $region39: #{tpu_custom_call.1} parent=1 // pred_check_branch
      %56 = sbr.rel (0) target = $region41
    $region40: #{tpu_custom_call.1} parent=1 // pred_region
      %57 = dma.done [#allocation3], 3584
    $region41: #{tpu_custom_call.1} parent=1 // pred_fallthru
      _
    // Predicated region
    $region42: #{tpu_custom_call.1} parent=1 // pred_check
      _
    $region43: #{tpu_custom_call.1} parent=1 // pred_check_branch
      %59 = sbr.rel (0) target = $region45
    $region44: #{tpu_custom_call.1} parent=1 // pred_region
      %60 = dma.done [#allocation6], 4096
    $region45: #{tpu_custom_call.1} parent=1 // pred_fallthru
      _
    %v62 = vld [vmem:[%s8] sm:$0xff]
    %v63 = vld [vmem:[%s8 + $0x8] sm:$0xff]
    %v64 = vld [vmem:[%s8 + $0x10] sm:$0xff]
    %v65 = vld [vmem:[%s8 + $0x18] sm:$0xff]
    %v66 = vld [vmem:[%s8 + $0x20] sm:$0xff]
    %v67 = vld [vmem:[%s8 + $0x28] sm:$0xff]
    %v68 = vld [vmem:[%s8 + $0x30] sm:$0xff]
    %v69 = vld [vmem:[%s8 + $0x38] sm:$0xff]
    %v70 = vld [vmem:[%s8 + $0x40] sm:$0xff]
    %v71 = vld [vmem:[%s8 + $0x48] sm:$0xff]
    %v72 = vld [vmem:[%s8 + $0x50] sm:$0xff]
    %v73 = vld [vmem:[%s8 + $0x58] sm:$0xff]
    %v74 = vld [vmem:[%s8 + $0x60] sm:$0xff]
    %v75 = vld [vmem:[%s8 + $0x68] sm:$0xff]
    %v76 = vld [vmem:[%s8 + $0x70] sm:$0xff]
    %v77 = vld [vmem:[%s8 + $0x78] sm:$0xff]
    %v78 = vld [vmem:[%s8 + $0x80] sm:$0xff]
    %v79 = vld [vmem:[%s8 + $0x88] sm:$0xff]
    %v80 = vld [vmem:[%s8 + $0x90] sm:$0xff]
    %v81 = vld [vmem:[%s8 + $0x98] sm:$0xff]
    %v82 = vld [vmem:[%s8 + $0xa0] sm:$0xff]
    %v83 = vld [vmem:[%s8 + $0xa8] sm:$0xff]
    %v84 = vld [vmem:[%s8 + $0xb0] sm:$0xff]
    %v85 = vld [vmem:[%s8 + $0xb8] sm:$0xff]
    %v86 = vld [vmem:[%s8 + $0xc0] sm:$0xff]
    %v87 = vld [vmem:[%s8 + $0xc8] sm:$0xff]
    %v88 = vld [vmem:[%s8 + $0xd0] sm:$0xff]
    %v89 = vld [vmem:[%s8 + $0xd8] sm:$0xff]
    %v90 = vld [vmem:[%s8 + $0xe0] sm:$0xff]
    %v91 = vld [vmem:[%s8 + $0xe8] sm:$0xff]
    %v92 = vld [vmem:[%s8 + $0xf0] sm:$0xff]
    %v93 = vld [vmem:[%s8 + $0xf8] sm:$0xff]
    %v94 = vld [vmem:[%s8 + $0x100] sm:$0xff]
    %v95 = vld [vmem:[%s8 + $0x108] sm:$0xff]
    %v96 = vld [vmem:[%s8 + $0x110] sm:$0xff]
    %v97 = vld [vmem:[%s8 + $0x118] sm:$0xff]
    %v98 = vld [vmem:[%s8 + $0x120] sm:$0xff]
    %v99 = vld [vmem:[%s8 + $0x128] sm:$0xff]
    %v100 = vld [vmem:[%s8 + $0x130] sm:$0xff]
    %v101 = vld [vmem:[%s8 + $0x138] sm:$0xff]
    %v102 = vld [vmem:[%s8 + $0x140] sm:$0xff]
    %v103 = vld [vmem:[%s8 + $0x148] sm:$0xff]
    %v104 = vld [vmem:[%s8 + $0x150] sm:$0xff]
    %v105 = vld [vmem:[%s8 + $0x158] sm:$0xff]
    %v106 = vld [vmem:[%s8 + $0x160] sm:$0xff]
    %v107 = vld [vmem:[%s8 + $0x168] sm:$0xff]
    %v108 = vld [vmem:[%s8 + $0x170] sm:$0xff]
    %v109 = vld [vmem:[%s8 + $0x178] sm:$0xff]
    %v110 = vld [vmem:[%s8 + $0x180] sm:$0xff]
    %v111 = vld [vmem:[%s8 + $0x188] sm:$0xff]
    %v112 = vld [vmem:[%s8 + $0x190] sm:$0xff]
    %v113 = vld [vmem:[%s8 + $0x198] sm:$0xff]
    %v114 = vld [vmem:[%s8 + $0x1a0] sm:$0xff]
    %v115 = vld [vmem:[%s8 + $0x1a8] sm:$0xff]
    %v116 = vld [vmem:[%s8 + $0x1b0] sm:$0xff]
    %v117 = vld [vmem:[%s8 + $0x1b8] sm:$0xff]
    %v118 = vld [vmem:[%s8 + $0x1c0] sm:$0xff]
    %v119 = vld [vmem:[%s8 + $0x1c8] sm:$0xff]
    %v120 = vld [vmem:[%s8 + $0x1d0] sm:$0xff]
    %v121 = vld [vmem:[%s8 + $0x1d8] sm:$0xff]
    %v122 = vld [vmem:[%s8 + $0x1e0] sm:$0xff]
    %v123 = vld [vmem:[%s8 + $0x1e8] sm:$0xff]
    %v124 = vld [vmem:[%s8 + $0x1f0] sm:$0xff]
    %v125 = vld [vmem:[%s8 + $0x1f8] sm:$0xff]
    %v126 = vld [vmem:[%s8] sm:$0x1]
    %v127 = vld [vmem:[%s2] sm:$0xff]
    %v128 = vld [vmem:[%s2 + $0x8] sm:$0xff]
    %v129 = vld [vmem:[%s2 + $0x10] sm:$0xff]
    %v130 = vld [vmem:[%s2 + $0x18] sm:$0xff]
    %v131 = vld [vmem:[#allocation5] sm:$0xff]
    %v132 = vld [vmem:[#allocation5 + $0x8] sm:$0xff]
    %v133 = vld [vmem:[#allocation5 + $0x10] sm:$0xff]
    %v134 = vld [vmem:[#allocation5 + $0x18] sm:$0xff]
    %v135 = vld [vmem:[#allocation5 + $0x20] sm:$0xff]
    %v136 = vld [vmem:[#allocation5 + $0x28] sm:$0xff]
    %v137 = vld [vmem:[#allocation5 + $0x30] sm:$0xff]
    %v138 = vld [vmem:[#allocation5 + $0x38] sm:$0xff]
    %v139 = vld [vmem:[#allocation5 + $0x40] sm:$0xff]
    %v140 = vld [vmem:[#allocation5 + $0x48] sm:$0xff]
    %v141 = vld [vmem:[#allocation5 + $0x50] sm:$0xff]
    %v142 = vld [vmem:[#allocation5 + $0x58] sm:$0xff]
    %v143 = vld [vmem:[#allocation5 + $0x60] sm:$0xff]
    %v144 = vld [vmem:[#allocation5 + $0x68] sm:$0xff]
    %v145 = vld [vmem:[#allocation5 + $0x70] sm:$0xff]
    %v146 = vld [vmem:[#allocation5 + $0x78] sm:$0xff]
    %v147 = vld [vmem:[#allocation5 + $0x80] sm:$0xff]
    %v148 = vld [vmem:[#allocation5 + $0x88] sm:$0xff]
    %v149 = vld [vmem:[#allocation5 + $0x90] sm:$0xff]
    %v150 = vld [vmem:[#allocation5 + $0x98] sm:$0xff]
    %v151 = vld [vmem:[#allocation5 + $0xa0] sm:$0xff]
    %v152 = vld [vmem:[#allocation5 + $0xa8] sm:$0xff]
    %v153 = vld [vmem:[#allocation5 + $0xb0] sm:$0xff]
    %v154 = vld [vmem:[#allocation5 + $0xb8] sm:$0xff]
    %v155 = vld [vmem:[#allocation5 + $0xc0] sm:$0xff]
    %v156 = vld [vmem:[#allocation5 + $0xc8] sm:$0xff]
    %v157 = vld [vmem:[#allocation5 + $0xd0] sm:$0xff]
    %v158 = vld [vmem:[#allocation5 + $0xd8] sm:$0xff]
    %v159 = vld [vmem:[#allocation5 + $0xe0] sm:$0xff]
    %v160 = vld [vmem:[#allocation5 + $0xe8] sm:$0xff]
    %v161 = vld [vmem:[#allocation5 + $0xf0] sm:$0xff]
    %v162 = vld [vmem:[#allocation5 + $0xf8] sm:$0xff]
    %164 = vset.pattern.permute.xlu0 3
    %165 = vperm.xlu0 %164, %v62
    %v166 = vpop.permute.xlu0 %165
    %169 = vset.pattern.permute.xlu0 3
    %170 = vperm.xlu0 %169, %v63
    %v171 = vpop.permute.xlu0 %170
    %174 = vset.pattern.permute.xlu0 3
    %175 = vperm.xlu0 %174, %v64
    %v176 = vpop.permute.xlu0 %175
    %179 = vset.pattern.permute.xlu0 3
    %180 = vperm.xlu0 %179, %v65
    %v181 = vpop.permute.xlu0 %180
    %v187 = vunpack.c.l.b16 %v127
    %v188 = vunpack.c.h.b16 %v127
    %v189 = vunpack.c.l.b16 %v128
    %v190 = vunpack.c.h.b16 %v128
    %v191 = vunpack.c.l.b16 %v129
    %v192 = vunpack.c.h.b16 %v129
    %v193 = vunpack.c.l.b16 %v130
    %v194 = vunpack.c.h.b16 %v130
    %v195 = vpack.c.b16 %v189, %v187
    %v196 = vpack.c.b16 %v190, %v188
    %v197 = vpack.c.b16 %v193, %v191
    %v198 = vpack.c.b16 %v194, %v192
    %v235 = vunpack.c.l.b16 %v131
    %v236 = vunpack.c.h.b16 %v131
    %v237 = vunpack.c.l.b16 %v132
    %v238 = vunpack.c.h.b16 %v132
    %v239 = vunpack.c.l.b16 %v133
    %v240 = vunpack.c.h.b16 %v133
    %v241 = vunpack.c.l.b16 %v134
    %v242 = vunpack.c.h.b16 %v134
    %v243 = vunpack.c.l.b16 %v135
    %v244 = vunpack.c.h.b16 %v135
    %v245 = vunpack.c.l.b16 %v136
    %v246 = vunpack.c.h.b16 %v136
    %v247 = vunpack.c.l.b16 %v137
    %v248 = vunpack.c.h.b16 %v137
    %v249 = vunpack.c.l.b16 %v138
    %v250 = vunpack.c.h.b16 %v138
    %v251 = vunpack.c.l.b16 %v139
    %v252 = vunpack.c.h.b16 %v139
    %v253 = vunpack.c.l.b16 %v140
    %v254 = vunpack.c.h.b16 %v140
    %v255 = vunpack.c.l.b16 %v141
    %v256 = vunpack.c.h.b16 %v141
    %v257 = vunpack.c.l.b16 %v142
    %v258 = vunpack.c.h.b16 %v142
    %v259 = vunpack.c.l.b16 %v143
    %v260 = vunpack.c.h.b16 %v143
    %v261 = vunpack.c.l.b16 %v144
    %v262 = vunpack.c.h.b16 %v144
    %v263 = vunpack.c.l.b16 %v145
    %v264 = vunpack.c.h.b16 %v145
    %v265 = vunpack.c.l.b16 %v146
    %v266 = vunpack.c.h.b16 %v146
    %v267 = vunpack.c.l.b16 %v147
    %v268 = vunpack.c.h.b16 %v147
    %v269 = vunpack.c.l.b16 %v148
    %v270 = vunpack.c.h.b16 %v148
    %v271 = vunpack.c.l.b16 %v149
    %v272 = vunpack.c.h.b16 %v149
    %v273 = vunpack.c.l.b16 %v150
    %v274 = vunpack.c.h.b16 %v150
    %v275 = vunpack.c.l.b16 %v151
    %v276 = vunpack.c.h.b16 %v151
    %v277 = vunpack.c.l.b16 %v152
    %v278 = vunpack.c.h.b16 %v152
    %v279 = vunpack.c.l.b16 %v153
    %v280 = vunpack.c.h.b16 %v153
    %v281 = vunpack.c.l.b16 %v154
    %v282 = vunpack.c.h.b16 %v154
    %v283 = vunpack.c.l.b16 %v155
    %v284 = vunpack.c.h.b16 %v155
    %v285 = vunpack.c.l.b16 %v156
    %v286 = vunpack.c.h.b16 %v156
    %v287 = vunpack.c.l.b16 %v157
    %v288 = vunpack.c.h.b16 %v157
    %v289 = vunpack.c.l.b16 %v158
    %v290 = vunpack.c.h.b16 %v158
    %v291 = vunpack.c.l.b16 %v159
    %v292 = vunpack.c.h.b16 %v159
    %v293 = vunpack.c.l.b16 %v160
    %v294 = vunpack.c.h.b16 %v160
    %v295 = vunpack.c.l.b16 %v161
    %v296 = vunpack.c.h.b16 %v161
    %v297 = vunpack.c.l.b16 %v162
    %v298 = vunpack.c.h.b16 %v162
    %v299 = vpack.c.b16 %v237, %v235
    %v300 = vpack.c.b16 %v238, %v236
    %v301 = vpack.c.b16 %v241, %v239
    %v302 = vpack.c.b16 %v242, %v240
    %v303 = vpack.c.b16 %v245, %v243
    %v304 = vpack.c.b16 %v246, %v244
    %v305 = vpack.c.b16 %v249, %v247
    %v306 = vpack.c.b16 %v250, %v248
    %v307 = vpack.c.b16 %v253, %v251
    %v308 = vpack.c.b16 %v254, %v252
    %v309 = vpack.c.b16 %v257, %v255
    %v310 = vpack.c.b16 %v258, %v256
    %v311 = vpack.c.b16 %v261, %v259
    %v312 = vpack.c.b16 %v262, %v260
    %v313 = vpack.c.b16 %v265, %v263
    %v314 = vpack.c.b16 %v266, %v264
    %v315 = vpack.c.b16 %v269, %v267
    %v316 = vpack.c.b16 %v270, %v268
    %v317 = vpack.c.b16 %v273, %v271
    %v318 = vpack.c.b16 %v274, %v272
    %v319 = vpack.c.b16 %v277, %v275
    %v320 = vpack.c.b16 %v278, %v276
    %v321 = vpack.c.b16 %v281, %v279
    %v322 = vpack.c.b16 %v282, %v280
    %v323 = vpack.c.b16 %v285, %v283
    %v324 = vpack.c.b16 %v286, %v284
    %v325 = vpack.c.b16 %v289, %v287
    %v326 = vpack.c.b16 %v290, %v288
    %v327 = vpack.c.b16 %v293, %v291
    %v328 = vpack.c.b16 %v294, %v292
    %v329 = vpack.c.b16 %v297, %v295
    %v330 = vpack.c.b16 %v298, %v296
    %363 = vmatprep.subr.bf16.mxu0 %v300
    %364 = vmatpush1.bf16.msra.mxu0 %v299
    %365 = vmatprep.subr.bf16.mxu0 %v302
    %366 = vmatpush1.bf16.msra.mxu0 %v301
    %367 = vmatprep.subr.bf16.mxu0 %v304
    %368 = vmatpush1.bf16.msra.mxu0 %v303
    %369 = vmatprep.subr.bf16.mxu0 %v306
    %370 = vmatpush1.bf16.msra.mxu0 %v305
    %371 = vmatprep.subr.bf16.mxu0 %v308
    %372 = vmatpush1.bf16.msra.mxu0 %v307
    %373 = vmatprep.subr.bf16.mxu0 %v310
    %374 = vmatpush1.bf16.msra.mxu0 %v309
    %375 = vmatprep.subr.bf16.mxu0 %v312
    %376 = vmatpush1.bf16.msra.mxu0 %v311
    %377 = vmatprep.subr.bf16.mxu0 %v314
    %378 = vmatpush1.bf16.msra.mxu0 %v313
    %379 = vmatprep.subr.bf16.mxu0 %v316
    %380 = vmatpush1.bf16.msra.mxu0 %v315
    %381 = vmatprep.subr.bf16.mxu0 %v318
    %382 = vmatpush1.bf16.msra.mxu0 %v317
    %383 = vmatprep.subr.bf16.mxu0 %v320
    %384 = vmatpush1.bf16.msra.mxu0 %v319
    %385 = vmatprep.subr.bf16.mxu0 %v322
    %386 = vmatpush1.bf16.msra.mxu0 %v321
    %387 = vmatprep.subr.bf16.mxu0 %v324
    %388 = vmatpush1.bf16.msra.mxu0 %v323
    %389 = vmatprep.subr.bf16.mxu0 %v326
    %390 = vmatpush1.bf16.msra.mxu0 %v325
    %391 = vmatprep.subr.bf16.mxu0 %v328
    %392 = vmatpush1.bf16.msra.mxu0 %v327
    %393 = vmatprep.subr.bf16.mxu0 %v330
    %394 = vmatpush1.bf16.msra.mxu0 %v329
    %395 = vmatprep.mubr.bf16.mxu0 %v196
    %396 = vmatmul.mubr.bf16.gmra.mrb[0].mxu0 %v195
    %v397 = vpop.f32.mrb[0].mxu0
    %v398 = vadd.f32 %v166, %v397
    %v399 = vpop.f32.mrb[0].mxu0
    %v400 = vadd.f32 %v166, %v399
    %v401 = vpop.f32.mrb[0].mxu0
    %v402 = vadd.f32 %v171, %v401
    %v403 = vpop.f32.mrb[0].mxu0
    %v404 = vadd.f32 %v171, %v403
    %405 = vmatprep.mubr.bf16.mxu0 %v198
    %406 = vmatmul.mubr.bf16.gmra.mrb[0].mxu0 %v197
    %v407 = vpop.f32.mrb[0].mxu0
    %v408 = vadd.f32 %v176, %v407
    %v409 = vpop.f32.mrb[0].mxu0
    %v410 = vadd.f32 %v176, %v409
    %v411 = vpop.f32.mrb[0].mxu0
    %v412 = vadd.f32 %v181, %v411
    %v413 = vpop.f32.mrb[0].mxu0
    %v414 = vadd.f32 %v181, %v413
    %415 = vdwg.mxu0
    %v416 = vmax.f32 %v398, 0.0
    %v417 = vmax.f32 %v400, 0.0
    %v418 = vmax.f32 %v402, 0.0
    %v419 = vmax.f32 %v404, 0.0
    %v420 = vmax.f32 %v408, 0.0
    %v421 = vmax.f32 %v410, 0.0
    %v422 = vmax.f32 %v412, 0.0
    %v423 = vmax.f32 %v414, 0.0
    %v424 = vpack.c.bf16 %v418, %v416
    %v425 = vpack.c.bf16 %v419, %v417
    %v426 = vpack.c.bf16 %v422, %v420
    %v427 = vpack.c.bf16 %v423, %v421
    %v428 = vld [vmem:[%s3] sm:$0xff]
    %v429 = vld [vmem:[%s3 + $0x8] sm:$0xff]
    %v430 = vld [vmem:[%s3 + $0x10] sm:$0xff]
    %v431 = vld [vmem:[%s3 + $0x18] sm:$0xff]
    %v432 = vld [vmem:[%s3 + $0x20] sm:$0xff]
    %v433 = vld [vmem:[%s3 + $0x28] sm:$0xff]
    %v434 = vld [vmem:[%s3 + $0x30] sm:$0xff]
    %v435 = vld [vmem:[%s3 + $0x38] sm:$0xff]
    %v436 = vld [vmem:[%s3 + $0x40] sm:$0xff]
    %v437 = vld [vmem:[%s3 + $0x48] sm:$0xff]
    %v438 = vld [vmem:[%s3 + $0x50] sm:$0xff]
    %v439 = vld [vmem:[%s3 + $0x58] sm:$0xff]
    %v440 = vld [vmem:[%s3 + $0x60] sm:$0xff]
    %v441 = vld [vmem:[%s3 + $0x68] sm:$0xff]
    %v442 = vld [vmem:[%s3 + $0x70] sm:$0xff]
    %v443 = vld [vmem:[%s3 + $0x78] sm:$0xff]
    %v444 = vld [vmem:[%s3 + $0x80] sm:$0xff]
    %v445 = vld [vmem:[%s3 + $0x88] sm:$0xff]
    %v446 = vld [vmem:[%s3 + $0x90] sm:$0xff]
    %v447 = vld [vmem:[%s3 + $0x98] sm:$0xff]
    %v448 = vld [vmem:[%s3 + $0xa0] sm:$0xff]
    %v449 = vld [vmem:[%s3 + $0xa8] sm:$0xff]
    %v450 = vld [vmem:[%s3 + $0xb0] sm:$0xff]
    %v451 = vld [vmem:[%s3 + $0xb8] sm:$0xff]
    %v452 = vld [vmem:[%s3 + $0xc0] sm:$0xff]
    %v453 = vld [vmem:[%s3 + $0xc8] sm:$0xff]
    %v454 = vld [vmem:[%s3 + $0xd0] sm:$0xff]
    %v455 = vld [vmem:[%s3 + $0xd8] sm:$0xff]
    %v456 = vld [vmem:[%s3 + $0xe0] sm:$0xff]
    %v457 = vld [vmem:[%s3 + $0xe8] sm:$0xff]
    %v458 = vld [vmem:[%s3 + $0xf0] sm:$0xff]
    %v459 = vld [vmem:[%s3 + $0xf8] sm:$0xff]
    %v460 = vld [vmem:[#allocation2] sm:$0xff]
    %v461 = vld [vmem:[#allocation2 + $0x8] sm:$0xff]
    %v462 = vld [vmem:[#allocation2 + $0x10] sm:$0xff]
    %v463 = vld [vmem:[#allocation2 + $0x18] sm:$0xff]
    %v464 = vld [vmem:[#allocation2 + $0x20] sm:$0xff]
    %v465 = vld [vmem:[#allocation2 + $0x28] sm:$0xff]
    %v466 = vld [vmem:[#allocation2 + $0x30] sm:$0xff]
    %v467 = vld [vmem:[#allocation2 + $0x38] sm:$0xff]
    %v468 = vld [vmem:[#allocation2 + $0x40] sm:$0xff]
    %v469 = vld [vmem:[#allocation2 + $0x48] sm:$0xff]
    %v470 = vld [vmem:[#allocation2 + $0x50] sm:$0xff]
    %v471 = vld [vmem:[#allocation2 + $0x58] sm:$0xff]
    %v472 = vld [vmem:[#allocation2 + $0x60] sm:$0xff]
    %v473 = vld [vmem:[#allocation2 + $0x68] sm:$0xff]
    %v474 = vld [vmem:[#allocation2 + $0x70] sm:$0xff]
    %v475 = vld [vmem:[#allocation2 + $0x78] sm:$0xff]
    %v476 = vld [vmem:[#allocation2 + $0x80] sm:$0xff]
    %v477 = vld [vmem:[#allocation2 + $0x88] sm:$0xff]
    %v478 = vld [vmem:[#allocation2 + $0x90] sm:$0xff]
    %v479 = vld [vmem:[#allocation2 + $0x98] sm:$0xff]
    %v480 = vld [vmem:[#allocation2 + $0xa0] sm:$0xff]
    %v481 = vld [vmem:[#allocation2 + $0xa8] sm:$0xff]
    %v482 = vld [vmem:[#allocation2 + $0xb0] sm:$0xff]
    %v483 = vld [vmem:[#allocation2 + $0xb8] sm:$0xff]
    %v484 = vld [vmem:[#allocation2 + $0xc0] sm:$0xff]
    %v485 = vld [vmem:[#allocation2 + $0xc8] sm:$0xff]
    %v486 = vld [vmem:[#allocation2 + $0xd0] sm:$0xff]
    %v487 = vld [vmem:[#allocation2 + $0xd8] sm:$0xff]
    %v488 = vld [vmem:[%s4] sm:$0xf]
    %v489 = vld [vmem:[%s4 + $0x4] sm:$0xf]
    %v490 = vld [vmem:[%s4 + $0x8] sm:$0xf]
    %v491 = vld [vmem:[%s4 + $0xc] sm:$0xf]
    %v492 = vld [vmem:[%s4 + $0x10] sm:$0xf]
    %v493 = vld [vmem:[%s4 + $0x14] sm:$0xf]
    %v494 = vld [vmem:[%s4 + $0x18] sm:$0xf]
    %v495 = vld [vmem:[%s4 + $0x1c] sm:$0xf]
    %v496 = vld [vmem:[%s4 + $0x20] sm:$0xf]
    %v497 = vld [vmem:[%s4 + $0x24] sm:$0xf]
    %v498 = vld [vmem:[%s4 + $0x28] sm:$0xf]
    %v499 = vld [vmem:[%s4 + $0x2c] sm:$0xf]
    %v500 = vld [vmem:[%s4 + $0x30] sm:$0xf]
    %v501 = vld [vmem:[%s4 + $0x34] sm:$0xf]
    %v502 = vld [vmem:[%s4 + $0x38] sm:$0xf]
    %v503 = vld [vmem:[%s4 + $0x3c] sm:$0xf]
    %v504 = vld [vmem:[%s4 + $0x40] sm:$0xf]
    %v505 = vld [vmem:[%s4 + $0x44] sm:$0xf]
    %v506 = vld [vmem:[%s4 + $0x48] sm:$0xf]
    %v507 = vld [vmem:[%s4 + $0x4c] sm:$0xf]
    %v508 = vld [vmem:[%s4 + $0x50] sm:$0xf]
    %v509 = vld [vmem:[%s4 + $0x54] sm:$0xf]
    %v510 = vld [vmem:[%s4 + $0x58] sm:$0xf]
    %v511 = vld [vmem:[%s4 + $0x5c] sm:$0xf]
    %v512 = vld [vmem:[%s4 + $0x60] sm:$0xf]
    %v513 = vld [vmem:[%s4 + $0x64] sm:$0xf]
    %v514 = vld [vmem:[%s4 + $0x68] sm:$0xf]
    %v515 = vld [vmem:[%s4 + $0x6c] sm:$0xf]
    %v516 = vld [vmem:[%s4 + $0x70] sm:$0xf]
    %v517 = vld [vmem:[%s4 + $0x74] sm:$0xf]
    %v518 = vld [vmem:[%s4 + $0x78] sm:$0xf]
    %v519 = vld [vmem:[%s4 + $0x7c] sm:$0xf]
    %v552 = vunpack.c.l.b16 %v488
    %v553 = vunpack.c.l.b16 %v489
    %v554 = vunpack.c.l.b16 %v490
    %v555 = vunpack.c.l.b16 %v491
    %v556 = vunpack.c.l.b16 %v492
    %v557 = vunpack.c.l.b16 %v493
    %v558 = vunpack.c.l.b16 %v494
    %v559 = vunpack.c.l.b16 %v495
    %v560 = vunpack.c.l.b16 %v496
    %v561 = vunpack.c.l.b16 %v497
    %v562 = vunpack.c.l.b16 %v498
    %v563 = vunpack.c.l.b16 %v499
    %v564 = vunpack.c.l.b16 %v500
    %v565 = vunpack.c.l.b16 %v501
    %v566 = vunpack.c.l.b16 %v502
    %v567 = vunpack.c.l.b16 %v503
    %v568 = vunpack.c.l.b16 %v504
    %v569 = vunpack.c.l.b16 %v505
    %v570 = vunpack.c.l.b16 %v506
    %v571 = vunpack.c.l.b16 %v507
    %v572 = vunpack.c.l.b16 %v508
    %v573 = vunpack.c.l.b16 %v509
    %v574 = vunpack.c.l.b16 %v510
    %v575 = vunpack.c.l.b16 %v511
    %v576 = vunpack.c.l.b16 %v512
    %v577 = vunpack.c.l.b16 %v513
    %v578 = vunpack.c.l.b16 %v514
    %v579 = vunpack.c.l.b16 %v515
    %v580 = vunpack.c.l.b16 %v516
    %v581 = vunpack.c.l.b16 %v517
    %v582 = vunpack.c.l.b16 %v518
    %v583 = vunpack.c.l.b16 %v519
    %v584 = vpack.c.b16 %v553, %v552
    %v585 = vpack.c.b16 %v555, %v554
    %v586 = vpack.c.b16 %v557, %v556
    %v587 = vpack.c.b16 %v559, %v558
    %v588 = vpack.c.b16 %v561, %v560
    %v589 = vpack.c.b16 %v563, %v562
    %v590 = vpack.c.b16 %v565, %v564
    %v591 = vpack.c.b16 %v567, %v566
    %v592 = vpack.c.b16 %v569, %v568
    %v593 = vpack.c.b16 %v571, %v570
    %v594 = vpack.c.b16 %v573, %v572
    %v595 = vpack.c.b16 %v575, %v574
    %v596 = vpack.c.b16 %v577, %v576
    %v597 = vpack.c.b16 %v579, %v578
    %v598 = vpack.c.b16 %v581, %v580
    %v599 = vpack.c.b16 %v583, %v582
    %vm600 = vcmask 261120
    %v602 = vsel %vm600, %v584, 0
    %v605 = vsel %vm600, %v585, 0
    %v608 = vsel %vm600, %v586, 0
    %v611 = vsel %vm600, %v587, 0
    %v614 = vsel %vm600, %v588, 0
    %v617 = vsel %vm600, %v589, 0
    %v620 = vsel %vm600, %v590, 0
    %v623 = vsel %vm600, %v591, 0
    %v626 = vsel %vm600, %v592, 0
    %v629 = vsel %vm600, %v593, 0
    %v632 = vsel %vm600, %v594, 0
    %v635 = vsel %vm600, %v595, 0
    %v638 = vsel %vm600, %v596, 0
    %v641 = vsel %vm600, %v597, 0
    %v644 = vsel %vm600, %v598, 0
    %v647 = vsel %vm600, %v599, 0
    %649 = vmatprep.subr.bf16.mxu0 %v425
    %650 = vmatpush1.bf16.msra.mxu0 %v424
    %651 = vmatprep.subr.bf16.mxu0 %v427
    %652 = vmatpush1.bf16.msra.mxu0 %v426
    %653 = vmatprep.subr.bf16.mxu0 0
    %654 = vmatpush1.bf16.msra.mxu0 0
    %655 = vmatprep.subr.bf16.mxu0 0
    %656 = vmatpush1.bf16.msra.mxu0 0
    %657 = vmatprep.subr.bf16.mxu0 0
    %658 = vmatpush1.bf16.msra.mxu0 0
    %659 = vmatprep.subr.bf16.mxu0 0
    %660 = vmatpush1.bf16.msra.mxu0 0
    %661 = vmatprep.subr.bf16.mxu0 0
    %662 = vmatpush1.bf16.msra.mxu0 0
    %663 = vmatprep.subr.bf16.mxu0 0
    %664 = vmatpush1.bf16.msra.mxu0 0
    %665 = vmatprep.subr.bf16.mxu0 0
    %666 = vmatpush1.bf16.msra.mxu0 0
    %667 = vmatprep.subr.bf16.mxu0 0
    %668 = vmatpush1.bf16.msra.mxu0 0
    %669 = vmatprep.subr.bf16.mxu0 0
    %670 = vmatpush1.bf16.msra.mxu0 0
    %671 = vmatprep.subr.bf16.mxu0 0
    %672 = vmatpush1.bf16.msra.mxu0 0
    %673 = vmatprep.subr.bf16.mxu0 0
    %674 = vmatpush1.bf16.msra.mxu0 0
    %675 = vmatprep.subr.bf16.mxu0 0
    %676 = vmatpush1.bf16.msra.mxu0 0
    %677 = vmatprep.subr.bf16.mxu0 0
    %678 = vmatpush1.bf16.msra.mxu0 0
    %679 = vmatprep.subr.bf16.mxu0 0
    %680 = vmatpush1.bf16.msra.mxu0 0
    %681 = vmatprep.mubr.bf16.mxu0 0
    %682 = vmatmul.mubr.bf16.gmra.mrb[0].mxu0 %v602
    %v683 = vpop.f32.mrb[0].mxu0
    %v684 = vadd.f32 0.0, %v683
    %v685 = vpop.f32.mrb[0].mxu0
    %v686 = vadd.f32 0.0, %v685
    %v687 = vpop.f32.mrb[0].mxu0
    %v688 = vadd.f32 0.0, %v687
    %v689 = vpop.f32.mrb[0].mxu0
    %v690 = vadd.f32 0.0, %v689
    %691 = vmatprep.mubr.bf16.mxu0 0
    %692 = vmatmul.mubr.bf16.gmra.mrb[0].mxu0 %v605
    %v693 = vpop.f32.mrb[0].mxu0
    %v694 = vadd.f32 0.0, %v693
    %v695 = vpop.f32.mrb[0].mxu0
    %v696 = vadd.f32 0.0, %v695
    %v697 = vpop.f32.mrb[0].mxu0
    %v698 = vadd.f32 0.0, %v697
    %v699 = vpop.f32.mrb[0].mxu0
    %v700 = vadd.f32 0.0, %v699
    %701 = vmatprep.mubr.bf16.mxu0 0
    %702 = vmatmul.mubr.bf16.gmra.mrb[0].mxu0 %v608
    %v703 = vpop.f32.mrb[0].mxu0
    %v704 = vadd.f32 0.0, %v703
    %v705 = vpop.f32.mrb[0].mxu0
    %v706 = vadd.f32 0.0, %v705
    %v707 = vpop.f32.mrb[0].mxu0
    %v708 = vadd.f32 0.0, %v707
    %v709 = vpop.f32.mrb[0].mxu0
    %v710 = vadd.f32 0.0, %v709
    %711 = vmatprep.mubr.bf16.mxu0 0
    %712 = vmatmul.mubr.bf16.gmra.mrb[0].mxu0 %v611
    %v713 = vpop.f32.mrb[0].mxu0
    %v714 = vadd.f32 0.0, %v713
    %v715 = vpop.f32.mrb[0].mxu0
    %v716 = vadd.f32 0.0, %v715
    %v717 = vpop.f32.mrb[0].mxu0
    %v718 = vadd.f32 0.0, %v717
    %v719 = vpop.f32.mrb[0].mxu0
    %v720 = vadd.f32 0.0, %v719
    %721 = vmatprep.mubr.bf16.mxu0 0
    %722 = vmatmul.mubr.bf16.gmra.mrb[0].mxu0 %v614
    %v723 = vpop.f32.mrb[0].mxu0
    %v724 = vadd.f32 0.0, %v723
    %v725 = vpop.f32.mrb[0].mxu0
    %v726 = vadd.f32 0.0, %v725
    %v727 = vpop.f32.mrb[0].mxu0
    %v728 = vadd.f32 0.0, %v727
    %v729 = vpop.f32.mrb[0].mxu0
    %v730 = vadd.f32 0.0, %v729
    %731 = vmatprep.mubr.bf16.mxu0 0
    %732 = vmatmul.mubr.bf16.gmra.mrb[0].mxu0 %v617
    %v733 = vpop.f32.mrb[0].mxu0
    %v734 = vadd.f32 0.0, %v733
    %v735 = vpop.f32.mrb[0].mxu0
    %v736 = vadd.f32 0.0, %v735
    %v737 = vpop.f32.mrb[0].mxu0
    %v738 = vadd.f32 0.0, %v737
    %v739 = vpop.f32.mrb[0].mxu0
    %v740 = vadd.f32 0.0, %v739
    %741 = vmatprep.mubr.bf16.mxu0 0
    %742 = vmatmul.mubr.bf16.gmra.mrb[0].mxu0 %v620
    %v743 = vpop.f32.mrb[0].mxu0
    %v744 = vadd.f32 0.0, %v743
    %v745 = vpop.f32.mrb[0].mxu0
    %v746 = vadd.f32 0.0, %v745
    %v747 = vpop.f32.mrb[0].mxu0
    %v748 = vadd.f32 0.0, %v747
    %v749 = vpop.f32.mrb[0].mxu0
    %v750 = vadd.f32 0.0, %v749
    %751 = vmatprep.mubr.bf16.mxu0 0
    %752 = vmatmul.mubr.bf16.gmra.mrb[0].mxu0 %v623
    %v753 = vpop.f32.mrb[0].mxu0
    %v754 = vadd.f32 0.0, %v753
    %v755 = vpop.f32.mrb[0].mxu0
    %v756 = vadd.f32 0.0, %v755
    %v757 = vpop.f32.mrb[0].mxu0
    %v758 = vadd.f32 0.0, %v757
    %v759 = vpop.f32.mrb[0].mxu0
    %v760 = vadd.f32 0.0, %v759
    %761 = vmatprep.mubr.bf16.mxu0 0
    %762 = vmatmul.mubr.bf16.gmra.mrb[0].mxu0 %v626
    %v763 = vpop.f32.mrb[0].mxu0
    %v764 = vadd.f32 0.0, %v763
    %v765 = vpop.f32.mrb[0].mxu0
    %v766 = vadd.f32 0.0, %v765
    %v767 = vpop.f32.mrb[0].mxu0
    %v768 = vadd.f32 0.0, %v767
    %v769 = vpop.f32.mrb[0].mxu0
    %v770 = vadd.f32 0.0, %v769
    %771 = vmatprep.mubr.bf16.mxu0 0
    %772 = vmatmul.mubr.bf16.gmra.mrb[0].mxu0 %v629
    %v773 = vpop.f32.mrb[0].mxu0
    %v774 = vadd.f32 0.0, %v773
    %v775 = vpop.f32.mrb[0].mxu0
    %v776 = vadd.f32 0.0, %v775
    %v777 = vpop.f32.mrb[0].mxu0
    %v778 = vadd.f32 0.0, %v777
    %v779 = vpop.f32.mrb[0].mxu0
    %v780 = vadd.f32 0.0, %v779
    %781 = vmatprep.mubr.bf16.mxu0 0
    %782 = vmatmul.mubr.bf16.gmra.mrb[0].mxu0 %v632
    %v783 = vpop.f32.mrb[0].mxu0
    %v784 = vadd.f32 0.0, %v783
    %v785 = vpop.f32.mrb[0].mxu0
    %v786 = vadd.f32 0.0, %v785
    %v787 = vpop.f32.mrb[0].mxu0
    %v788 = vadd.f32 0.0, %v787
    %v789 = vpop.f32.mrb[0].mxu0
    %v790 = vadd.f32 0.0, %v789
    %791 = vmatprep.mubr.bf16.mxu0 0
    %792 = vmatmul.mubr.bf16.gmra.mrb[0].mxu0 %v635
    %v793 = vpop.f32.mrb[0].mxu0
    %v794 = vadd.f32 0.0, %v793
    %v795 = vpop.f32.mrb[0].mxu0
    %v796 = vadd.f32 0.0, %v795
    %v797 = vpop.f32.mrb[0].mxu0
    %v798 = vadd.f32 0.0, %v797
    %v799 = vpop.f32.mrb[0].mxu0
    %v800 = vadd.f32 0.0, %v799
    %801 = vmatprep.mubr.bf16.mxu0 0
    %802 = vmatmul.mubr.bf16.gmra.mrb[0].mxu0 %v638
    %v803 = vpop.f32.mrb[0].mxu0
    %v804 = vadd.f32 0.0, %v803
    %v805 = vpop.f32.mrb[0].mxu0
    %v806 = vadd.f32 0.0, %v805
    %v807 = vpop.f32.mrb[0].mxu0
    %v808 = vadd.f32 0.0, %v807
    %v809 = vpop.f32.mrb[0].mxu0
    %v810 = vadd.f32 0.0, %v809
    %811 = vmatprep.mubr.bf16.mxu0 0
    %812 = vmatmul.mubr.bf16.gmra.mrb[0].mxu0 %v641
    %v813 = vpop.f32.mrb[0].mxu0
    %v814 = vadd.f32 0.0, %v813
    %v815 = vpop.f32.mrb[0].mxu0
    %v816 = vadd.f32 0.0, %v815
    %v817 = vpop.f32.mrb[0].mxu0
    %v818 = vadd.f32 0.0, %v817
    %v819 = vpop.f32.mrb[0].mxu0
    %v820 = vadd.f32 0.0, %v819
    %821 = vmatprep.mubr.bf16.mxu0 0
    %822 = vmatmul.mubr.bf16.gmra.mrb[0].mxu0 %v644
    %v823 = vpop.f32.mrb[0].mxu0
    %v824 = vadd.f32 0.0, %v823
    %v825 = vpop.f32.mrb[0].mxu0
    %v826 = vadd.f32 0.0, %v825
    %v827 = vpop.f32.mrb[0].mxu0
    %v828 = vadd.f32 0.0, %v827
    %v829 = vpop.f32.mrb[0].mxu0
    %v830 = vadd.f32 0.0, %v829
    %831 = vmatprep.mubr.bf16.mxu0 0
    %832 = vmatmul.mubr.bf16.gmra.mrb[0].mxu0 %v647
    %v833 = vpop.f32.mrb[0].mxu0
    %v834 = vadd.f32 0.0, %v833
    %v835 = vpop.f32.mrb[0].mxu0
    %v836 = vadd.f32 0.0, %v835
    %v837 = vpop.f32.mrb[0].mxu0
    %v838 = vadd.f32 0.0, %v837
    %v839 = vpop.f32.mrb[0].mxu0
    %v840 = vadd.f32 0.0, %v839
    %841 = vdwg.mxu0
    %v874 = vunpack.c.l.b16 %v428
    %v875 = vunpack.c.h.b16 %v428
    %v876 = vunpack.c.l.b16 %v429
    %v877 = vunpack.c.h.b16 %v429
    %v878 = vunpack.c.l.b16 %v430
    %v879 = vunpack.c.h.b16 %v430
    %v880 = vunpack.c.l.b16 %v431
    %v881 = vunpack.c.h.b16 %v431
    %v882 = vunpack.c.l.b16 %v432
    %v883 = vunpack.c.h.b16 %v432
    %v884 = vunpack.c.l.b16 %v433
    %v885 = vunpack.c.h.b16 %v433
    %v886 = vunpack.c.l.b16 %v434
    %v887 = vunpack.c.h.b16 %v434
    %v888 = vunpack.c.l.b16 %v435
    %v889 = vunpack.c.h.b16 %v435
    %v890 = vunpack.c.l.b16 %v436
    %v891 = vunpack.c.h.b16 %v436
    %v892 = vunpack.c.l.b16 %v437
    %v893 = vunpack.c.h.b16 %v437
    %v894 = vunpack.c.l.b16 %v438
    %v895 = vunpack.c.h.b16 %v438
    %v896 = vunpack.c.l.b16 %v439
    %v897 = vunpack.c.h.b16 %v439
    %v898 = vunpack.c.l.b16 %v440
    %v899 = vunpack.c.h.b16 %v440
    %v900 = vunpack.c.l.b16 %v441
    %v901 = vunpack.c.h.b16 %v441
    %v902 = vunpack.c.l.b16 %v442
    %v903 = vunpack.c.h.b16 %v442
    %v904 = vunpack.c.l.b16 %v443
    %v905 = vunpack.c.h.b16 %v443
    %v906 = vunpack.c.l.b16 %v444
    %v907 = vunpack.c.h.b16 %v444
    %v908 = vunpack.c.l.b16 %v445
    %v909 = vunpack.c.h.b16 %v445
    %v910 = vunpack.c.l.b16 %v446
    %v911 = vunpack.c.h.b16 %v446
    %v912 = vunpack.c.l.b16 %v447
    %v913 = vunpack.c.h.b16 %v447
    %v914 = vunpack.c.l.b16 %v448
    %v915 = vunpack.c.h.b16 %v448
    %v916 = vunpack.c.l.b16 %v449
    %v917 = vunpack.c.h.b16 %v449
    %v918 = vunpack.c.l.b16 %v450
    %v919 = vunpack.c.h.b16 %v450
    %v920 = vunpack.c.l.b16 %v451
    %v921 = vunpack.c.h.b16 %v451
    %v922 = vunpack.c.l.b16 %v452
    %v923 = vunpack.c.h.b16 %v452
    %v924 = vunpack.c.l.b16 %v453
    %v925 = vunpack.c.h.b16 %v453
    %v926 = vunpack.c.l.b16 %v454
    %v927 = vunpack.c.h.b16 %v454
    %v928 = vunpack.c.l.b16 %v455
    %v929 = vunpack.c.h.b16 %v455
    %v930 = vunpack.c.l.b16 %v456
    %v931 = vunpack.c.h.b16 %v456
    %v932 = vunpack.c.l.b16 %v457
    %v933 = vunpack.c.h.b16 %v457
    %v934 = vunpack.c.l.b16 %v458
    %v935 = vunpack.c.h.b16 %v458
    %v936 = vunpack.c.l.b16 %v459
    %v937 = vunpack.c.h.b16 %v459
    %v938 = vpack.c.b16 %v876, %v874
    %v939 = vpack.c.b16 %v877, %v875
    %v940 = vpack.c.b16 %v880, %v878
    %v941 = vpack.c.b16 %v881, %v879
    %v942 = vpack.c.b16 %v884, %v882
    %v943 = vpack.c.b16 %v885, %v883
    %v944 = vpack.c.b16 %v888, %v886
    %v945 = vpack.c.b16 %v889, %v887
    %v946 = vpack.c.b16 %v892, %v890
    %v947 = vpack.c.b16 %v893, %v891
    %v948 = vpack.c.b16 %v896, %v894
    %v949 = vpack.c.b16 %v897, %v895
    %v950 = vpack.c.b16 %v900, %v898
    %v951 = vpack.c.b16 %v901, %v899
    %v952 = vpack.c.b16 %v904, %v902
    %v953 = vpack.c.b16 %v905, %v903
    %v954 = vpack.c.b16 %v908, %v906
    %v955 = vpack.c.b16 %v909, %v907
    %v956 = vpack.c.b16 %v912, %v910
    %v957 = vpack.c.b16 %v913, %v911
    %v958 = vpack.c.b16 %v916, %v914
    %v959 = vpack.c.b16 %v917, %v915
    %v960 = vpack.c.b16 %v920, %v918
    %v961 = vpack.c.b16 %v921, %v919
    %v962 = vpack.c.b16 %v924, %v922
    %v963 = vpack.c.b16 %v925, %v923
    %v964 = vpack.c.b16 %v928, %v926
    %v965 = vpack.c.b16 %v929, %v927
    %v966 = vpack.c.b16 %v932, %v930
    %v967 = vpack.c.b16 %v933, %v931
    %v968 = vpack.c.b16 %v936, %v934
    %v969 = vpack.c.b16 %v937, %v935
    %v1014 = vunpack.c.l.b16 %v460
    %v1015 = vunpack.c.h.b16 %v460
    %v1016 = vunpack.c.l.b16 %v461
    %v1017 = vunpack.c.h.b16 %v461
    %v1018 = vunpack.c.l.b16 %v462
    %v1019 = vunpack.c.h.b16 %v462
    %v1020 = vunpack.c.l.b16 %v463
    %v1021 = vunpack.c.h.b16 %v463
    %v1022 = vunpack.c.l.b16 %v464
    %v1023 = vunpack.c.h.b16 %v464
    %v1024 = vunpack.c.l.b16 %v465
    %v1025 = vunpack.c.h.b16 %v465
    %v1026 = vunpack.c.l.b16 %v466
    %v1027 = vunpack.c.h.b16 %v466
    %v1028 = vunpack.c.l.b16 %v467
    %v1029 = vunpack.c.h.b16 %v467
    %v1030 = vunpack.c.l.b16 %v468
    %v1031 = vunpack.c.h.b16 %v468
    %v1032 = vunpack.c.l.b16 %v469
    %v1033 = vunpack.c.h.b16 %v469
    %v1034 = vunpack.c.l.b16 %v470
    %v1035 = vunpack.c.h.b16 %v470
    %v1036 = vunpack.c.l.b16 %v471
    %v1037 = vunpack.c.h.b16 %v471
    %v1038 = vunpack.c.l.b16 %v472
    %v1039 = vunpack.c.h.b16 %v472
    %v1040 = vunpack.c.l.b16 %v473
    %v1041 = vunpack.c.h.b16 %v473
    %v1042 = vunpack.c.l.b16 %v474
    %v1043 = vunpack.c.h.b16 %v474
    %v1044 = vunpack.c.l.b16 %v475
    %v1045 = vunpack.c.h.b16 %v475
    %v1046 = vunpack.c.l.b16 %v476
    %v1047 = vunpack.c.h.b16 %v476
    %v1048 = vunpack.c.l.b16 %v477
    %v1049 = vunpack.c.h.b16 %v477
    %v1050 = vunpack.c.l.b16 %v478
    %v1051 = vunpack.c.h.b16 %v478
    %v1052 = vunpack.c.l.b16 %v479
    %v1053 = vunpack.c.h.b16 %v479
    %v1054 = vunpack.c.l.b16 %v480
    %v1055 = vunpack.c.h.b16 %v480
    %v1056 = vunpack.c.l.b16 %v481
    %v1057 = vunpack.c.h.b16 %v481
    %v1058 = vunpack.c.l.b16 %v482
    %v1059 = vunpack.c.h.b16 %v482
    %v1060 = vunpack.c.l.b16 %v483
    %v1061 = vunpack.c.h.b16 %v483
    %v1062 = vunpack.c.l.b16 %v484
    %v1063 = vunpack.c.h.b16 %v484
    %v1064 = vunpack.c.l.b16 %v485
    %v1065 = vunpack.c.h.b16 %v485
    %v1066 = vunpack.c.l.b16 %v486
    %v1067 = vunpack.c.h.b16 %v486
    %v1068 = vunpack.c.l.b16 %v487
    %v1069 = vunpack.c.h.b16 %v487
    %v1070 = vpack.c.b16 %v1016, %v1014
    %v1071 = vpack.c.b16 %v1017, %v1015
    %v1072 = vpack.c.b16 %v1020, %v1018
    %v1073 = vpack.c.b16 %v1021, %v1019
    %v1074 = vpack.c.b16 %v1024, %v1022
    %v1075 = vpack.c.b16 %v1025, %v1023
    %v1076 = vpack.c.b16 %v1028, %v1026
    %v1077 = vpack.c.b16 %v1029, %v1027
    %v1078 = vpack.c.b16 %v1032, %v1030
    %v1079 = vpack.c.b16 %v1033, %v1031
    %v1080 = vpack.c.b16 %v1036, %v1034
    %v1081 = vpack.c.b16 %v1037, %v1035
    %v1082 = vpack.c.b16 %v1040, %v1038
    %v1083 = vpack.c.b16 %v1041, %v1039
    %v1084 = vpack.c.b16 %v1044, %v1042
    %v1085 = vpack.c.b16 %v1045, %v1043
    %v1086 = vpack.c.b16 %v1048, %v1046
    %v1087 = vpack.c.b16 %v1049, %v1047
    %v1088 = vpack.c.b16 %v1052, %v1050
    %v1089 = vpack.c.b16 %v1053, %v1051
    %v1090 = vpack.c.b16 %v1056, %v1054
    %v1091 = vpack.c.b16 %v1057, %v1055
    %v1092 = vpack.c.b16 %v1060, %v1058
    %v1093 = vpack.c.b16 %v1061, %v1059
    %v1094 = vpack.c.b16 %v1064, %v1062
    %v1095 = vpack.c.b16 %v1065, %v1063
    %v1096 = vpack.c.b16 %v1068, %v1066
    %v1097 = vpack.c.b16 %v1069, %v1067
    %vm1126 = vcmask 785408
    %v1128 = vsel %vm1126, %v939, 0
    %v1131 = vsel %vm1126, %v941, 0
    %v1134 = vsel %vm1126, %v943, 0
    %v1137 = vsel %vm1126, %v945, 0
    %v1140 = vsel %vm1126, %v947, 0
    %v1143 = vsel %vm1126, %v949, 0
    %v1146 = vsel %vm1126, %v951, 0
    %v1149 = vsel %vm1126, %v953, 0
    %v1152 = vsel %vm1126, %v955, 0
    %v1155 = vsel %vm1126, %v957, 0
    %v1158 = vsel %vm1126, %v959, 0
    %v1161 = vsel %vm1126, %v961, 0
    %v1164 = vsel %vm1126, %v963, 0
    %v1167 = vsel %vm1126, %v965, 0
    %v1170 = vsel %vm1126, %v967, 0
    %v1173 = vsel %vm1126, %v969, 0
    %1175 = vmatprep.subr.bf16.mxu0 %v1071
    %1176 = vmatpush1.bf16.msra.mxu0 %v1070
    %1177 = vmatprep.subr.bf16.mxu0 %v1073
    %1178 = vmatpush1.bf16.msra.mxu0 %v1072
    %1179 = vmatprep.subr.bf16.mxu0 %v1075
    %1180 = vmatpush1.bf16.msra.mxu0 %v1074
    %1181 = vmatprep.subr.bf16.mxu0 %v1077
    %1182 = vmatpush1.bf16.msra.mxu0 %v1076
    %1183 = vmatprep.subr.bf16.mxu0 %v1079
    %1184 = vmatpush1.bf16.msra.mxu0 %v1078
    %1185 = vmatprep.subr.bf16.mxu0 %v1081
    %1186 = vmatpush1.bf16.msra.mxu0 %v1080
    %1187 = vmatprep.subr.bf16.mxu0 %v1083
    %1188 = vmatpush1.bf16.msra.mxu0 %v1082
    %1189 = vmatprep.subr.bf16.mxu0 %v1085
    %1190 = vmatpush1.bf16.msra.mxu0 %v1084
    %1191 = vmatprep.subr.bf16.mxu0 %v1087
    %1192 = vmatpush1.bf16.msra.mxu0 %v1086
    %1193 = vmatprep.subr.bf16.mxu0 %v1089
    %1194 = vmatpush1.bf16.msra.mxu0 %v1088
    %1195 = vmatprep.subr.bf16.mxu0 %v1091
    %1196 = vmatpush1.bf16.msra.mxu0 %v1090
    %1197 = vmatprep.subr.bf16.mxu0 %v1093
    %1198 = vmatpush1.bf16.msra.mxu0 %v1092
    %1199 = vmatprep.subr.bf16.mxu0 %v1095
    %1200 = vmatpush1.bf16.msra.mxu0 %v1094
    %1201 = vmatprep.subr.bf16.mxu0 %v1097
    %1202 = vmatpush1.bf16.msra.mxu0 %v1096
    %1203 = vmatprep.subr.bf16.mxu0 0
    %1204 = vmatpush1.bf16.msra.mxu0 0
    %1205 = vmatprep.subr.bf16.mxu0 0
    %1206 = vmatpush1.bf16.msra.mxu0 0
    %1207 = vmatprep.mubr.bf16.mxu0 %v1128
    %1208 = vmatmul.mubr.bf16.gmra.mrb[0].mxu0 %v938
    %v1209 = vpop.f32.mrb[0].mxu0
    %v1210 = vadd.f32 %v684, %v1209
    %v1211 = vpop.f32.mrb[0].mxu0
    %v1212 = vadd.f32 %v686, %v1211
    %v1213 = vpop.f32.mrb[0].mxu0
    %v1214 = vadd.f32 %v688, %v1213
    %v1215 = vpop.f32.mrb[0].mxu0
    %v1216 = vadd.f32 %v690, %v1215
    %1217 = vmatprep.mubr.bf16.mxu0 %v1131
    %1218 = vmatmul.mubr.bf16.gmra.mrb[0].mxu0 %v940
    %v1219 = vpop.f32.mrb[0].mxu0
    %v1220 = vadd.f32 %v694, %v1219
    %v1221 = vpop.f32.mrb[0].mxu0
    %v1222 = vadd.f32 %v696, %v1221
    %v1223 = vpop.f32.mrb[0].mxu0
    %v1224 = vadd.f32 %v698, %v1223
    %v1225 = vpop.f32.mrb[0].mxu0
    %v1226 = vadd.f32 %v700, %v1225
    %1227 = vmatprep.mubr.bf16.mxu0 %v1134
    %1228 = vmatmul.mubr.bf16.gmra.mrb[0].mxu0 %v942
    %v1229 = vpop.f32.mrb[0].mxu0
    %v1230 = vadd.f32 %v704, %v1229
    %v1231 = vpop.f32.mrb[0].mxu0
    %v1232 = vadd.f32 %v706, %v1231
    %v1233 = vpop.f32.mrb[0].mxu0
    %v1234 = vadd.f32 %v708, %v1233
    %v1235 = vpop.f32.mrb[0].mxu0
    %v1236 = vadd.f32 %v710, %v1235
    %1237 = vmatprep.mubr.bf16.mxu0 %v1137
    %1238 = vmatmul.mubr.bf16.gmra.mrb[0].mxu0 %v944
    %v1239 = vpop.f32.mrb[0].mxu0
    %v1240 = vadd.f32 %v714, %v1239
    %v1241 = vpop.f32.mrb[0].mxu0
    %v1242 = vadd.f32 %v716, %v1241
    %v1243 = vpop.f32.mrb[0].mxu0
    %v1244 = vadd.f32 %v718, %v1243
    %v1245 = vpop.f32.mrb[0].mxu0
    %v1246 = vadd.f32 %v720, %v1245
    %1247 = vmatprep.mubr.bf16.mxu0 %v1140
    %1248 = vmatmul.mubr.bf16.gmra.mrb[0].mxu0 %v946
    %v1249 = vpop.f32.mrb[0].mxu0
    %v1250 = vadd.f32 %v724, %v1249
    %v1251 = vpop.f32.mrb[0].mxu0
    %v1252 = vadd.f32 %v726, %v1251
    %v1253 = vpop.f32.mrb[0].mxu0
    %v1254 = vadd.f32 %v728, %v1253
    %v1255 = vpop.f32.mrb[0].mxu0
    %v1256 = vadd.f32 %v730, %v1255
    %1257 = vmatprep.mubr.bf16.mxu0 %v1143
    %1258 = vmatmul.mubr.bf16.gmra.mrb[0].mxu0 %v948
    %v1259 = vpop.f32.mrb[0].mxu0
    %v1260 = vadd.f32 %v734, %v1259
    %v1261 = vpop.f32.mrb[0].mxu0
    %v1262 = vadd.f32 %v736, %v1261
    %v1263 = vpop.f32.mrb[0].mxu0
    %v1264 = vadd.f32 %v738, %v1263
    %v1265 = vpop.f32.mrb[0].mxu0
    %v1266 = vadd.f32 %v740, %v1265
    %1267 = vmatprep.mubr.bf16.mxu0 %v1146
    %1268 = vmatmul.mubr.bf16.gmra.mrb[0].mxu0 %v950
    %v1269 = vpop.f32.mrb[0].mxu0
    %v1270 = vadd.f32 %v744, %v1269
    %v1271 = vpop.f32.mrb[0].mxu0
    %v1272 = vadd.f32 %v746, %v1271
    %v1273 = vpop.f32.mrb[0].mxu0
    %v1274 = vadd.f32 %v748, %v1273
    %v1275 = vpop.f32.mrb[0].mxu0
    %v1276 = vadd.f32 %v750, %v1275
    %1277 = vmatprep.mubr.bf16.mxu0 %v1149
    %1278 = vmatmul.mubr.bf16.gmra.mrb[0].mxu0 %v952
    %v1279 = vpop.f32.mrb[0].mxu0
    %v1280 = vadd.f32 %v754, %v1279
    %v1281 = vpop.f32.mrb[0].mxu0
    %v1282 = vadd.f32 %v756, %v1281
    %v1283 = vpop.f32.mrb[0].mxu0
    %v1284 = vadd.f32 %v758, %v1283
    %v1285 = vpop.f32.mrb[0].mxu0
    %v1286 = vadd.f32 %v760, %v1285
    %1287 = vmatprep.mubr.bf16.mxu0 %v1152
    %1288 = vmatmul.mubr.bf16.gmra.mrb[0].mxu0 %v954
    %v1289 = vpop.f32.mrb[0].mxu0
    %v1290 = vadd.f32 %v764, %v1289
    %v1291 = vpop.f32.mrb[0].mxu0
    %v1292 = vadd.f32 %v766, %v1291
    %v1293 = vpop.f32.mrb[0].mxu0
    %v1294 = vadd.f32 %v768, %v1293
    %v1295 = vpop.f32.mrb[0].mxu0
    %v1296 = vadd.f32 %v770, %v1295
    %1297 = vmatprep.mubr.bf16.mxu0 %v1155
    %1298 = vmatmul.mubr.bf16.gmra.mrb[0].mxu0 %v956
    %v1299 = vpop.f32.mrb[0].mxu0
    %v1300 = vadd.f32 %v774, %v1299
    %v1301 = vpop.f32.mrb[0].mxu0
    %v1302 = vadd.f32 %v776, %v1301
    %v1303 = vpop.f32.mrb[0].mxu0
    %v1304 = vadd.f32 %v778, %v1303
    %v1305 = vpop.f32.mrb[0].mxu0
    %v1306 = vadd.f32 %v780, %v1305
    %1307 = vmatprep.mubr.bf16.mxu0 %v1158
    %1308 = vmatmul.mubr.bf16.gmra.mrb[0].mxu0 %v958
    %v1309 = vpop.f32.mrb[0].mxu0
    %v1310 = vadd.f32 %v784, %v1309
    %v1311 = vpop.f32.mrb[0].mxu0
    %v1312 = vadd.f32 %v786, %v1311
    %v1313 = vpop.f32.mrb[0].mxu0
    %v1314 = vadd.f32 %v788, %v1313
    %v1315 = vpop.f32.mrb[0].mxu0
    %v1316 = vadd.f32 %v790, %v1315
    %1317 = vmatprep.mubr.bf16.mxu0 %v1161
    %1318 = vmatmul.mubr.bf16.gmra.mrb[0].mxu0 %v960
    %v1319 = vpop.f32.mrb[0].mxu0
    %v1320 = vadd.f32 %v794, %v1319
    %v1321 = vpop.f32.mrb[0].mxu0
    %v1322 = vadd.f32 %v796, %v1321
    %v1323 = vpop.f32.mrb[0].mxu0
    %v1324 = vadd.f32 %v798, %v1323
    %v1325 = vpop.f32.mrb[0].mxu0
    %v1326 = vadd.f32 %v800, %v1325
    %1327 = vmatprep.mubr.bf16.mxu0 %v1164
    %1328 = vmatmul.mubr.bf16.gmra.mrb[0].mxu0 %v962
    %v1329 = vpop.f32.mrb[0].mxu0
    %v1330 = vadd.f32 %v804, %v1329
    %v1331 = vpop.f32.mrb[0].mxu0
    %v1332 = vadd.f32 %v806, %v1331
    %v1333 = vpop.f32.mrb[0].mxu0
    %v1334 = vadd.f32 %v808, %v1333
    %v1335 = vpop.f32.mrb[0].mxu0
    %v1336 = vadd.f32 %v810, %v1335
    %1337 = vmatprep.mubr.bf16.mxu0 %v1167
    %1338 = vmatmul.mubr.bf16.gmra.mrb[0].mxu0 %v964
    %v1339 = vpop.f32.mrb[0].mxu0
    %v1340 = vadd.f32 %v814, %v1339
    %v1341 = vpop.f32.mrb[0].mxu0
    %v1342 = vadd.f32 %v816, %v1341
    %v1343 = vpop.f32.mrb[0].mxu0
    %v1344 = vadd.f32 %v818, %v1343
    %v1345 = vpop.f32.mrb[0].mxu0
    %v1346 = vadd.f32 %v820, %v1345
    %1347 = vmatprep.mubr.bf16.mxu0 %v1170
    %1348 = vmatmul.mubr.bf16.gmra.mrb[0].mxu0 %v966
    %v1349 = vpop.f32.mrb[0].mxu0
    %v1350 = vadd.f32 %v824, %v1349
    %v1351 = vpop.f32.mrb[0].mxu0
    %v1352 = vadd.f32 %v826, %v1351
    %v1353 = vpop.f32.mrb[0].mxu0
    %v1354 = vadd.f32 %v828, %v1353
    %v1355 = vpop.f32.mrb[0].mxu0
    %v1356 = vadd.f32 %v830, %v1355
    %1357 = vmatprep.mubr.bf16.mxu0 %v1173
    %1358 = vmatmul.mubr.bf16.gmra.mrb[0].mxu0 %v968
    %v1359 = vpop.f32.mrb[0].mxu0
    %v1360 = vadd.f32 %v834, %v1359
    %v1361 = vpop.f32.mrb[0].mxu0
    %v1362 = vadd.f32 %v836, %v1361
    %v1363 = vpop.f32.mrb[0].mxu0
    %v1364 = vadd.f32 %v838, %v1363
    %v1365 = vpop.f32.mrb[0].mxu0
    %v1366 = vadd.f32 %v840, %v1365
    %1367 = vdwg.mxu0
    %1368 = vset.pattern.permute.xlu0 0
    %1369 = vperm.xlu0 %1368, %v62
    %v1370 = vpop.permute.xlu0 %1369
    %1372 = vset.pattern.permute.xlu0 0
    %1373 = vperm.xlu0 %1372, %v63
    %v1374 = vpop.permute.xlu0 %1373
    %1376 = vset.pattern.permute.xlu0 0
    %1377 = vperm.xlu0 %1376, %v64
    %v1378 = vpop.permute.xlu0 %1377
    %1380 = vset.pattern.permute.xlu0 0
    %1381 = vperm.xlu0 %1380, %v65
    %v1382 = vpop.permute.xlu0 %1381
    %1385 = vset.pattern.permute.xlu0 0
    %1386 = vperm.xlu0 %1385, %v66
    %v1387 = vpop.permute.xlu0 %1386
    %1390 = vset.pattern.permute.xlu0 0
    %1391 = vperm.xlu0 %1390, %v67
    %v1392 = vpop.permute.xlu0 %1391
    %1395 = vset.pattern.permute.xlu0 0
    %1396 = vperm.xlu0 %1395, %v68
    %v1397 = vpop.permute.xlu0 %1396
    %1400 = vset.pattern.permute.xlu0 0
    %1401 = vperm.xlu0 %1400, %v69
    %v1402 = vpop.permute.xlu0 %1401
    %1405 = vset.pattern.permute.xlu0 0
    %1406 = vperm.xlu0 %1405, %v70
    %v1407 = vpop.permute.xlu0 %1406
    %1410 = vset.pattern.permute.xlu0 0
    %1411 = vperm.xlu0 %1410, %v71
    %v1412 = vpop.permute.xlu0 %1411
    %1415 = vset.pattern.permute.xlu0 0
    %1416 = vperm.xlu0 %1415, %v72
    %v1417 = vpop.permute.xlu0 %1416
    %1420 = vset.pattern.permute.xlu0 0
    %1421 = vperm.xlu0 %1420, %v73
    %v1422 = vpop.permute.xlu0 %1421
    %1425 = vset.pattern.permute.xlu0 0
    %1426 = vperm.xlu0 %1425, %v74
    %v1427 = vpop.permute.xlu0 %1426
    %1430 = vset.pattern.permute.xlu0 0
    %1431 = vperm.xlu0 %1430, %v75
    %v1432 = vpop.permute.xlu0 %1431
    %1435 = vset.pattern.permute.xlu0 0
    %1436 = vperm.xlu0 %1435, %v76
    %v1437 = vpop.permute.xlu0 %1436
    %1440 = vset.pattern.permute.xlu0 0
    %1441 = vperm.xlu0 %1440, %v77
    %v1442 = vpop.permute.xlu0 %1441
    %1445 = vset.pattern.permute.xlu0 0
    %1446 = vperm.xlu0 %1445, %v78
    %v1447 = vpop.permute.xlu0 %1446
    %1450 = vset.pattern.permute.xlu0 0
    %1451 = vperm.xlu0 %1450, %v79
    %v1452 = vpop.permute.xlu0 %1451
    %1455 = vset.pattern.permute.xlu0 0
    %1456 = vperm.xlu0 %1455, %v80
    %v1457 = vpop.permute.xlu0 %1456
    %1460 = vset.pattern.permute.xlu0 0
    %1461 = vperm.xlu0 %1460, %v81
    %v1462 = vpop.permute.xlu0 %1461
    %1465 = vset.pattern.permute.xlu0 0
    %1466 = vperm.xlu0 %1465, %v82
    %v1467 = vpop.permute.xlu0 %1466
    %1470 = vset.pattern.permute.xlu0 0
    %1471 = vperm.xlu0 %1470, %v83
    %v1472 = vpop.permute.xlu0 %1471
    %1475 = vset.pattern.permute.xlu0 0
    %1476 = vperm.xlu0 %1475, %v84
    %v1477 = vpop.permute.xlu0 %1476
    %1480 = vset.pattern.permute.xlu0 0
    %1481 = vperm.xlu0 %1480, %v85
    %v1482 = vpop.permute.xlu0 %1481
    %1485 = vset.pattern.permute.xlu0 0
    %1486 = vperm.xlu0 %1485, %v86
    %v1487 = vpop.permute.xlu0 %1486
    %1490 = vset.pattern.permute.xlu0 0
    %1491 = vperm.xlu0 %1490, %v87
    %v1492 = vpop.permute.xlu0 %1491
    %1495 = vset.pattern.permute.xlu0 0
    %1496 = vperm.xlu0 %1495, %v88
    %v1497 = vpop.permute.xlu0 %1496
    %1500 = vset.pattern.permute.xlu0 0
    %1501 = vperm.xlu0 %1500, %v89
    %v1502 = vpop.permute.xlu0 %1501
    %1505 = vset.pattern.permute.xlu0 0
    %1506 = vperm.xlu0 %1505, %v90
    %v1507 = vpop.permute.xlu0 %1506
    %1510 = vset.pattern.permute.xlu0 0
    %1511 = vperm.xlu0 %1510, %v91
    %v1512 = vpop.permute.xlu0 %1511
    %1515 = vset.pattern.permute.xlu0 0
    %1516 = vperm.xlu0 %1515, %v92
    %v1517 = vpop.permute.xlu0 %1516
    %1520 = vset.pattern.permute.xlu0 0
    %1521 = vperm.xlu0 %1520, %v93
    %v1522 = vpop.permute.xlu0 %1521
    %v1524 = vadd.f32 %v1210, %v1370
    %v1525 = vadd.f32 %v1212, %v1370
    %v1526 = vadd.f32 %v1214, %v1374
    %v1527 = vadd.f32 %v1216, %v1374
    %v1528 = vadd.f32 %v1220, %v1378
    %v1529 = vadd.f32 %v1222, %v1378
    %v1530 = vadd.f32 %v1224, %v1382
    %v1531 = vadd.f32 %v1226, %v1382
    %v1532 = vadd.f32 %v1230, %v1387
    %v1533 = vadd.f32 %v1232, %v1387
    %v1534 = vadd.f32 %v1234, %v1392
    %v1535 = vadd.f32 %v1236, %v1392
    %v1536 = vadd.f32 %v1240, %v1397
    %v1537 = vadd.f32 %v1242, %v1397
    %v1538 = vadd.f32 %v1244, %v1402
    %v1539 = vadd.f32 %v1246, %v1402
    %v1540 = vadd.f32 %v1250, %v1407
    %v1541 = vadd.f32 %v1252, %v1407
    %v1542 = vadd.f32 %v1254, %v1412
    %v1543 = vadd.f32 %v1256, %v1412
    %v1544 = vadd.f32 %v1260, %v1417
    %v1545 = vadd.f32 %v1262, %v1417
    %v1546 = vadd.f32 %v1264, %v1422
    %v1547 = vadd.f32 %v1266, %v1422
    %v1548 = vadd.f32 %v1270, %v1427
    %v1549 = vadd.f32 %v1272, %v1427
    %v1550 = vadd.f32 %v1274, %v1432
    %v1551 = vadd.f32 %v1276, %v1432
    %v1552 = vadd.f32 %v1280, %v1437
    %v1553 = vadd.f32 %v1282, %v1437
    %v1554 = vadd.f32 %v1284, %v1442
    %v1555 = vadd.f32 %v1286, %v1442
    %v1556 = vadd.f32 %v1290, %v1447
    %v1557 = vadd.f32 %v1292, %v1447
    %v1558 = vadd.f32 %v1294, %v1452
    %v1559 = vadd.f32 %v1296, %v1452
    %v1560 = vadd.f32 %v1300, %v1457
    %v1561 = vadd.f32 %v1302, %v1457
    %v1562 = vadd.f32 %v1304, %v1462
    %v1563 = vadd.f32 %v1306, %v1462
    %v1564 = vadd.f32 %v1310, %v1467
    %v1565 = vadd.f32 %v1312, %v1467
    %v1566 = vadd.f32 %v1314, %v1472
    %v1567 = vadd.f32 %v1316, %v1472
    %v1568 = vadd.f32 %v1320, %v1477
    %v1569 = vadd.f32 %v1322, %v1477
    %v1570 = vadd.f32 %v1324, %v1482
    %v1571 = vadd.f32 %v1326, %v1482
    %v1572 = vadd.f32 %v1330, %v1487
    %v1573 = vadd.f32 %v1332, %v1487
    %v1574 = vadd.f32 %v1334, %v1492
    %v1575 = vadd.f32 %v1336, %v1492
    %v1576 = vadd.f32 %v1340, %v1497
    %v1577 = vadd.f32 %v1342, %v1497
    %v1578 = vadd.f32 %v1344, %v1502
    %v1579 = vadd.f32 %v1346, %v1502
    %v1580 = vadd.f32 %v1350, %v1507
    %v1581 = vadd.f32 %v1352, %v1507
    %v1582 = vadd.f32 %v1354, %v1512
    %v1583 = vadd.f32 %v1356, %v1512
    %v1584 = vadd.f32 %v1360, %v1517
    %v1585 = vadd.f32 %v1362, %v1517
    %v1586 = vadd.f32 %v1364, %v1522
    %v1587 = vadd.f32 %v1366, %v1522
    %v1588 = vmax.f32 %v1524, 0.0
    %v1589 = vmax.f32 %v1525, 0.0
    %v1590 = vmax.f32 %v1526, 0.0
    %v1591 = vmax.f32 %v1527, 0.0
    %v1592 = vmax.f32 %v1528, 0.0
    %v1593 = vmax.f32 %v1529, 0.0
    %v1594 = vmax.f32 %v1530, 0.0
    %v1595 = vmax.f32 %v1531, 0.0
    %v1596 = vmax.f32 %v1532, 0.0
    %v1597 = vmax.f32 %v1533, 0.0
    %v1598 = vmax.f32 %v1534, 0.0
    %v1599 = vmax.f32 %v1535, 0.0
    %v1600 = vmax.f32 %v1536, 0.0
    %v1601 = vmax.f32 %v1537, 0.0
    %v1602 = vmax.f32 %v1538, 0.0
    %v1603 = vmax.f32 %v1539, 0.0
    %v1604 = vmax.f32 %v1540, 0.0
    %v1605 = vmax.f32 %v1541, 0.0
    %v1606 = vmax.f32 %v1542, 0.0
    %v1607 = vmax.f32 %v1543, 0.0
    %v1608 = vmax.f32 %v1544, 0.0
    %v1609 = vmax.f32 %v1545, 0.0
    %v1610 = vmax.f32 %v1546, 0.0
    %v1611 = vmax.f32 %v1547, 0.0
    %v1612 = vmax.f32 %v1548, 0.0
    %v1613 = vmax.f32 %v1549, 0.0
    %v1614 = vmax.f32 %v1550, 0.0
    %v1615 = vmax.f32 %v1551, 0.0
    %v1616 = vmax.f32 %v1552, 0.0
    %v1617 = vmax.f32 %v1553, 0.0
    %v1618 = vmax.f32 %v1554, 0.0
    %v1619 = vmax.f32 %v1555, 0.0
    %v1620 = vmax.f32 %v1556, 0.0
    %v1621 = vmax.f32 %v1557, 0.0
    %v1622 = vmax.f32 %v1558, 0.0
    %v1623 = vmax.f32 %v1559, 0.0
    %v1624 = vmax.f32 %v1560, 0.0
    %v1625 = vmax.f32 %v1561, 0.0
    %v1626 = vmax.f32 %v1562, 0.0
    %v1627 = vmax.f32 %v1563, 0.0
    %v1628 = vmax.f32 %v1564, 0.0
    %v1629 = vmax.f32 %v1565, 0.0
    %v1630 = vmax.f32 %v1566, 0.0
    %v1631 = vmax.f32 %v1567, 0.0
    %v1632 = vmax.f32 %v1568, 0.0
    %v1633 = vmax.f32 %v1569, 0.0
    %v1634 = vmax.f32 %v1570, 0.0
    %v1635 = vmax.f32 %v1571, 0.0
    %v1636 = vmax.f32 %v1572, 0.0
    %v1637 = vmax.f32 %v1573, 0.0
    %v1638 = vmax.f32 %v1574, 0.0
    %v1639 = vmax.f32 %v1575, 0.0
    %v1640 = vmax.f32 %v1576, 0.0
    %v1641 = vmax.f32 %v1577, 0.0
    %v1642 = vmax.f32 %v1578, 0.0
    %v1643 = vmax.f32 %v1579, 0.0
    %v1644 = vmax.f32 %v1580, 0.0
    %v1645 = vmax.f32 %v1581, 0.0
    %v1646 = vmax.f32 %v1582, 0.0
    %v1647 = vmax.f32 %v1583, 0.0
    %v1648 = vmax.f32 %v1584, 0.0
    %v1649 = vmax.f32 %v1585, 0.0
    %v1650 = vmax.f32 %v1586, 0.0
    %v1651 = vmax.f32 %v1587, 0.0
    %v1652 = vpack.c.bf16 %v1590, %v1588
    %v1653 = vpack.c.bf16 %v1591, %v1589
    %v1654 = vpack.c.bf16 %v1594, %v1592
    %v1655 = vpack.c.bf16 %v1595, %v1593
    %v1656 = vpack.c.bf16 %v1598, %v1596
    %v1657 = vpack.c.bf16 %v1599, %v1597
    %v1658 = vpack.c.bf16 %v1602, %v1600
    %v1659 = vpack.c.bf16 %v1603, %v1601
    %v1660 = vpack.c.bf16 %v1606, %v1604
    %v1661 = vpack.c.bf16 %v1607, %v1605
    %v1662 = vpack.c.bf16 %v1610, %v1608
    %v1663 = vpack.c.bf16 %v1611, %v1609
    %v1664 = vpack.c.bf16 %v1614, %v1612
    %v1665 = vpack.c.bf16 %v1615, %v1613
    %v1666 = vpack.c.bf16 %v1618, %v1616
    %v1667 = vpack.c.bf16 %v1619, %v1617
    %v1668 = vpack.c.bf16 %v1622, %v1620
    %v1669 = vpack.c.bf16 %v1623, %v1621
    %v1670 = vpack.c.bf16 %v1626, %v1624
    %v1671 = vpack.c.bf16 %v1627, %v1625
    %v1672 = vpack.c.bf16 %v1630, %v1628
    %v1673 = vpack.c.bf16 %v1631, %v1629
    %v1674 = vpack.c.bf16 %v1634, %v1632
    %v1675 = vpack.c.bf16 %v1635, %v1633
    %v1676 = vpack.c.bf16 %v1638, %v1636
    %v1677 = vpack.c.bf16 %v1639, %v1637
    %v1678 = vpack.c.bf16 %v1642, %v1640
    %v1679 = vpack.c.bf16 %v1643, %v1641
    %v1680 = vpack.c.bf16 %v1646, %v1644
    %v1681 = vpack.c.bf16 %v1647, %v1645
    %v1682 = vpack.c.bf16 %v1650, %v1648
    %v1683 = vpack.c.bf16 %v1651, %v1649
    %v1684 = vld [vmem:[%s5] sm:$0xff]
    %v1685 = vld [vmem:[%s5 + $0x8] sm:$0xff]
    %v1686 = vld [vmem:[%s5 + $0x10] sm:$0xff]
    %v1687 = vld [vmem:[%s5 + $0x18] sm:$0xff]
    %v1688 = vld [vmem:[%s5 + $0x20] sm:$0xff]
    %v1689 = vld [vmem:[%s5 + $0x28] sm:$0xff]
    %v1690 = vld [vmem:[%s5 + $0x30] sm:$0xff]
    %v1691 = vld [vmem:[%s5 + $0x38] sm:$0xff]
    %v1692 = vld [vmem:[%s5 + $0x40] sm:$0xff]
    %v1693 = vld [vmem:[%s5 + $0x48] sm:$0xff]
    %v1694 = vld [vmem:[%s5 + $0x50] sm:$0xff]
    %v1695 = vld [vmem:[%s5 + $0x58] sm:$0xff]
    %v1696 = vld [vmem:[%s5 + $0x60] sm:$0xff]
    %v1697 = vld [vmem:[%s5 + $0x68] sm:$0xff]
    %v1698 = vld [vmem:[%s5 + $0x70] sm:$0xff]
    %v1699 = vld [vmem:[%s5 + $0x78] sm:$0xff]
    %v1700 = vld [vmem:[%s5 + $0x80] sm:$0xff]
    %v1701 = vld [vmem:[%s5 + $0x88] sm:$0xff]
    %v1702 = vld [vmem:[%s5 + $0x90] sm:$0xff]
    %v1703 = vld [vmem:[%s5 + $0x98] sm:$0xff]
    %v1704 = vld [vmem:[%s5 + $0xa0] sm:$0xff]
    %v1705 = vld [vmem:[%s5 + $0xa8] sm:$0xff]
    %v1706 = vld [vmem:[%s5 + $0xb0] sm:$0xff]
    %v1707 = vld [vmem:[%s5 + $0xb8] sm:$0xff]
    %v1708 = vld [vmem:[%s5 + $0xc0] sm:$0xff]
    %v1709 = vld [vmem:[%s5 + $0xc8] sm:$0xff]
    %v1710 = vld [vmem:[%s5 + $0xd0] sm:$0xff]
    %v1711 = vld [vmem:[%s5 + $0xd8] sm:$0xff]
    %v1712 = vld [vmem:[%s5 + $0xe0] sm:$0xff]
    %v1713 = vld [vmem:[%s5 + $0xe8] sm:$0xff]
    %v1714 = vld [vmem:[%s5 + $0xf0] sm:$0xff]
    %v1715 = vld [vmem:[%s5 + $0xf8] sm:$0xff]
    %v1716 = vld [vmem:[%s5 + $0x100] sm:$0xff]
    %v1717 = vld [vmem:[%s5 + $0x108] sm:$0xff]
    %v1718 = vld [vmem:[%s5 + $0x110] sm:$0xff]
    %v1719 = vld [vmem:[%s5 + $0x118] sm:$0xff]
    %v1720 = vld [vmem:[%s5 + $0x120] sm:$0xff]
    %v1721 = vld [vmem:[%s5 + $0x128] sm:$0xff]
    %v1722 = vld [vmem:[%s5 + $0x130] sm:$0xff]
    %v1723 = vld [vmem:[%s5 + $0x138] sm:$0xff]
    %v1724 = vld [vmem:[%s5 + $0x140] sm:$0xff]
    %v1725 = vld [vmem:[%s5 + $0x148] sm:$0xff]
    %v1726 = vld [vmem:[%s5 + $0x150] sm:$0xff]
    %v1727 = vld [vmem:[%s5 + $0x158] sm:$0xff]
    %v1728 = vld [vmem:[%s5 + $0x160] sm:$0xff]
    %v1729 = vld [vmem:[%s5 + $0x168] sm:$0xff]
    %v1730 = vld [vmem:[%s5 + $0x170] sm:$0xff]
    %v1731 = vld [vmem:[%s5 + $0x178] sm:$0xff]
    %v1732 = vld [vmem:[%s5 + $0x180] sm:$0xff]
    %v1733 = vld [vmem:[%s5 + $0x188] sm:$0xff]
    %v1734 = vld [vmem:[%s5 + $0x190] sm:$0xff]
    %v1735 = vld [vmem:[%s5 + $0x198] sm:$0xff]
    %v1736 = vld [vmem:[%s5 + $0x1a0] sm:$0xff]
    %v1737 = vld [vmem:[%s5 + $0x1a8] sm:$0xff]
    %v1738 = vld [vmem:[%s5 + $0x1b0] sm:$0xff]
    %v1739 = vld [vmem:[%s5 + $0x1b8] sm:$0xff]
    %v1740 = vld [vmem:[%s5 + $0x1c0] sm:$0xff]
    %v1741 = vld [vmem:[%s5 + $0x1c8] sm:$0xff]
    %v1742 = vld [vmem:[%s5 + $0x1d0] sm:$0xff]
    %v1743 = vld [vmem:[%s5 + $0x1d8] sm:$0xff]
    %v1744 = vld [vmem:[%s5 + $0x1e0] sm:$0xff]
    %v1745 = vld [vmem:[%s5 + $0x1e8] sm:$0xff]
    %v1746 = vld [vmem:[%s5 + $0x1f0] sm:$0xff]
    %v1747 = vld [vmem:[%s5 + $0x1f8] sm:$0xff]
    %1748 = vset.pattern.permute.xlu0 1
    %1749 = vperm.xlu0 %1748, %v62
    %v1750 = vpop.permute.xlu0 %1749
    %1752 = vset.pattern.permute.xlu0 1
    %1753 = vperm.xlu0 %1752, %v63
    %v1754 = vpop.permute.xlu0 %1753
    %1756 = vset.pattern.permute.xlu0 1
    %1757 = vperm.xlu0 %1756, %v64
    %v1758 = vpop.permute.xlu0 %1757
    %1760 = vset.pattern.permute.xlu0 1
    %1761 = vperm.xlu0 %1760, %v65
    %v1762 = vpop.permute.xlu0 %1761
    %1764 = vset.pattern.permute.xlu0 1
    %1765 = vperm.xlu0 %1764, %v66
    %v1766 = vpop.permute.xlu0 %1765
    %1768 = vset.pattern.permute.xlu0 1
    %1769 = vperm.xlu0 %1768, %v67
    %v1770 = vpop.permute.xlu0 %1769
    %1772 = vset.pattern.permute.xlu0 1
    %1773 = vperm.xlu0 %1772, %v68
    %v1774 = vpop.permute.xlu0 %1773
    %1776 = vset.pattern.permute.xlu0 1
    %1777 = vperm.xlu0 %1776, %v69
    %v1778 = vpop.permute.xlu0 %1777
    %1780 = vset.pattern.permute.xlu0 1
    %1781 = vperm.xlu0 %1780, %v70
    %v1782 = vpop.permute.xlu0 %1781
    %1784 = vset.pattern.permute.xlu0 1
    %1785 = vperm.xlu0 %1784, %v71
    %v1786 = vpop.permute.xlu0 %1785
    %1788 = vset.pattern.permute.xlu0 1
    %1789 = vperm.xlu0 %1788, %v72
    %v1790 = vpop.permute.xlu0 %1789
    %1792 = vset.pattern.permute.xlu0 1
    %1793 = vperm.xlu0 %1792, %v73
    %v1794 = vpop.permute.xlu0 %1793
    %1796 = vset.pattern.permute.xlu0 1
    %1797 = vperm.xlu0 %1796, %v74
    %v1798 = vpop.permute.xlu0 %1797
    %1800 = vset.pattern.permute.xlu0 1
    %1801 = vperm.xlu0 %1800, %v75
    %v1802 = vpop.permute.xlu0 %1801
    %1804 = vset.pattern.permute.xlu0 1
    %1805 = vperm.xlu0 %1804, %v76
    %v1806 = vpop.permute.xlu0 %1805
    %1808 = vset.pattern.permute.xlu0 1
    %1809 = vperm.xlu0 %1808, %v77
    %v1810 = vpop.permute.xlu0 %1809
    %1812 = vset.pattern.permute.xlu0 1
    %1813 = vperm.xlu0 %1812, %v78
    %v1814 = vpop.permute.xlu0 %1813
    %1816 = vset.pattern.permute.xlu0 1
    %1817 = vperm.xlu0 %1816, %v79
    %v1818 = vpop.permute.xlu0 %1817
    %1820 = vset.pattern.permute.xlu0 1
    %1821 = vperm.xlu0 %1820, %v80
    %v1822 = vpop.permute.xlu0 %1821
    %1824 = vset.pattern.permute.xlu0 1
    %1825 = vperm.xlu0 %1824, %v81
    %v1826 = vpop.permute.xlu0 %1825
    %1828 = vset.pattern.permute.xlu0 1
    %1829 = vperm.xlu0 %1828, %v82
    %v1830 = vpop.permute.xlu0 %1829
    %1832 = vset.pattern.permute.xlu0 1
    %1833 = vperm.xlu0 %1832, %v83
    %v1834 = vpop.permute.xlu0 %1833
    %1836 = vset.pattern.permute.xlu0 1
    %1837 = vperm.xlu0 %1836, %v84
    %v1838 = vpop.permute.xlu0 %1837
    %1840 = vset.pattern.permute.xlu0 1
    %1841 = vperm.xlu0 %1840, %v85
    %v1842 = vpop.permute.xlu0 %1841
    %1844 = vset.pattern.permute.xlu0 1
    %1845 = vperm.xlu0 %1844, %v86
    %v1846 = vpop.permute.xlu0 %1845
    %1848 = vset.pattern.permute.xlu0 1
    %1849 = vperm.xlu0 %1848, %v87
    %v1850 = vpop.permute.xlu0 %1849
    %1852 = vset.pattern.permute.xlu0 1
    %1853 = vperm.xlu0 %1852, %v88
    %v1854 = vpop.permute.xlu0 %1853
    %1856 = vset.pattern.permute.xlu0 1
    %1857 = vperm.xlu0 %1856, %v89
    %v1858 = vpop.permute.xlu0 %1857
    %1860 = vset.pattern.permute.xlu0 1
    %1861 = vperm.xlu0 %1860, %v90
    %v1862 = vpop.permute.xlu0 %1861
    %1864 = vset.pattern.permute.xlu0 1
    %1865 = vperm.xlu0 %1864, %v91
    %v1866 = vpop.permute.xlu0 %1865
    %1868 = vset.pattern.permute.xlu0 1
    %1869 = vperm.xlu0 %1868, %v92
    %v1870 = vpop.permute.xlu0 %1869
    %1872 = vset.pattern.permute.xlu0 1
    %1873 = vperm.xlu0 %1872, %v93
    %v1874 = vpop.permute.xlu0 %1873
    %1877 = vset.pattern.permute.xlu0 1
    %1878 = vperm.xlu0 %1877, %v94
    %v1879 = vpop.permute.xlu0 %1878
    %1882 = vset.pattern.permute.xlu0 1
    %1883 = vperm.xlu0 %1882, %v95
    %v1884 = vpop.permute.xlu0 %1883
    %1887 = vset.pattern.permute.xlu0 1
    %1888 = vperm.xlu0 %1887, %v96
    %v1889 = vpop.permute.xlu0 %1888
    %1892 = vset.pattern.permute.xlu0 1
    %1893 = vperm.xlu0 %1892, %v97
    %v1894 = vpop.permute.xlu0 %1893
    %1897 = vset.pattern.permute.xlu0 1
    %1898 = vperm.xlu0 %1897, %v98
    %v1899 = vpop.permute.xlu0 %1898
    %1902 = vset.pattern.permute.xlu0 1
    %1903 = vperm.xlu0 %1902, %v99
    %v1904 = vpop.permute.xlu0 %1903
    %1907 = vset.pattern.permute.xlu0 1
    %1908 = vperm.xlu0 %1907, %v100
    %v1909 = vpop.permute.xlu0 %1908
    %1912 = vset.pattern.permute.xlu0 1
    %1913 = vperm.xlu0 %1912, %v101
    %v1914 = vpop.permute.xlu0 %1913
    %1917 = vset.pattern.permute.xlu0 1
    %1918 = vperm.xlu0 %1917, %v102
    %v1919 = vpop.permute.xlu0 %1918
    %1922 = vset.pattern.permute.xlu0 1
    %1923 = vperm.xlu0 %1922, %v103
    %v1924 = vpop.permute.xlu0 %1923
    %1927 = vset.pattern.permute.xlu0 1
    %1928 = vperm.xlu0 %1927, %v104
    %v1929 = vpop.permute.xlu0 %1928
    %1932 = vset.pattern.permute.xlu0 1
    %1933 = vperm.xlu0 %1932, %v105
    %v1934 = vpop.permute.xlu0 %1933
    %1937 = vset.pattern.permute.xlu0 1
    %1938 = vperm.xlu0 %1937, %v106
    %v1939 = vpop.permute.xlu0 %1938
    %1942 = vset.pattern.permute.xlu0 1
    %1943 = vperm.xlu0 %1942, %v107
    %v1944 = vpop.permute.xlu0 %1943
    %1947 = vset.pattern.permute.xlu0 1
    %1948 = vperm.xlu0 %1947, %v108
    %v1949 = vpop.permute.xlu0 %1948
    %1952 = vset.pattern.permute.xlu0 1
    %1953 = vperm.xlu0 %1952, %v109
    %v1954 = vpop.permute.xlu0 %1953
    %1957 = vset.pattern.permute.xlu0 1
    %1958 = vperm.xlu0 %1957, %v110
    %v1959 = vpop.permute.xlu0 %1958
    %1962 = vset.pattern.permute.xlu0 1
    %1963 = vperm.xlu0 %1962, %v111
    %v1964 = vpop.permute.xlu0 %1963
    %1967 = vset.pattern.permute.xlu0 1
    %1968 = vperm.xlu0 %1967, %v112
    %v1969 = vpop.permute.xlu0 %1968
    %1972 = vset.pattern.permute.xlu0 1
    %1973 = vperm.xlu0 %1972, %v113
    %v1974 = vpop.permute.xlu0 %1973
    %1977 = vset.pattern.permute.xlu0 1
    %1978 = vperm.xlu0 %1977, %v114
    %v1979 = vpop.permute.xlu0 %1978
    %1982 = vset.pattern.permute.xlu0 1
    %1983 = vperm.xlu0 %1982, %v115
    %v1984 = vpop.permute.xlu0 %1983
    %1987 = vset.pattern.permute.xlu0 1
    %1988 = vperm.xlu0 %1987, %v116
    %v1989 = vpop.permute.xlu0 %1988
    %1992 = vset.pattern.permute.xlu0 1
    %1993 = vperm.xlu0 %1992, %v117
    %v1994 = vpop.permute.xlu0 %1993
    %1997 = vset.pattern.permute.xlu0 1
    %1998 = vperm.xlu0 %1997, %v118
    %v1999 = vpop.permute.xlu0 %1998
    %2002 = vset.pattern.permute.xlu0 1
    %2003 = vperm.xlu0 %2002, %v119
    %v2004 = vpop.permute.xlu0 %2003
    %2007 = vset.pattern.permute.xlu0 1
    %2008 = vperm.xlu0 %2007, %v120
    %v2009 = vpop.permute.xlu0 %2008
    %2012 = vset.pattern.permute.xlu0 1
    %2013 = vperm.xlu0 %2012, %v121
    %v2014 = vpop.permute.xlu0 %2013
    %2017 = vset.pattern.permute.xlu0 1
    %2018 = vperm.xlu0 %2017, %v122
    %v2019 = vpop.permute.xlu0 %2018
    %2022 = vset.pattern.permute.xlu0 1
    %2023 = vperm.xlu0 %2022, %v123
    %v2024 = vpop.permute.xlu0 %2023
    %2027 = vset.pattern.permute.xlu0 1
    %2028 = vperm.xlu0 %2027, %v124
    %v2029 = vpop.permute.xlu0 %2028
    %2032 = vset.pattern.permute.xlu0 1
    %2033 = vperm.xlu0 %2032, %v125
    %v2034 = vpop.permute.xlu0 %2033
    %v2100 = vunpack.c.l.b16 %v1684
    %v2101 = vunpack.c.h.b16 %v1684
    %v2102 = vunpack.c.l.b16 %v1685
    %v2103 = vunpack.c.h.b16 %v1685
    %v2104 = vunpack.c.l.b16 %v1686
    %v2105 = vunpack.c.h.b16 %v1686
    %v2106 = vunpack.c.l.b16 %v1687
    %v2107 = vunpack.c.h.b16 %v1687
    %v2108 = vunpack.c.l.b16 %v1688
    %v2109 = vunpack.c.h.b16 %v1688
    %v2110 = vunpack.c.l.b16 %v1689
    %v2111 = vunpack.c.h.b16 %v1689
    %v2112 = vunpack.c.l.b16 %v1690
    %v2113 = vunpack.c.h.b16 %v1690
    %v2114 = vunpack.c.l.b16 %v1691
    %v2115 = vunpack.c.h.b16 %v1691
    %v2116 = vunpack.c.l.b16 %v1692
    %v2117 = vunpack.c.h.b16 %v1692
    %v2118 = vunpack.c.l.b16 %v1693
    %v2119 = vunpack.c.h.b16 %v1693
    %v2120 = vunpack.c.l.b16 %v1694
    %v2121 = vunpack.c.h.b16 %v1694
    %v2122 = vunpack.c.l.b16 %v1695
    %v2123 = vunpack.c.h.b16 %v1695
    %v2124 = vunpack.c.l.b16 %v1696
    %v2125 = vunpack.c.h.b16 %v1696
    %v2126 = vunpack.c.l.b16 %v1697
    %v2127 = vunpack.c.h.b16 %v1697
    %v2128 = vunpack.c.l.b16 %v1698
    %v2129 = vunpack.c.h.b16 %v1698
    %v2130 = vunpack.c.l.b16 %v1699
    %v2131 = vunpack.c.h.b16 %v1699
    %v2132 = vunpack.c.l.b16 %v1700
    %v2133 = vunpack.c.h.b16 %v1700
    %v2134 = vunpack.c.l.b16 %v1701
    %v2135 = vunpack.c.h.b16 %v1701
    %v2136 = vunpack.c.l.b16 %v1702
    %v2137 = vunpack.c.h.b16 %v1702
    %v2138 = vunpack.c.l.b16 %v1703
    %v2139 = vunpack.c.h.b16 %v1703
    %v2140 = vunpack.c.l.b16 %v1704
    %v2141 = vunpack.c.h.b16 %v1704
    %v2142 = vunpack.c.l.b16 %v1705
    %v2143 = vunpack.c.h.b16 %v1705
    %v2144 = vunpack.c.l.b16 %v1706
    %v2145 = vunpack.c.h.b16 %v1706
    %v2146 = vunpack.c.l.b16 %v1707
    %v2147 = vunpack.c.h.b16 %v1707
    %v2148 = vunpack.c.l.b16 %v1708
    %v2149 = vunpack.c.h.b16 %v1708
    %v2150 = vunpack.c.l.b16 %v1709
    %v2151 = vunpack.c.h.b16 %v1709
    %v2152 = vunpack.c.l.b16 %v1710
    %v2153 = vunpack.c.h.b16 %v1710
    %v2154 = vunpack.c.l.b16 %v1711
    %v2155 = vunpack.c.h.b16 %v1711
    %v2156 = vunpack.c.l.b16 %v1712
    %v2157 = vunpack.c.h.b16 %v1712
    %v2158 = vunpack.c.l.b16 %v1713
    %v2159 = vunpack.c.h.b16 %v1713
    %v2160 = vunpack.c.l.b16 %v1714
    %v2161 = vunpack.c.h.b16 %v1714
    %v2162 = vunpack.c.l.b16 %v1715
    %v2163 = vunpack.c.h.b16 %v1715
    %v2164 = vunpack.c.l.b16 %v1716
    %v2165 = vunpack.c.h.b16 %v1716
    %v2166 = vunpack.c.l.b16 %v1717
    %v2167 = vunpack.c.h.b16 %v1717
    %v2168 = vunpack.c.l.b16 %v1718
    %v2169 = vunpack.c.h.b16 %v1718
    %v2170 = vunpack.c.l.b16 %v1719
    %v2171 = vunpack.c.h.b16 %v1719
    %v2172 = vunpack.c.l.b16 %v1720
    %v2173 = vunpack.c.h.b16 %v1720
    %v2174 = vunpack.c.l.b16 %v1721
    %v2175 = vunpack.c.h.b16 %v1721
    %v2176 = vunpack.c.l.b16 %v1722
    %v2177 = vunpack.c.h.b16 %v1722
    %v2178 = vunpack.c.l.b16 %v1723
    %v2179 = vunpack.c.h.b16 %v1723
    %v2180 = vunpack.c.l.b16 %v1724
    %v2181 = vunpack.c.h.b16 %v1724
    %v2182 = vunpack.c.l.b16 %v1725
    %v2183 = vunpack.c.h.b16 %v1725
    %v2184 = vunpack.c.l.b16 %v1726
    %v2185 = vunpack.c.h.b16 %v1726
    %v2186 = vunpack.c.l.b16 %v1727
    %v2187 = vunpack.c.h.b16 %v1727
    %v2188 = vunpack.c.l.b16 %v1728
    %v2189 = vunpack.c.h.b16 %v1728
    %v2190 = vunpack.c.l.b16 %v1729
    %v2191 = vunpack.c.h.b16 %v1729
    %v2192 = vunpack.c.l.b16 %v1730
    %v2193 = vunpack.c.h.b16 %v1730
    %v2194 = vunpack.c.l.b16 %v1731
    %v2195 = vunpack.c.h.b16 %v1731
    %v2196 = vunpack.c.l.b16 %v1732
    %v2197 = vunpack.c.h.b16 %v1732
    %v2198 = vunpack.c.l.b16 %v1733
    %v2199 = vunpack.c.h.b16 %v1733
    %v2200 = vunpack.c.l.b16 %v1734
    %v2201 = vunpack.c.h.b16 %v1734
    %v2202 = vunpack.c.l.b16 %v1735
    %v2203 = vunpack.c.h.b16 %v1735
    %v2204 = vunpack.c.l.b16 %v1736
    %v2205 = vunpack.c.h.b16 %v1736
    %v2206 = vunpack.c.l.b16 %v1737
    %v2207 = vunpack.c.h.b16 %v1737
    %v2208 = vunpack.c.l.b16 %v1738
    %v2209 = vunpack.c.h.b16 %v1738
    %v2210 = vunpack.c.l.b16 %v1739
    %v2211 = vunpack.c.h.b16 %v1739
    %v2212 = vunpack.c.l.b16 %v1740
    %v2213 = vunpack.c.h.b16 %v1740
    %v2214 = vunpack.c.l.b16 %v1741
    %v2215 = vunpack.c.h.b16 %v1741
    %v2216 = vunpack.c.l.b16 %v1742
    %v2217 = vunpack.c.h.b16 %v1742
    %v2218 = vunpack.c.l.b16 %v1743
    %v2219 = vunpack.c.h.b16 %v1743
    %v2220 = vunpack.c.l.b16 %v1744
    %v2221 = vunpack.c.h.b16 %v1744
    %v2222 = vunpack.c.l.b16 %v1745
    %v2223 = vunpack.c.h.b16 %v1745
    %v2224 = vunpack.c.l.b16 %v1746
    %v2225 = vunpack.c.h.b16 %v1746
    %v2226 = vunpack.c.l.b16 %v1747
    %v2227 = vunpack.c.h.b16 %v1747
    %v2228 = vpack.c.b16 %v2102, %v2100
    %v2229 = vpack.c.b16 %v2103, %v2101
    %v2230 = vpack.c.b16 %v2106, %v2104
    %v2231 = vpack.c.b16 %v2107, %v2105
    %v2232 = vpack.c.b16 %v2110, %v2108
    %v2233 = vpack.c.b16 %v2111, %v2109
    %v2234 = vpack.c.b16 %v2114, %v2112
    %v2235 = vpack.c.b16 %v2115, %v2113
    %v2236 = vpack.c.b16 %v2118, %v2116
    %v2237 = vpack.c.b16 %v2119, %v2117
    %v2238 = vpack.c.b16 %v2122, %v2120
    %v2239 = vpack.c.b16 %v2123, %v2121
    %v2240 = vpack.c.b16 %v2126, %v2124
    %v2241 = vpack.c.b16 %v2127, %v2125
    %v2242 = vpack.c.b16 %v2130, %v2128
    %v2243 = vpack.c.b16 %v2131, %v2129
    %v2244 = vpack.c.b16 %v2134, %v2132
    %v2245 = vpack.c.b16 %v2135, %v2133
    %v2246 = vpack.c.b16 %v2138, %v2136
    %v2247 = vpack.c.b16 %v2139, %v2137
    %v2248 = vpack.c.b16 %v2142, %v2140
    %v2249 = vpack.c.b16 %v2143, %v2141
    %v2250 = vpack.c.b16 %v2146, %v2144
    %v2251 = vpack.c.b16 %v2147, %v2145
    %v2252 = vpack.c.b16 %v2150, %v2148
    %v2253 = vpack.c.b16 %v2151, %v2149
    %v2254 = vpack.c.b16 %v2154, %v2152
    %v2255 = vpack.c.b16 %v2155, %v2153
    %v2256 = vpack.c.b16 %v2158, %v2156
    %v2257 = vpack.c.b16 %v2159, %v2157
    %v2258 = vpack.c.b16 %v2162, %v2160
    %v2259 = vpack.c.b16 %v2163, %v2161
    %v2260 = vpack.c.b16 %v2166, %v2164
    %v2261 = vpack.c.b16 %v2167, %v2165
    %v2262 = vpack.c.b16 %v2170, %v2168
    %v2263 = vpack.c.b16 %v2171, %v2169
    %v2264 = vpack.c.b16 %v2174, %v2172
    %v2265 = vpack.c.b16 %v2175, %v2173
    %v2266 = vpack.c.b16 %v2178, %v2176
    %v2267 = vpack.c.b16 %v2179, %v2177
    %v2268 = vpack.c.b16 %v2182, %v2180
    %v2269 = vpack.c.b16 %v2183, %v2181
    %v2270 = vpack.c.b16 %v2186, %v2184
    %v2271 = vpack.c.b16 %v2187, %v2185
    %v2272 = vpack.c.b16 %v2190, %v2188
    %v2273 = vpack.c.b16 %v2191, %v2189
    %v2274 = vpack.c.b16 %v2194, %v2192
    %v2275 = vpack.c.b16 %v2195, %v2193
    %v2276 = vpack.c.b16 %v2198, %v2196
    %v2277 = vpack.c.b16 %v2199, %v2197
    %v2278 = vpack.c.b16 %v2202, %v2200
    %v2279 = vpack.c.b16 %v2203, %v2201
    %v2280 = vpack.c.b16 %v2206, %v2204
    %v2281 = vpack.c.b16 %v2207, %v2205
    %v2282 = vpack.c.b16 %v2210, %v2208
    %v2283 = vpack.c.b16 %v2211, %v2209
    %v2284 = vpack.c.b16 %v2214, %v2212
    %v2285 = vpack.c.b16 %v2215, %v2213
    %v2286 = vpack.c.b16 %v2218, %v2216
    %v2287 = vpack.c.b16 %v2219, %v2217
    %v2288 = vpack.c.b16 %v2222, %v2220
    %v2289 = vpack.c.b16 %v2223, %v2221
    %v2290 = vpack.c.b16 %v2226, %v2224
    %v2291 = vpack.c.b16 %v2227, %v2225
    %2356 = vmatprep.subr.bf16.mxu0 %v1653
    %2357 = vmatpush1.bf16.msra.mxu0 %v1652
    %2358 = vmatprep.subr.bf16.mxu0 %v1655
    %2359 = vmatpush1.bf16.msra.mxu0 %v1654
    %2360 = vmatprep.subr.bf16.mxu0 %v1657
    %2361 = vmatpush1.bf16.msra.mxu0 %v1656
    %2362 = vmatprep.subr.bf16.mxu0 %v1659
    %2363 = vmatpush1.bf16.msra.mxu0 %v1658
    %2364 = vmatprep.subr.bf16.mxu0 %v1661
    %2365 = vmatpush1.bf16.msra.mxu0 %v1660
    %2366 = vmatprep.subr.bf16.mxu0 %v1663
    %2367 = vmatpush1.bf16.msra.mxu0 %v1662
    %2368 = vmatprep.subr.bf16.mxu0 %v1665
    %2369 = vmatpush1.bf16.msra.mxu0 %v1664
    %2370 = vmatprep.subr.bf16.mxu0 %v1667
    %2371 = vmatpush1.bf16.msra.mxu0 %v1666
    %2372 = vmatprep.subr.bf16.mxu0 %v1669
    %2373 = vmatpush1.bf16.msra.mxu0 %v1668
    %2374 = vmatprep.subr.bf16.mxu0 %v1671
    %2375 = vmatpush1.bf16.msra.mxu0 %v1670
    %2376 = vmatprep.subr.bf16.mxu0 %v1673
    %2377 = vmatpush1.bf16.msra.mxu0 %v1672
    %2378 = vmatprep.subr.bf16.mxu0 %v1675
    %2379 = vmatpush1.bf16.msra.mxu0 %v1674
    %2380 = vmatprep.subr.bf16.mxu0 %v1677
    %2381 = vmatpush1.bf16.msra.mxu0 %v1676
    %2382 = vmatprep.subr.bf16.mxu0 %v1679
    %2383 = vmatpush1.bf16.msra.mxu0 %v1678
    %2384 = vmatprep.subr.bf16.mxu0 %v1681
    %2385 = vmatpush1.bf16.msra.mxu0 %v1680
    %2386 = vmatprep.subr.bf16.mxu0 %v1683
    %2387 = vmatpush1.bf16.msra.mxu0 %v1682
    %2388 = vmatprep.mubr.bf16.mxu0 %v2229
    %2389 = vmatmul.mubr.bf16.gmra.mrb[0].mxu0 %v2228
    %v2390 = vpop.f32.mrb[0].mxu0
    %v2391 = vadd.f32 %v1750, %v2390
    %v2392 = vpop.f32.mrb[0].mxu0
    %v2393 = vadd.f32 %v1750, %v2392
    %v2394 = vpop.f32.mrb[0].mxu0
    %v2395 = vadd.f32 %v1754, %v2394
    %v2396 = vpop.f32.mrb[0].mxu0
    %v2397 = vadd.f32 %v1754, %v2396
    %2398 = vmatprep.mubr.bf16.mxu0 %v2231
    %2399 = vmatmul.mubr.bf16.gmra.mrb[0].mxu0 %v2230
    %v2400 = vpop.f32.mrb[0].mxu0
    %v2401 = vadd.f32 %v1758, %v2400
    %v2402 = vpop.f32.mrb[0].mxu0
    %v2403 = vadd.f32 %v1758, %v2402
    %v2404 = vpop.f32.mrb[0].mxu0
    %v2405 = vadd.f32 %v1762, %v2404
    %v2406 = vpop.f32.mrb[0].mxu0
    %v2407 = vadd.f32 %v1762, %v2406
    %2408 = vmatprep.mubr.bf16.mxu0 %v2233
    %2409 = vmatmul.mubr.bf16.gmra.mrb[0].mxu0 %v2232
    %v2410 = vpop.f32.mrb[0].mxu0
    %v2411 = vadd.f32 %v1766, %v2410
    %v2412 = vpop.f32.mrb[0].mxu0
    %v2413 = vadd.f32 %v1766, %v2412
    %v2414 = vpop.f32.mrb[0].mxu0
    %v2415 = vadd.f32 %v1770, %v2414
    %v2416 = vpop.f32.mrb[0].mxu0
    %v2417 = vadd.f32 %v1770, %v2416
    %2418 = vmatprep.mubr.bf16.mxu0 %v2235
    %2419 = vmatmul.mubr.bf16.gmra.mrb[0].mxu0 %v2234
    %v2420 = vpop.f32.mrb[0].mxu0
    %v2421 = vadd.f32 %v1774, %v2420
    %v2422 = vpop.f32.mrb[0].mxu0
    %v2423 = vadd.f32 %v1774, %v2422
    %v2424 = vpop.f32.mrb[0].mxu0
    %v2425 = vadd.f32 %v1778, %v2424
    %v2426 = vpop.f32.mrb[0].mxu0
    %v2427 = vadd.f32 %v1778, %v2426
    %2428 = vmatprep.mubr.bf16.mxu0 %v2237
    %2429 = vmatmul.mubr.bf16.gmra.mrb[0].mxu0 %v2236
    %v2430 = vpop.f32.mrb[0].mxu0
    %v2431 = vadd.f32 %v1782, %v2430
    %v2432 = vpop.f32.mrb[0].mxu0
    %v2433 = vadd.f32 %v1782, %v2432
    %v2434 = vpop.f32.mrb[0].mxu0
    %v2435 = vadd.f32 %v1786, %v2434
    %v2436 = vpop.f32.mrb[0].mxu0
    %v2437 = vadd.f32 %v1786, %v2436
    %2438 = vmatprep.mubr.bf16.mxu0 %v2239
    %2439 = vmatmul.mubr.bf16.gmra.mrb[0].mxu0 %v2238
    %v2440 = vpop.f32.mrb[0].mxu0
    %v2441 = vadd.f32 %v1790, %v2440
    %v2442 = vpop.f32.mrb[0].mxu0
    %v2443 = vadd.f32 %v1790, %v2442
    %v2444 = vpop.f32.mrb[0].mxu0
    %v2445 = vadd.f32 %v1794, %v2444
    %v2446 = vpop.f32.mrb[0].mxu0
    %v2447 = vadd.f32 %v1794, %v2446
    %2448 = vmatprep.mubr.bf16.mxu0 %v2241
    %2449 = vmatmul.mubr.bf16.gmra.mrb[0].mxu0 %v2240
    %v2450 = vpop.f32.mrb[0].mxu0
    %v2451 = vadd.f32 %v1798, %v2450
    %v2452 = vpop.f32.mrb[0].mxu0
    %v2453 = vadd.f32 %v1798, %v2452
    %v2454 = vpop.f32.mrb[0].mxu0
    %v2455 = vadd.f32 %v1802, %v2454
    %v2456 = vpop.f32.mrb[0].mxu0
    %v2457 = vadd.f32 %v1802, %v2456
    %2458 = vmatprep.mubr.bf16.mxu0 %v2243
    %2459 = vmatmul.mubr.bf16.gmra.mrb[0].mxu0 %v2242
    %v2460 = vpop.f32.mrb[0].mxu0
    %v2461 = vadd.f32 %v1806, %v2460
    %v2462 = vpop.f32.mrb[0].mxu0
    %v2463 = vadd.f32 %v1806, %v2462
    %v2464 = vpop.f32.mrb[0].mxu0
    %v2465 = vadd.f32 %v1810, %v2464
    %v2466 = vpop.f32.mrb[0].mxu0
    %v2467 = vadd.f32 %v1810, %v2466
    %2468 = vmatprep.mubr.bf16.mxu0 %v2245
    %2469 = vmatmul.mubr.bf16.gmra.mrb[0].mxu0 %v2244
    %v2470 = vpop.f32.mrb[0].mxu0
    %v2471 = vadd.f32 %v1814, %v2470
    %v2472 = vpop.f32.mrb[0].mxu0
    %v2473 = vadd.f32 %v1814, %v2472
    %v2474 = vpop.f32.mrb[0].mxu0
    %v2475 = vadd.f32 %v1818, %v2474
    %v2476 = vpop.f32.mrb[0].mxu0
    %v2477 = vadd.f32 %v1818, %v2476
    %2478 = vmatprep.mubr.bf16.mxu0 %v2247
    %2479 = vmatmul.mubr.bf16.gmra.mrb[0].mxu0 %v2246
    %v2480 = vpop.f32.mrb[0].mxu0
    %v2481 = vadd.f32 %v1822, %v2480
    %v2482 = vpop.f32.mrb[0].mxu0
    %v2483 = vadd.f32 %v1822, %v2482
    %v2484 = vpop.f32.mrb[0].mxu0
    %v2485 = vadd.f32 %v1826, %v2484
    %v2486 = vpop.f32.mrb[0].mxu0
    %v2487 = vadd.f32 %v1826, %v2486
    %2488 = vmatprep.mubr.bf16.mxu0 %v2249
    %2489 = vmatmul.mubr.bf16.gmra.mrb[0].mxu0 %v2248
    %v2490 = vpop.f32.mrb[0].mxu0
    %v2491 = vadd.f32 %v1830, %v2490
    %v2492 = vpop.f32.mrb[0].mxu0
    %v2493 = vadd.f32 %v1830, %v2492
    %v2494 = vpop.f32.mrb[0].mxu0
    %v2495 = vadd.f32 %v1834, %v2494
    %v2496 = vpop.f32.mrb[0].mxu0
    %v2497 = vadd.f32 %v1834, %v2496
    %2498 = vmatprep.mubr.bf16.mxu0 %v2251
    %2499 = vmatmul.mubr.bf16.gmra.mrb[0].mxu0 %v2250
    %v2500 = vpop.f32.mrb[0].mxu0
    %v2501 = vadd.f32 %v1838, %v2500
    %v2502 = vpop.f32.mrb[0].mxu0
    %v2503 = vadd.f32 %v1838, %v2502
    %v2504 = vpop.f32.mrb[0].mxu0
    %v2505 = vadd.f32 %v1842, %v2504
    %v2506 = vpop.f32.mrb[0].mxu0
    %v2507 = vadd.f32 %v1842, %v2506
    %2508 = vmatprep.mubr.bf16.mxu0 %v2253
    %2509 = vmatmul.mubr.bf16.gmra.mrb[0].mxu0 %v2252
    %v2510 = vpop.f32.mrb[0].mxu0
    %v2511 = vadd.f32 %v1846, %v2510
    %v2512 = vpop.f32.mrb[0].mxu0
    %v2513 = vadd.f32 %v1846, %v2512
    %v2514 = vpop.f32.mrb[0].mxu0
    %v2515 = vadd.f32 %v1850, %v2514
    %v2516 = vpop.f32.mrb[0].mxu0
    %v2517 = vadd.f32 %v1850, %v2516
    %2518 = vmatprep.mubr.bf16.mxu0 %v2255
    %2519 = vmatmul.mubr.bf16.gmra.mrb[0].mxu0 %v2254
    %v2520 = vpop.f32.mrb[0].mxu0
    %v2521 = vadd.f32 %v1854, %v2520
    %v2522 = vpop.f32.mrb[0].mxu0
    %v2523 = vadd.f32 %v1854, %v2522
    %v2524 = vpop.f32.mrb[0].mxu0
    %v2525 = vadd.f32 %v1858, %v2524
    %v2526 = vpop.f32.mrb[0].mxu0
    %v2527 = vadd.f32 %v1858, %v2526
    %2528 = vmatprep.mubr.bf16.mxu0 %v2257
    %2529 = vmatmul.mubr.bf16.gmra.mrb[0].mxu0 %v2256
    %v2530 = vpop.f32.mrb[0].mxu0
    %v2531 = vadd.f32 %v1862, %v2530
    %v2532 = vpop.f32.mrb[0].mxu0
    %v2533 = vadd.f32 %v1862, %v2532
    %v2534 = vpop.f32.mrb[0].mxu0
    %v2535 = vadd.f32 %v1866, %v2534
    %v2536 = vpop.f32.mrb[0].mxu0
    %v2537 = vadd.f32 %v1866, %v2536
    %2538 = vmatprep.mubr.bf16.mxu0 %v2259
    %2539 = vmatmul.mubr.bf16.gmra.mrb[0].mxu0 %v2258
    %v2540 = vpop.f32.mrb[0].mxu0
    %v2541 = vadd.f32 %v1870, %v2540
    %v2542 = vpop.f32.mrb[0].mxu0
    %v2543 = vadd.f32 %v1870, %v2542
    %v2544 = vpop.f32.mrb[0].mxu0
    %v2545 = vadd.f32 %v1874, %v2544
    %v2546 = vpop.f32.mrb[0].mxu0
    %v2547 = vadd.f32 %v1874, %v2546
    %2548 = vmatprep.mubr.bf16.mxu0 %v2261
    %2549 = vmatmul.mubr.bf16.gmra.mrb[0].mxu0 %v2260
    %v2550 = vpop.f32.mrb[0].mxu0
    %v2551 = vadd.f32 %v1879, %v2550
    %v2552 = vpop.f32.mrb[0].mxu0
    %v2553 = vadd.f32 %v1879, %v2552
    %v2554 = vpop.f32.mrb[0].mxu0
    %v2555 = vadd.f32 %v1884, %v2554
    %v2556 = vpop.f32.mrb[0].mxu0
    %v2557 = vadd.f32 %v1884, %v2556
    %2558 = vmatprep.mubr.bf16.mxu0 %v2263
    %2559 = vmatmul.mubr.bf16.gmra.mrb[0].mxu0 %v2262
    %v2560 = vpop.f32.mrb[0].mxu0
    %v2561 = vadd.f32 %v1889, %v2560
    %v2562 = vpop.f32.mrb[0].mxu0
    %v2563 = vadd.f32 %v1889, %v2562
    %v2564 = vpop.f32.mrb[0].mxu0
    %v2565 = vadd.f32 %v1894, %v2564
    %v2566 = vpop.f32.mrb[0].mxu0
    %v2567 = vadd.f32 %v1894, %v2566
    %2568 = vmatprep.mubr.bf16.mxu0 %v2265
    %2569 = vmatmul.mubr.bf16.gmra.mrb[0].mxu0 %v2264
    %v2570 = vpop.f32.mrb[0].mxu0
    %v2571 = vadd.f32 %v1899, %v2570
    %v2572 = vpop.f32.mrb[0].mxu0
    %v2573 = vadd.f32 %v1899, %v2572
    %v2574 = vpop.f32.mrb[0].mxu0
    %v2575 = vadd.f32 %v1904, %v2574
    %v2576 = vpop.f32.mrb[0].mxu0
    %v2577 = vadd.f32 %v1904, %v2576
    %2578 = vmatprep.mubr.bf16.mxu0 %v2267
    %2579 = vmatmul.mubr.bf16.gmra.mrb[0].mxu0 %v2266
    %v2580 = vpop.f32.mrb[0].mxu0
    %v2581 = vadd.f32 %v1909, %v2580
    %v2582 = vpop.f32.mrb[0].mxu0
    %v2583 = vadd.f32 %v1909, %v2582
    %v2584 = vpop.f32.mrb[0].mxu0
    %v2585 = vadd.f32 %v1914, %v2584
    %v2586 = vpop.f32.mrb[0].mxu0
    %v2587 = vadd.f32 %v1914, %v2586
    %2588 = vmatprep.mubr.bf16.mxu0 %v2269
    %2589 = vmatmul.mubr.bf16.gmra.mrb[0].mxu0 %v2268
    %v2590 = vpop.f32.mrb[0].mxu0
    %v2591 = vadd.f32 %v1919, %v2590
    %v2592 = vpop.f32.mrb[0].mxu0
    %v2593 = vadd.f32 %v1919, %v2592
    %v2594 = vpop.f32.mrb[0].mxu0
    %v2595 = vadd.f32 %v1924, %v2594
    %v2596 = vpop.f32.mrb[0].mxu0
    %v2597 = vadd.f32 %v1924, %v2596
    %2598 = vmatprep.mubr.bf16.mxu0 %v2271
    %2599 = vmatmul.mubr.bf16.gmra.mrb[0].mxu0 %v2270
    %v2600 = vpop.f32.mrb[0].mxu0
    %v2601 = vadd.f32 %v1929, %v2600
    %v2602 = vpop.f32.mrb[0].mxu0
    %v2603 = vadd.f32 %v1929, %v2602
    %v2604 = vpop.f32.mrb[0].mxu0
    %v2605 = vadd.f32 %v1934, %v2604
    %v2606 = vpop.f32.mrb[0].mxu0
    %v2607 = vadd.f32 %v1934, %v2606
    %2608 = vmatprep.mubr.bf16.mxu0 %v2273
    %2609 = vmatmul.mubr.bf16.gmra.mrb[0].mxu0 %v2272
    %v2610 = vpop.f32.mrb[0].mxu0
    %v2611 = vadd.f32 %v1939, %v2610
    %v2612 = vpop.f32.mrb[0].mxu0
    %v2613 = vadd.f32 %v1939, %v2612
    %v2614 = vpop.f32.mrb[0].mxu0
    %v2615 = vadd.f32 %v1944, %v2614
    %v2616 = vpop.f32.mrb[0].mxu0
    %v2617 = vadd.f32 %v1944, %v2616
    %2618 = vmatprep.mubr.bf16.mxu0 %v2275
    %2619 = vmatmul.mubr.bf16.gmra.mrb[0].mxu0 %v2274
    %v2620 = vpop.f32.mrb[0].mxu0
    %v2621 = vadd.f32 %v1949, %v2620
    %v2622 = vpop.f32.mrb[0].mxu0
    %v2623 = vadd.f32 %v1949, %v2622
    %v2624 = vpop.f32.mrb[0].mxu0
    %v2625 = vadd.f32 %v1954, %v2624
    %v2626 = vpop.f32.mrb[0].mxu0
    %v2627 = vadd.f32 %v1954, %v2626
    %2628 = vmatprep.mubr.bf16.mxu0 %v2277
    %2629 = vmatmul.mubr.bf16.gmra.mrb[0].mxu0 %v2276
    %v2630 = vpop.f32.mrb[0].mxu0
    %v2631 = vadd.f32 %v1959, %v2630
    %v2632 = vpop.f32.mrb[0].mxu0
    %v2633 = vadd.f32 %v1959, %v2632
    %v2634 = vpop.f32.mrb[0].mxu0
    %v2635 = vadd.f32 %v1964, %v2634
    %v2636 = vpop.f32.mrb[0].mxu0
    %v2637 = vadd.f32 %v1964, %v2636
    %2638 = vmatprep.mubr.bf16.mxu0 %v2279
    %2639 = vmatmul.mubr.bf16.gmra.mrb[0].mxu0 %v2278
    %v2640 = vpop.f32.mrb[0].mxu0
    %v2641 = vadd.f32 %v1969, %v2640
    %v2642 = vpop.f32.mrb[0].mxu0
    %v2643 = vadd.f32 %v1969, %v2642
    %v2644 = vpop.f32.mrb[0].mxu0
    %v2645 = vadd.f32 %v1974, %v2644
    %v2646 = vpop.f32.mrb[0].mxu0
    %v2647 = vadd.f32 %v1974, %v2646
    %2648 = vmatprep.mubr.bf16.mxu0 %v2281
    %2649 = vmatmul.mubr.bf16.gmra.mrb[0].mxu0 %v2280
    %v2650 = vpop.f32.mrb[0].mxu0
    %v2651 = vadd.f32 %v1979, %v2650
    %v2652 = vpop.f32.mrb[0].mxu0
    %v2653 = vadd.f32 %v1979, %v2652
    %v2654 = vpop.f32.mrb[0].mxu0
    %v2655 = vadd.f32 %v1984, %v2654
    %v2656 = vpop.f32.mrb[0].mxu0
    %v2657 = vadd.f32 %v1984, %v2656
    %2658 = vmatprep.mubr.bf16.mxu0 %v2283
    %2659 = vmatmul.mubr.bf16.gmra.mrb[0].mxu0 %v2282
    %v2660 = vpop.f32.mrb[0].mxu0
    %v2661 = vadd.f32 %v1989, %v2660
    %v2662 = vpop.f32.mrb[0].mxu0
    %v2663 = vadd.f32 %v1989, %v2662
    %v2664 = vpop.f32.mrb[0].mxu0
    %v2665 = vadd.f32 %v1994, %v2664
    %v2666 = vpop.f32.mrb[0].mxu0
    %v2667 = vadd.f32 %v1994, %v2666
    %2668 = vmatprep.mubr.bf16.mxu0 %v2285
    %2669 = vmatmul.mubr.bf16.gmra.mrb[0].mxu0 %v2284
    %v2670 = vpop.f32.mrb[0].mxu0
    %v2671 = vadd.f32 %v1999, %v2670
    %v2672 = vpop.f32.mrb[0].mxu0
    %v2673 = vadd.f32 %v1999, %v2672
    %v2674 = vpop.f32.mrb[0].mxu0
    %v2675 = vadd.f32 %v2004, %v2674
    %v2676 = vpop.f32.mrb[0].mxu0
    %v2677 = vadd.f32 %v2004, %v2676
    %2678 = vmatprep.mubr.bf16.mxu0 %v2287
    %2679 = vmatmul.mubr.bf16.gmra.mrb[0].mxu0 %v2286
    %v2680 = vpop.f32.mrb[0].mxu0
    %v2681 = vadd.f32 %v2009, %v2680
    %v2682 = vpop.f32.mrb[0].mxu0
    %v2683 = vadd.f32 %v2009, %v2682
    %v2684 = vpop.f32.mrb[0].mxu0
    %v2685 = vadd.f32 %v2014, %v2684
    %v2686 = vpop.f32.mrb[0].mxu0
    %v2687 = vadd.f32 %v2014, %v2686
    %2688 = vmatprep.mubr.bf16.mxu0 %v2289
    %2689 = vmatmul.mubr.bf16.gmra.mrb[0].mxu0 %v2288
    %v2690 = vpop.f32.mrb[0].mxu0
    %v2691 = vadd.f32 %v2019, %v2690
    %v2692 = vpop.f32.mrb[0].mxu0
    %v2693 = vadd.f32 %v2019, %v2692
    %v2694 = vpop.f32.mrb[0].mxu0
    %v2695 = vadd.f32 %v2024, %v2694
    %v2696 = vpop.f32.mrb[0].mxu0
    %v2697 = vadd.f32 %v2024, %v2696
    %2698 = vmatprep.mubr.bf16.mxu0 %v2291
    %2699 = vmatmul.mubr.bf16.gmra.mrb[0].mxu0 %v2290
    %v2700 = vpop.f32.mrb[0].mxu0
    %v2701 = vadd.f32 %v2029, %v2700
    %v2702 = vpop.f32.mrb[0].mxu0
    %v2703 = vadd.f32 %v2029, %v2702
    %v2704 = vpop.f32.mrb[0].mxu0
    %v2705 = vadd.f32 %v2034, %v2704
    %v2706 = vpop.f32.mrb[0].mxu0
    %v2707 = vadd.f32 %v2034, %v2706
    %2708 = vdwg.mxu0
    %v2709 = vmax.f32 %v2391, 0.0
    %v2710 = vmax.f32 %v2393, 0.0
    %v2711 = vmax.f32 %v2395, 0.0
    %v2712 = vmax.f32 %v2397, 0.0
    %v2713 = vmax.f32 %v2401, 0.0
    %v2714 = vmax.f32 %v2403, 0.0
    %v2715 = vmax.f32 %v2405, 0.0
    %v2716 = vmax.f32 %v2407, 0.0
    %v2717 = vmax.f32 %v2411, 0.0
    %v2718 = vmax.f32 %v2413, 0.0
    %v2719 = vmax.f32 %v2415, 0.0
    %v2720 = vmax.f32 %v2417, 0.0
    %v2721 = vmax.f32 %v2421, 0.0
    %v2722 = vmax.f32 %v2423, 0.0
    %v2723 = vmax.f32 %v2425, 0.0
    %v2724 = vmax.f32 %v2427, 0.0
    %v2725 = vmax.f32 %v2431, 0.0
    %v2726 = vmax.f32 %v2433, 0.0
    %v2727 = vmax.f32 %v2435, 0.0
    %v2728 = vmax.f32 %v2437, 0.0
    %v2729 = vmax.f32 %v2441, 0.0
    %v2730 = vmax.f32 %v2443, 0.0
    %v2731 = vmax.f32 %v2445, 0.0
    %v2732 = vmax.f32 %v2447, 0.0
    %v2733 = vmax.f32 %v2451, 0.0
    %v2734 = vmax.f32 %v2453, 0.0
    %v2735 = vmax.f32 %v2455, 0.0
    %v2736 = vmax.f32 %v2457, 0.0
    %v2737 = vmax.f32 %v2461, 0.0
    %v2738 = vmax.f32 %v2463, 0.0
    %v2739 = vmax.f32 %v2465, 0.0
    %v2740 = vmax.f32 %v2467, 0.0
    %v2741 = vmax.f32 %v2471, 0.0
    %v2742 = vmax.f32 %v2473, 0.0
    %v2743 = vmax.f32 %v2475, 0.0
    %v2744 = vmax.f32 %v2477, 0.0
    %v2745 = vmax.f32 %v2481, 0.0
    %v2746 = vmax.f32 %v2483, 0.0
    %v2747 = vmax.f32 %v2485, 0.0
    %v2748 = vmax.f32 %v2487, 0.0
    %v2749 = vmax.f32 %v2491, 0.0
    %v2750 = vmax.f32 %v2493, 0.0
    %v2751 = vmax.f32 %v2495, 0.0
    %v2752 = vmax.f32 %v2497, 0.0
    %v2753 = vmax.f32 %v2501, 0.0
    %v2754 = vmax.f32 %v2503, 0.0
    %v2755 = vmax.f32 %v2505, 0.0
    %v2756 = vmax.f32 %v2507, 0.0
    %v2757 = vmax.f32 %v2511, 0.0
    %v2758 = vmax.f32 %v2513, 0.0
    %v2759 = vmax.f32 %v2515, 0.0
    %v2760 = vmax.f32 %v2517, 0.0
    %v2761 = vmax.f32 %v2521, 0.0
    %v2762 = vmax.f32 %v2523, 0.0
    %v2763 = vmax.f32 %v2525, 0.0
    %v2764 = vmax.f32 %v2527, 0.0
    %v2765 = vmax.f32 %v2531, 0.0
    %v2766 = vmax.f32 %v2533, 0.0
    %v2767 = vmax.f32 %v2535, 0.0
    %v2768 = vmax.f32 %v2537, 0.0
    %v2769 = vmax.f32 %v2541, 0.0
    %v2770 = vmax.f32 %v2543, 0.0
    %v2771 = vmax.f32 %v2545, 0.0
    %v2772 = vmax.f32 %v2547, 0.0
    %v2773 = vmax.f32 %v2551, 0.0
    %v2774 = vmax.f32 %v2553, 0.0
    %v2775 = vmax.f32 %v2555, 0.0
    %v2776 = vmax.f32 %v2557, 0.0
    %v2777 = vmax.f32 %v2561, 0.0
    %v2778 = vmax.f32 %v2563, 0.0
    %v2779 = vmax.f32 %v2565, 0.0
    %v2780 = vmax.f32 %v2567, 0.0
    %v2781 = vmax.f32 %v2571, 0.0
    %v2782 = vmax.f32 %v2573, 0.0
    %v2783 = vmax.f32 %v2575, 0.0
    %v2784 = vmax.f32 %v2577, 0.0
    %v2785 = vmax.f32 %v2581, 0.0
    %v2786 = vmax.f32 %v2583, 0.0
    %v2787 = vmax.f32 %v2585, 0.0
    %v2788 = vmax.f32 %v2587, 0.0
    %v2789 = vmax.f32 %v2591, 0.0
    %v2790 = vmax.f32 %v2593, 0.0
    %v2791 = vmax.f32 %v2595, 0.0
    %v2792 = vmax.f32 %v2597, 0.0
    %v2793 = vmax.f32 %v2601, 0.0
    %v2794 = vmax.f32 %v2603, 0.0
    %v2795 = vmax.f32 %v2605, 0.0
    %v2796 = vmax.f32 %v2607, 0.0
    %v2797 = vmax.f32 %v2611, 0.0
    %v2798 = vmax.f32 %v2613, 0.0
    %v2799 = vmax.f32 %v2615, 0.0
    %v2800 = vmax.f32 %v2617, 0.0
    %v2801 = vmax.f32 %v2621, 0.0
    %v2802 = vmax.f32 %v2623, 0.0
    %v2803 = vmax.f32 %v2625, 0.0
    %v2804 = vmax.f32 %v2627, 0.0
    %v2805 = vmax.f32 %v2631, 0.0
    %v2806 = vmax.f32 %v2633, 0.0
    %v2807 = vmax.f32 %v2635, 0.0
    %v2808 = vmax.f32 %v2637, 0.0
    %v2809 = vmax.f32 %v2641, 0.0
    %v2810 = vmax.f32 %v2643, 0.0
    %v2811 = vmax.f32 %v2645, 0.0
    %v2812 = vmax.f32 %v2647, 0.0
    %v2813 = vmax.f32 %v2651, 0.0
    %v2814 = vmax.f32 %v2653, 0.0
    %v2815 = vmax.f32 %v2655, 0.0
    %v2816 = vmax.f32 %v2657, 0.0
    %v2817 = vmax.f32 %v2661, 0.0
    %v2818 = vmax.f32 %v2663, 0.0
    %v2819 = vmax.f32 %v2665, 0.0
    %v2820 = vmax.f32 %v2667, 0.0
    %v2821 = vmax.f32 %v2671, 0.0
    %v2822 = vmax.f32 %v2673, 0.0
    %v2823 = vmax.f32 %v2675, 0.0
    %v2824 = vmax.f32 %v2677, 0.0
    %v2825 = vmax.f32 %v2681, 0.0
    %v2826 = vmax.f32 %v2683, 0.0
    %v2827 = vmax.f32 %v2685, 0.0
    %v2828 = vmax.f32 %v2687, 0.0
    %v2829 = vmax.f32 %v2691, 0.0
    %v2830 = vmax.f32 %v2693, 0.0
    %v2831 = vmax.f32 %v2695, 0.0
    %v2832 = vmax.f32 %v2697, 0.0
    %v2833 = vmax.f32 %v2701, 0.0
    %v2834 = vmax.f32 %v2703, 0.0
    %v2835 = vmax.f32 %v2705, 0.0
    %v2836 = vmax.f32 %v2707, 0.0
    %v2837 = vpack.c.bf16 %v2711, %v2709
    %v2838 = vpack.c.bf16 %v2712, %v2710
    %v2839 = vpack.c.bf16 %v2715, %v2713
    %v2840 = vpack.c.bf16 %v2716, %v2714
    %v2841 = vpack.c.bf16 %v2719, %v2717
    %v2842 = vpack.c.bf16 %v2720, %v2718
    %v2843 = vpack.c.bf16 %v2723, %v2721
    %v2844 = vpack.c.bf16 %v2724, %v2722
    %v2845 = vpack.c.bf16 %v2727, %v2725
    %v2846 = vpack.c.bf16 %v2728, %v2726
    %v2847 = vpack.c.bf16 %v2731, %v2729
    %v2848 = vpack.c.bf16 %v2732, %v2730
    %v2849 = vpack.c.bf16 %v2735, %v2733
    %v2850 = vpack.c.bf16 %v2736, %v2734
    %v2851 = vpack.c.bf16 %v2739, %v2737
    %v2852 = vpack.c.bf16 %v2740, %v2738
    %v2853 = vpack.c.bf16 %v2743, %v2741
    %v2854 = vpack.c.bf16 %v2744, %v2742
    %v2855 = vpack.c.bf16 %v2747, %v2745
    %v2856 = vpack.c.bf16 %v2748, %v2746
    %v2857 = vpack.c.bf16 %v2751, %v2749
    %v2858 = vpack.c.bf16 %v2752, %v2750
    %v2859 = vpack.c.bf16 %v2755, %v2753
    %v2860 = vpack.c.bf16 %v2756, %v2754
    %v2861 = vpack.c.bf16 %v2759, %v2757
    %v2862 = vpack.c.bf16 %v2760, %v2758
    %v2863 = vpack.c.bf16 %v2763, %v2761
    %v2864 = vpack.c.bf16 %v2764, %v2762
    %v2865 = vpack.c.bf16 %v2767, %v2765
    %v2866 = vpack.c.bf16 %v2768, %v2766
    %v2867 = vpack.c.bf16 %v2771, %v2769
    %v2868 = vpack.c.bf16 %v2772, %v2770
    %v2869 = vpack.c.bf16 %v2775, %v2773
    %v2870 = vpack.c.bf16 %v2776, %v2774
    %v2871 = vpack.c.bf16 %v2779, %v2777
    %v2872 = vpack.c.bf16 %v2780, %v2778
    %v2873 = vpack.c.bf16 %v2783, %v2781
    %v2874 = vpack.c.bf16 %v2784, %v2782
    %v2875 = vpack.c.bf16 %v2787, %v2785
    %v2876 = vpack.c.bf16 %v2788, %v2786
    %v2877 = vpack.c.bf16 %v2791, %v2789
    %v2878 = vpack.c.bf16 %v2792, %v2790
    %v2879 = vpack.c.bf16 %v2795, %v2793
    %v2880 = vpack.c.bf16 %v2796, %v2794
    %v2881 = vpack.c.bf16 %v2799, %v2797
    %v2882 = vpack.c.bf16 %v2800, %v2798
    %v2883 = vpack.c.bf16 %v2803, %v2801
    %v2884 = vpack.c.bf16 %v2804, %v2802
    %v2885 = vpack.c.bf16 %v2807, %v2805
    %v2886 = vpack.c.bf16 %v2808, %v2806
    %v2887 = vpack.c.bf16 %v2811, %v2809
    %v2888 = vpack.c.bf16 %v2812, %v2810
    %v2889 = vpack.c.bf16 %v2815, %v2813
    %v2890 = vpack.c.bf16 %v2816, %v2814
    %v2891 = vpack.c.bf16 %v2819, %v2817
    %v2892 = vpack.c.bf16 %v2820, %v2818
    %v2893 = vpack.c.bf16 %v2823, %v2821
    %v2894 = vpack.c.bf16 %v2824, %v2822
    %v2895 = vpack.c.bf16 %v2827, %v2825
    %v2896 = vpack.c.bf16 %v2828, %v2826
    %v2897 = vpack.c.bf16 %v2831, %v2829
    %v2898 = vpack.c.bf16 %v2832, %v2830
    %v2899 = vpack.c.bf16 %v2835, %v2833
    %v2900 = vpack.c.bf16 %v2836, %v2834
    %v2901 = vld [vmem:[%s6] sm:$0xff]
    %v2902 = vld [vmem:[%s6 + $0x8] sm:$0xff]
    %v2903 = vld [vmem:[%s6 + $0x10] sm:$0xff]
    %v2904 = vld [vmem:[%s6 + $0x18] sm:$0xff]
    %v2905 = vld [vmem:[%s6 + $0x20] sm:$0xff]
    %v2906 = vld [vmem:[%s6 + $0x28] sm:$0xff]
    %v2907 = vld [vmem:[%s6 + $0x30] sm:$0xff]
    %v2908 = vld [vmem:[%s6 + $0x38] sm:$0xff]
    %v2909 = vld [vmem:[%s6 + $0x40] sm:$0xff]
    %v2910 = vld [vmem:[%s6 + $0x48] sm:$0xff]
    %v2911 = vld [vmem:[%s6 + $0x50] sm:$0xff]
    %v2912 = vld [vmem:[%s6 + $0x58] sm:$0xff]
    %v2913 = vld [vmem:[%s6 + $0x60] sm:$0xff]
    %v2914 = vld [vmem:[%s6 + $0x68] sm:$0xff]
    %v2915 = vld [vmem:[%s6 + $0x70] sm:$0xff]
    %v2916 = vld [vmem:[%s6 + $0x78] sm:$0xff]
    %v2917 = vld [vmem:[%s6 + $0x80] sm:$0xff]
    %v2918 = vld [vmem:[%s6 + $0x88] sm:$0xff]
    %v2919 = vld [vmem:[%s6 + $0x90] sm:$0xff]
    %v2920 = vld [vmem:[%s6 + $0x98] sm:$0xff]
    %v2921 = vld [vmem:[%s6 + $0xa0] sm:$0xff]
    %v2922 = vld [vmem:[%s6 + $0xa8] sm:$0xff]
    %v2923 = vld [vmem:[%s6 + $0xb0] sm:$0xff]
    %v2924 = vld [vmem:[%s6 + $0xb8] sm:$0xff]
    %v2925 = vld [vmem:[%s6 + $0xc0] sm:$0xff]
    %v2926 = vld [vmem:[%s6 + $0xc8] sm:$0xff]
    %v2927 = vld [vmem:[%s6 + $0xd0] sm:$0xff]
    %v2928 = vld [vmem:[%s6 + $0xd8] sm:$0xff]
    %v2929 = vld [vmem:[%s6 + $0xe0] sm:$0xff]
    %v2930 = vld [vmem:[%s6 + $0xe8] sm:$0xff]
    %v2931 = vld [vmem:[%s6 + $0xf0] sm:$0xff]
    %v2932 = vld [vmem:[%s6 + $0xf8] sm:$0xff]
    %v2933 = vld [vmem:[%s6 + $0x100] sm:$0xff]
    %v2934 = vld [vmem:[%s6 + $0x108] sm:$0xff]
    %v2935 = vld [vmem:[%s6 + $0x110] sm:$0xff]
    %v2936 = vld [vmem:[%s6 + $0x118] sm:$0xff]
    %v2937 = vld [vmem:[%s6 + $0x120] sm:$0xff]
    %v2938 = vld [vmem:[%s6 + $0x128] sm:$0xff]
    %v2939 = vld [vmem:[%s6 + $0x130] sm:$0xff]
    %v2940 = vld [vmem:[%s6 + $0x138] sm:$0xff]
    %v2941 = vld [vmem:[%s6 + $0x140] sm:$0xff]
    %v2942 = vld [vmem:[%s6 + $0x148] sm:$0xff]
    %v2943 = vld [vmem:[%s6 + $0x150] sm:$0xff]
    %v2944 = vld [vmem:[%s6 + $0x158] sm:$0xff]
    %v2945 = vld [vmem:[%s6 + $0x160] sm:$0xff]
    %v2946 = vld [vmem:[%s6 + $0x168] sm:$0xff]
    %v2947 = vld [vmem:[%s6 + $0x170] sm:$0xff]
    %v2948 = vld [vmem:[%s6 + $0x178] sm:$0xff]
    %v2949 = vld [vmem:[%s6 + $0x180] sm:$0xff]
    %v2950 = vld [vmem:[%s6 + $0x188] sm:$0xff]
    %v2951 = vld [vmem:[%s6 + $0x190] sm:$0xff]
    %v2952 = vld [vmem:[%s6 + $0x198] sm:$0xff]
    %v2953 = vld [vmem:[%s6 + $0x1a0] sm:$0xff]
    %v2954 = vld [vmem:[%s6 + $0x1a8] sm:$0xff]
    %v2955 = vld [vmem:[%s6 + $0x1b0] sm:$0xff]
    %v2956 = vld [vmem:[%s6 + $0x1b8] sm:$0xff]
    %v2957 = vld [vmem:[%s6 + $0x1c0] sm:$0xff]
    %v2958 = vld [vmem:[%s6 + $0x1c8] sm:$0xff]
    %v2959 = vld [vmem:[%s6 + $0x1d0] sm:$0xff]
    %v2960 = vld [vmem:[%s6 + $0x1d8] sm:$0xff]
    %v2961 = vld [vmem:[%s6 + $0x1e0] sm:$0xff]
    %v2962 = vld [vmem:[%s6 + $0x1e8] sm:$0xff]
    %v2963 = vld [vmem:[%s6 + $0x1f0] sm:$0xff]
    %v2964 = vld [vmem:[%s6 + $0x1f8] sm:$0xff]
    %2965 = vset.pattern.permute.xlu0 2
    %2966 = vperm.xlu0 %2965, %v62
    %v2967 = vpop.permute.xlu0 %2966
    %2969 = vset.pattern.permute.xlu0 2
    %2970 = vperm.xlu0 %2969, %v63
    %v2971 = vpop.permute.xlu0 %2970
    %2973 = vset.pattern.permute.xlu0 2
    %2974 = vperm.xlu0 %2973, %v64
    %v2975 = vpop.permute.xlu0 %2974
    %2977 = vset.pattern.permute.xlu0 2
    %2978 = vperm.xlu0 %2977, %v65
    %v2979 = vpop.permute.xlu0 %2978
    %2981 = vset.pattern.permute.xlu0 2
    %2982 = vperm.xlu0 %2981, %v66
    %v2983 = vpop.permute.xlu0 %2982
    %2985 = vset.pattern.permute.xlu0 2
    %2986 = vperm.xlu0 %2985, %v67
    %v2987 = vpop.permute.xlu0 %2986
    %2989 = vset.pattern.permute.xlu0 2
    %2990 = vperm.xlu0 %2989, %v68
    %v2991 = vpop.permute.xlu0 %2990
    %2993 = vset.pattern.permute.xlu0 2
    %2994 = vperm.xlu0 %2993, %v69
    %v2995 = vpop.permute.xlu0 %2994
    %2997 = vset.pattern.permute.xlu0 2
    %2998 = vperm.xlu0 %2997, %v70
    %v2999 = vpop.permute.xlu0 %2998
    %3001 = vset.pattern.permute.xlu0 2
    %3002 = vperm.xlu0 %3001, %v71
    %v3003 = vpop.permute.xlu0 %3002
    %3005 = vset.pattern.permute.xlu0 2
    %3006 = vperm.xlu0 %3005, %v72
    %v3007 = vpop.permute.xlu0 %3006
    %3009 = vset.pattern.permute.xlu0 2
    %3010 = vperm.xlu0 %3009, %v73
    %v3011 = vpop.permute.xlu0 %3010
    %3013 = vset.pattern.permute.xlu0 2
    %3014 = vperm.xlu0 %3013, %v74
    %v3015 = vpop.permute.xlu0 %3014
    %3017 = vset.pattern.permute.xlu0 2
    %3018 = vperm.xlu0 %3017, %v75
    %v3019 = vpop.permute.xlu0 %3018
    %3021 = vset.pattern.permute.xlu0 2
    %3022 = vperm.xlu0 %3021, %v76
    %v3023 = vpop.permute.xlu0 %3022
    %3025 = vset.pattern.permute.xlu0 2
    %3026 = vperm.xlu0 %3025, %v77
    %v3027 = vpop.permute.xlu0 %3026
    %3029 = vset.pattern.permute.xlu0 2
    %3030 = vperm.xlu0 %3029, %v78
    %v3031 = vpop.permute.xlu0 %3030
    %3033 = vset.pattern.permute.xlu0 2
    %3034 = vperm.xlu0 %3033, %v79
    %v3035 = vpop.permute.xlu0 %3034
    %3037 = vset.pattern.permute.xlu0 2
    %3038 = vperm.xlu0 %3037, %v80
    %v3039 = vpop.permute.xlu0 %3038
    %3041 = vset.pattern.permute.xlu0 2
    %3042 = vperm.xlu0 %3041, %v81
    %v3043 = vpop.permute.xlu0 %3042
    %3045 = vset.pattern.permute.xlu0 2
    %3046 = vperm.xlu0 %3045, %v82
    %v3047 = vpop.permute.xlu0 %3046
    %3049 = vset.pattern.permute.xlu0 2
    %3050 = vperm.xlu0 %3049, %v83
    %v3051 = vpop.permute.xlu0 %3050
    %3053 = vset.pattern.permute.xlu0 2
    %3054 = vperm.xlu0 %3053, %v84
    %v3055 = vpop.permute.xlu0 %3054
    %3057 = vset.pattern.permute.xlu0 2
    %3058 = vperm.xlu0 %3057, %v85
    %v3059 = vpop.permute.xlu0 %3058
    %3061 = vset.pattern.permute.xlu0 2
    %3062 = vperm.xlu0 %3061, %v86
    %v3063 = vpop.permute.xlu0 %3062
    %3065 = vset.pattern.permute.xlu0 2
    %3066 = vperm.xlu0 %3065, %v87
    %v3067 = vpop.permute.xlu0 %3066
    %3069 = vset.pattern.permute.xlu0 2
    %3070 = vperm.xlu0 %3069, %v88
    %v3071 = vpop.permute.xlu0 %3070
    %3073 = vset.pattern.permute.xlu0 2
    %3074 = vperm.xlu0 %3073, %v89
    %v3075 = vpop.permute.xlu0 %3074
    %3077 = vset.pattern.permute.xlu0 2
    %3078 = vperm.xlu0 %3077, %v90
    %v3079 = vpop.permute.xlu0 %3078
    %3081 = vset.pattern.permute.xlu0 2
    %3082 = vperm.xlu0 %3081, %v91
    %v3083 = vpop.permute.xlu0 %3082
    %3085 = vset.pattern.permute.xlu0 2
    %3086 = vperm.xlu0 %3085, %v92
    %v3087 = vpop.permute.xlu0 %3086
    %3089 = vset.pattern.permute.xlu0 2
    %3090 = vperm.xlu0 %3089, %v93
    %v3091 = vpop.permute.xlu0 %3090
    %v3157 = vunpack.c.l.b16 %v2901
    %v3158 = vunpack.c.h.b16 %v2901
    %v3159 = vunpack.c.l.b16 %v2902
    %v3160 = vunpack.c.h.b16 %v2902
    %v3161 = vunpack.c.l.b16 %v2903
    %v3162 = vunpack.c.h.b16 %v2903
    %v3163 = vunpack.c.l.b16 %v2904
    %v3164 = vunpack.c.h.b16 %v2904
    %v3165 = vunpack.c.l.b16 %v2905
    %v3166 = vunpack.c.h.b16 %v2905
    %v3167 = vunpack.c.l.b16 %v2906
    %v3168 = vunpack.c.h.b16 %v2906
    %v3169 = vunpack.c.l.b16 %v2907
    %v3170 = vunpack.c.h.b16 %v2907
    %v3171 = vunpack.c.l.b16 %v2908
    %v3172 = vunpack.c.h.b16 %v2908
    %v3173 = vunpack.c.l.b16 %v2909
    %v3174 = vunpack.c.h.b16 %v2909
    %v3175 = vunpack.c.l.b16 %v2910
    %v3176 = vunpack.c.h.b16 %v2910
    %v3177 = vunpack.c.l.b16 %v2911
    %v3178 = vunpack.c.h.b16 %v2911
    %v3179 = vunpack.c.l.b16 %v2912
    %v3180 = vunpack.c.h.b16 %v2912
    %v3181 = vunpack.c.l.b16 %v2913
    %v3182 = vunpack.c.h.b16 %v2913
    %v3183 = vunpack.c.l.b16 %v2914
    %v3184 = vunpack.c.h.b16 %v2914
    %v3185 = vunpack.c.l.b16 %v2915
    %v3186 = vunpack.c.h.b16 %v2915
    %v3187 = vunpack.c.l.b16 %v2916
    %v3188 = vunpack.c.h.b16 %v2916
    %v3189 = vunpack.c.l.b16 %v2917
    %v3190 = vunpack.c.h.b16 %v2917
    %v3191 = vunpack.c.l.b16 %v2918
    %v3192 = vunpack.c.h.b16 %v2918
    %v3193 = vunpack.c.l.b16 %v2919
    %v3194 = vunpack.c.h.b16 %v2919
    %v3195 = vunpack.c.l.b16 %v2920
    %v3196 = vunpack.c.h.b16 %v2920
    %v3197 = vunpack.c.l.b16 %v2921
    %v3198 = vunpack.c.h.b16 %v2921
    %v3199 = vunpack.c.l.b16 %v2922
    %v3200 = vunpack.c.h.b16 %v2922
    %v3201 = vunpack.c.l.b16 %v2923
    %v3202 = vunpack.c.h.b16 %v2923
    %v3203 = vunpack.c.l.b16 %v2924
    %v3204 = vunpack.c.h.b16 %v2924
    %v3205 = vunpack.c.l.b16 %v2925
    %v3206 = vunpack.c.h.b16 %v2925
    %v3207 = vunpack.c.l.b16 %v2926
    %v3208 = vunpack.c.h.b16 %v2926
    %v3209 = vunpack.c.l.b16 %v2927
    %v3210 = vunpack.c.h.b16 %v2927
    %v3211 = vunpack.c.l.b16 %v2928
    %v3212 = vunpack.c.h.b16 %v2928
    %v3213 = vunpack.c.l.b16 %v2929
    %v3214 = vunpack.c.h.b16 %v2929
    %v3215 = vunpack.c.l.b16 %v2930
    %v3216 = vunpack.c.h.b16 %v2930
    %v3217 = vunpack.c.l.b16 %v2931
    %v3218 = vunpack.c.h.b16 %v2931
    %v3219 = vunpack.c.l.b16 %v2932
    %v3220 = vunpack.c.h.b16 %v2932
    %v3221 = vunpack.c.l.b16 %v2933
    %v3222 = vunpack.c.h.b16 %v2933
    %v3223 = vunpack.c.l.b16 %v2934
    %v3224 = vunpack.c.h.b16 %v2934
    %v3225 = vunpack.c.l.b16 %v2935
    %v3226 = vunpack.c.h.b16 %v2935
    %v3227 = vunpack.c.l.b16 %v2936
    %v3228 = vunpack.c.h.b16 %v2936
    %v3229 = vunpack.c.l.b16 %v2937
    %v3230 = vunpack.c.h.b16 %v2937
    %v3231 = vunpack.c.l.b16 %v2938
    %v3232 = vunpack.c.h.b16 %v2938
    %v3233 = vunpack.c.l.b16 %v2939
    %v3234 = vunpack.c.h.b16 %v2939
    %v3235 = vunpack.c.l.b16 %v2940
    %v3236 = vunpack.c.h.b16 %v2940
    %v3237 = vunpack.c.l.b16 %v2941
    %v3238 = vunpack.c.h.b16 %v2941
    %v3239 = vunpack.c.l.b16 %v2942
    %v3240 = vunpack.c.h.b16 %v2942
    %v3241 = vunpack.c.l.b16 %v2943
    %v3242 = vunpack.c.h.b16 %v2943
    %v3243 = vunpack.c.l.b16 %v2944
    %v3244 = vunpack.c.h.b16 %v2944
    %v3245 = vunpack.c.l.b16 %v2945
    %v3246 = vunpack.c.h.b16 %v2945
    %v3247 = vunpack.c.l.b16 %v2946
    %v3248 = vunpack.c.h.b16 %v2946
    %v3249 = vunpack.c.l.b16 %v2947
    %v3250 = vunpack.c.h.b16 %v2947
    %v3251 = vunpack.c.l.b16 %v2948
    %v3252 = vunpack.c.h.b16 %v2948
    %v3253 = vunpack.c.l.b16 %v2949
    %v3254 = vunpack.c.h.b16 %v2949
    %v3255 = vunpack.c.l.b16 %v2950
    %v3256 = vunpack.c.h.b16 %v2950
    %v3257 = vunpack.c.l.b16 %v2951
    %v3258 = vunpack.c.h.b16 %v2951
    %v3259 = vunpack.c.l.b16 %v2952
    %v3260 = vunpack.c.h.b16 %v2952
    %v3261 = vunpack.c.l.b16 %v2953
    %v3262 = vunpack.c.h.b16 %v2953
    %v3263 = vunpack.c.l.b16 %v2954
    %v3264 = vunpack.c.h.b16 %v2954
    %v3265 = vunpack.c.l.b16 %v2955
    %v3266 = vunpack.c.h.b16 %v2955
    %v3267 = vunpack.c.l.b16 %v2956
    %v3268 = vunpack.c.h.b16 %v2956
    %v3269 = vunpack.c.l.b16 %v2957
    %v3270 = vunpack.c.h.b16 %v2957
    %v3271 = vunpack.c.l.b16 %v2958
    %v3272 = vunpack.c.h.b16 %v2958
    %v3273 = vunpack.c.l.b16 %v2959
    %v3274 = vunpack.c.h.b16 %v2959
    %v3275 = vunpack.c.l.b16 %v2960
    %v3276 = vunpack.c.h.b16 %v2960
    %v3277 = vunpack.c.l.b16 %v2961
    %v3278 = vunpack.c.h.b16 %v2961
    %v3279 = vunpack.c.l.b16 %v2962
    %v3280 = vunpack.c.h.b16 %v2962
    %v3281 = vunpack.c.l.b16 %v2963
    %v3282 = vunpack.c.h.b16 %v2963
    %v3283 = vunpack.c.l.b16 %v2964
    %v3284 = vunpack.c.h.b16 %v2964
    %v3285 = vpack.c.b16 %v3161, %v3157
    %v3286 = vpack.c.b16 %v3162, %v3158
    %v3287 = vpack.c.b16 %v3163, %v3159
    %v3288 = vpack.c.b16 %v3164, %v3160
    %v3289 = vpack.c.b16 %v3169, %v3165
    %v3290 = vpack.c.b16 %v3170, %v3166
    %v3291 = vpack.c.b16 %v3171, %v3167
    %v3292 = vpack.c.b16 %v3172, %v3168
    %v3293 = vpack.c.b16 %v3177, %v3173
    %v3294 = vpack.c.b16 %v3178, %v3174
    %v3295 = vpack.c.b16 %v3179, %v3175
    %v3296 = vpack.c.b16 %v3180, %v3176
    %v3297 = vpack.c.b16 %v3185, %v3181
    %v3298 = vpack.c.b16 %v3186, %v3182
    %v3299 = vpack.c.b16 %v3187, %v3183
    %v3300 = vpack.c.b16 %v3188, %v3184
    %v3301 = vpack.c.b16 %v3193, %v3189
    %v3302 = vpack.c.b16 %v3194, %v3190
    %v3303 = vpack.c.b16 %v3195, %v3191
    %v3304 = vpack.c.b16 %v3196, %v3192
    %v3305 = vpack.c.b16 %v3201, %v3197
    %v3306 = vpack.c.b16 %v3202, %v3198
    %v3307 = vpack.c.b16 %v3203, %v3199
    %v3308 = vpack.c.b16 %v3204, %v3200
    %v3309 = vpack.c.b16 %v3209, %v3205
    %v3310 = vpack.c.b16 %v3210, %v3206
    %v3311 = vpack.c.b16 %v3211, %v3207
    %v3312 = vpack.c.b16 %v3212, %v3208
    %v3313 = vpack.c.b16 %v3217, %v3213
    %v3314 = vpack.c.b16 %v3218, %v3214
    %v3315 = vpack.c.b16 %v3219, %v3215
    %v3316 = vpack.c.b16 %v3220, %v3216
    %v3317 = vpack.c.b16 %v3225, %v3221
    %v3318 = vpack.c.b16 %v3226, %v3222
    %v3319 = vpack.c.b16 %v3227, %v3223
    %v3320 = vpack.c.b16 %v3228, %v3224
    %v3321 = vpack.c.b16 %v3233, %v3229
    %v3322 = vpack.c.b16 %v3234, %v3230
    %v3323 = vpack.c.b16 %v3235, %v3231
    %v3324 = vpack.c.b16 %v3236, %v3232
    %v3325 = vpack.c.b16 %v3241, %v3237
    %v3326 = vpack.c.b16 %v3242, %v3238
    %v3327 = vpack.c.b16 %v3243, %v3239
    %v3328 = vpack.c.b16 %v3244, %v3240
    %v3329 = vpack.c.b16 %v3249, %v3245
    %v3330 = vpack.c.b16 %v3250, %v3246
    %v3331 = vpack.c.b16 %v3251, %v3247
    %v3332 = vpack.c.b16 %v3252, %v3248
    %v3333 = vpack.c.b16 %v3257, %v3253
    %v3334 = vpack.c.b16 %v3258, %v3254
    %v3335 = vpack.c.b16 %v3259, %v3255
    %v3336 = vpack.c.b16 %v3260, %v3256
    %v3337 = vpack.c.b16 %v3265, %v3261
    %v3338 = vpack.c.b16 %v3266, %v3262
    %v3339 = vpack.c.b16 %v3267, %v3263
    %v3340 = vpack.c.b16 %v3268, %v3264
    %v3341 = vpack.c.b16 %v3273, %v3269
    %v3342 = vpack.c.b16 %v3274, %v3270
    %v3343 = vpack.c.b16 %v3275, %v3271
    %v3344 = vpack.c.b16 %v3276, %v3272
    %v3345 = vpack.c.b16 %v3281, %v3277
    %v3346 = vpack.c.b16 %v3282, %v3278
    %v3347 = vpack.c.b16 %v3283, %v3279
    %v3348 = vpack.c.b16 %v3284, %v3280
    %3413 = vmatprep.subr.bf16.mxu0 %v2838
    %3414 = vmatpush1.bf16.msra.mxu0 %v2837
    %3415 = vmatprep.subr.bf16.mxu0 %v2840
    %3416 = vmatpush1.bf16.msra.mxu0 %v2839
    %3417 = vmatprep.subr.bf16.mxu0 %v2842
    %3418 = vmatpush1.bf16.msra.mxu0 %v2841
    %3419 = vmatprep.subr.bf16.mxu0 %v2844
    %3420 = vmatpush1.bf16.msra.mxu0 %v2843
    %3421 = vmatprep.subr.bf16.mxu0 %v2846
    %3422 = vmatpush1.bf16.msra.mxu0 %v2845
    %3423 = vmatprep.subr.bf16.mxu0 %v2848
    %3424 = vmatpush1.bf16.msra.mxu0 %v2847
    %3425 = vmatprep.subr.bf16.mxu0 %v2850
    %3426 = vmatpush1.bf16.msra.mxu0 %v2849
    %3427 = vmatprep.subr.bf16.mxu0 %v2852
    %3428 = vmatpush1.bf16.msra.mxu0 %v2851
    %3429 = vmatprep.subr.bf16.mxu0 %v2854
    %3430 = vmatpush1.bf16.msra.mxu0 %v2853
    %3431 = vmatprep.subr.bf16.mxu0 %v2856
    %3432 = vmatpush1.bf16.msra.mxu0 %v2855
    %3433 = vmatprep.subr.bf16.mxu0 %v2858
    %3434 = vmatpush1.bf16.msra.mxu0 %v2857
    %3435 = vmatprep.subr.bf16.mxu0 %v2860
    %3436 = vmatpush1.bf16.msra.mxu0 %v2859
    %3437 = vmatprep.subr.bf16.mxu0 %v2862
    %3438 = vmatpush1.bf16.msra.mxu0 %v2861
    %3439 = vmatprep.subr.bf16.mxu0 %v2864
    %3440 = vmatpush1.bf16.msra.mxu0 %v2863
    %3441 = vmatprep.subr.bf16.mxu0 %v2866
    %3442 = vmatpush1.bf16.msra.mxu0 %v2865
    %3443 = vmatprep.subr.bf16.mxu0 %v2868
    %3444 = vmatpush1.bf16.msra.mxu0 %v2867
    %3445 = vmatprep.mubr.bf16.mxu0 %v3286
    %3446 = vmatmul.mubr.bf16.gmra.mrb[0].mxu0 %v3285
    %v3447 = vpop.f32.mrb[0].mxu0
    %v3448 = vadd.f32 %v2967, %v3447
    %v3449 = vpop.f32.mrb[0].mxu0
    %v3450 = vadd.f32 %v2967, %v3449
    %v3451 = vpop.f32.mrb[0].mxu0
    %v3452 = vadd.f32 %v2971, %v3451
    %v3453 = vpop.f32.mrb[0].mxu0
    %v3454 = vadd.f32 %v2971, %v3453
    %3455 = vmatprep.mubr.bf16.mxu0 %v3290
    %3456 = vmatmul.mubr.bf16.gmra.mrb[0].mxu0 %v3289
    %v3457 = vpop.f32.mrb[0].mxu0
    %v3458 = vadd.f32 %v2975, %v3457
    %v3459 = vpop.f32.mrb[0].mxu0
    %v3460 = vadd.f32 %v2975, %v3459
    %v3461 = vpop.f32.mrb[0].mxu0
    %v3462 = vadd.f32 %v2979, %v3461
    %v3463 = vpop.f32.mrb[0].mxu0
    %v3464 = vadd.f32 %v2979, %v3463
    %3465 = vmatprep.mubr.bf16.mxu0 %v3294
    %3466 = vmatmul.mubr.bf16.gmra.mrb[0].mxu0 %v3293
    %v3467 = vpop.f32.mrb[0].mxu0
    %v3468 = vadd.f32 %v2983, %v3467
    %v3469 = vpop.f32.mrb[0].mxu0
    %v3470 = vadd.f32 %v2983, %v3469
    %v3471 = vpop.f32.mrb[0].mxu0
    %v3472 = vadd.f32 %v2987, %v3471
    %v3473 = vpop.f32.mrb[0].mxu0
    %v3474 = vadd.f32 %v2987, %v3473
    %3475 = vmatprep.mubr.bf16.mxu0 %v3298
    %3476 = vmatmul.mubr.bf16.gmra.mrb[0].mxu0 %v3297
    %v3477 = vpop.f32.mrb[0].mxu0
    %v3478 = vadd.f32 %v2991, %v3477
    %v3479 = vpop.f32.mrb[0].mxu0
    %v3480 = vadd.f32 %v2991, %v3479
    %v3481 = vpop.f32.mrb[0].mxu0
    %v3482 = vadd.f32 %v2995, %v3481
    %v3483 = vpop.f32.mrb[0].mxu0
    %v3484 = vadd.f32 %v2995, %v3483
    %3485 = vmatprep.mubr.bf16.mxu0 %v3302
    %3486 = vmatmul.mubr.bf16.gmra.mrb[0].mxu0 %v3301
    %v3487 = vpop.f32.mrb[0].mxu0
    %v3488 = vadd.f32 %v2999, %v3487
    %v3489 = vpop.f32.mrb[0].mxu0
    %v3490 = vadd.f32 %v2999, %v3489
    %v3491 = vpop.f32.mrb[0].mxu0
    %v3492 = vadd.f32 %v3003, %v3491
    %v3493 = vpop.f32.mrb[0].mxu0
    %v3494 = vadd.f32 %v3003, %v3493
    %3495 = vmatprep.mubr.bf16.mxu0 %v3306
    %3496 = vmatmul.mubr.bf16.gmra.mrb[0].mxu0 %v3305
    %v3497 = vpop.f32.mrb[0].mxu0
    %v3498 = vadd.f32 %v3007, %v3497
    %v3499 = vpop.f32.mrb[0].mxu0
    %v3500 = vadd.f32 %v3007, %v3499
    %v3501 = vpop.f32.mrb[0].mxu0
    %v3502 = vadd.f32 %v3011, %v3501
    %v3503 = vpop.f32.mrb[0].mxu0
    %v3504 = vadd.f32 %v3011, %v3503
    %3505 = vmatprep.mubr.bf16.mxu0 %v3310
    %3506 = vmatmul.mubr.bf16.gmra.mrb[0].mxu0 %v3309
    %v3507 = vpop.f32.mrb[0].mxu0
    %v3508 = vadd.f32 %v3015, %v3507
    %v3509 = vpop.f32.mrb[0].mxu0
    %v3510 = vadd.f32 %v3015, %v3509
    %v3511 = vpop.f32.mrb[0].mxu0
    %v3512 = vadd.f32 %v3019, %v3511
    %v3513 = vpop.f32.mrb[0].mxu0
    %v3514 = vadd.f32 %v3019, %v3513
    %3515 = vmatprep.mubr.bf16.mxu0 %v3314
    %3516 = vmatmul.mubr.bf16.gmra.mrb[0].mxu0 %v3313
    %v3517 = vpop.f32.mrb[0].mxu0
    %v3518 = vadd.f32 %v3023, %v3517
    %v3519 = vpop.f32.mrb[0].mxu0
    %v3520 = vadd.f32 %v3023, %v3519
    %v3521 = vpop.f32.mrb[0].mxu0
    %v3522 = vadd.f32 %v3027, %v3521
    %v3523 = vpop.f32.mrb[0].mxu0
    %v3524 = vadd.f32 %v3027, %v3523
    %3525 = vmatprep.mubr.bf16.mxu0 %v3318
    %3526 = vmatmul.mubr.bf16.gmra.mrb[0].mxu0 %v3317
    %v3527 = vpop.f32.mrb[0].mxu0
    %v3528 = vadd.f32 %v3031, %v3527
    %v3529 = vpop.f32.mrb[0].mxu0
    %v3530 = vadd.f32 %v3031, %v3529
    %v3531 = vpop.f32.mrb[0].mxu0
    %v3532 = vadd.f32 %v3035, %v3531
    %v3533 = vpop.f32.mrb[0].mxu0
    %v3534 = vadd.f32 %v3035, %v3533
    %3535 = vmatprep.mubr.bf16.mxu0 %v3322
    %3536 = vmatmul.mubr.bf16.gmra.mrb[0].mxu0 %v3321
    %v3537 = vpop.f32.mrb[0].mxu0
    %v3538 = vadd.f32 %v3039, %v3537
    %v3539 = vpop.f32.mrb[0].mxu0
    %v3540 = vadd.f32 %v3039, %v3539
    %v3541 = vpop.f32.mrb[0].mxu0
    %v3542 = vadd.f32 %v3043, %v3541
    %v3543 = vpop.f32.mrb[0].mxu0
    %v3544 = vadd.f32 %v3043, %v3543
    %3545 = vmatprep.mubr.bf16.mxu0 %v3326
    %3546 = vmatmul.mubr.bf16.gmra.mrb[0].mxu0 %v3325
    %v3547 = vpop.f32.mrb[0].mxu0
    %v3548 = vadd.f32 %v3047, %v3547
    %v3549 = vpop.f32.mrb[0].mxu0
    %v3550 = vadd.f32 %v3047, %v3549
    %v3551 = vpop.f32.mrb[0].mxu0
    %v3552 = vadd.f32 %v3051, %v3551
    %v3553 = vpop.f32.mrb[0].mxu0
    %v3554 = vadd.f32 %v3051, %v3553
    %3555 = vmatprep.mubr.bf16.mxu0 %v3330
    %3556 = vmatmul.mubr.bf16.gmra.mrb[0].mxu0 %v3329
    %v3557 = vpop.f32.mrb[0].mxu0
    %v3558 = vadd.f32 %v3055, %v3557
    %v3559 = vpop.f32.mrb[0].mxu0
    %v3560 = vadd.f32 %v3055, %v3559
    %v3561 = vpop.f32.mrb[0].mxu0
    %v3562 = vadd.f32 %v3059, %v3561
    %v3563 = vpop.f32.mrb[0].mxu0
    %v3564 = vadd.f32 %v3059, %v3563
    %3565 = vmatprep.mubr.bf16.mxu0 %v3334
    %3566 = vmatmul.mubr.bf16.gmra.mrb[0].mxu0 %v3333
    %v3567 = vpop.f32.mrb[0].mxu0
    %v3568 = vadd.f32 %v3063, %v3567
    %v3569 = vpop.f32.mrb[0].mxu0
    %v3570 = vadd.f32 %v3063, %v3569
    %v3571 = vpop.f32.mrb[0].mxu0
    %v3572 = vadd.f32 %v3067, %v3571
    %v3573 = vpop.f32.mrb[0].mxu0
    %v3574 = vadd.f32 %v3067, %v3573
    %3575 = vmatprep.mubr.bf16.mxu0 %v3338
    %3576 = vmatmul.mubr.bf16.gmra.mrb[0].mxu0 %v3337
    %v3577 = vpop.f32.mrb[0].mxu0
    %v3578 = vadd.f32 %v3071, %v3577
    %v3579 = vpop.f32.mrb[0].mxu0
    %v3580 = vadd.f32 %v3071, %v3579
    %v3581 = vpop.f32.mrb[0].mxu0
    %v3582 = vadd.f32 %v3075, %v3581
    %v3583 = vpop.f32.mrb[0].mxu0
    %v3584 = vadd.f32 %v3075, %v3583
    %3585 = vmatprep.mubr.bf16.mxu0 %v3342
    %3586 = vmatmul.mubr.bf16.gmra.mrb[0].mxu0 %v3341
    %v3587 = vpop.f32.mrb[0].mxu0
    %v3588 = vadd.f32 %v3079, %v3587
    %v3589 = vpop.f32.mrb[0].mxu0
    %v3590 = vadd.f32 %v3079, %v3589
    %v3591 = vpop.f32.mrb[0].mxu0
    %v3592 = vadd.f32 %v3083, %v3591
    %v3593 = vpop.f32.mrb[0].mxu0
    %v3594 = vadd.f32 %v3083, %v3593
    %3595 = vmatprep.mubr.bf16.mxu0 %v3346
    %3596 = vmatmul.mubr.bf16.gmra.mrb[0].mxu0 %v3345
    %v3597 = vpop.f32.mrb[0].mxu0
    %v3598 = vadd.f32 %v3087, %v3597
    %v3599 = vpop.f32.mrb[0].mxu0
    %v3600 = vadd.f32 %v3087, %v3599
    %v3601 = vpop.f32.mrb[0].mxu0
    %v3602 = vadd.f32 %v3091, %v3601
    %v3603 = vpop.f32.mrb[0].mxu0
    %v3604 = vadd.f32 %v3091, %v3603
    %3605 = vdwg.mxu0
    %3606 = vmatprep.subr.bf16.mxu0 %v2870
    %3607 = vmatpush1.bf16.msra.mxu0 %v2869
    %3608 = vmatprep.subr.bf16.mxu0 %v2872
    %3609 = vmatpush1.bf16.msra.mxu0 %v2871
    %3610 = vmatprep.subr.bf16.mxu0 %v2874
    %3611 = vmatpush1.bf16.msra.mxu0 %v2873
    %3612 = vmatprep.subr.bf16.mxu0 %v2876
    %3613 = vmatpush1.bf16.msra.mxu0 %v2875
    %3614 = vmatprep.subr.bf16.mxu0 %v2878
    %3615 = vmatpush1.bf16.msra.mxu0 %v2877
    %3616 = vmatprep.subr.bf16.mxu0 %v2880
    %3617 = vmatpush1.bf16.msra.mxu0 %v2879
    %3618 = vmatprep.subr.bf16.mxu0 %v2882
    %3619 = vmatpush1.bf16.msra.mxu0 %v2881
    %3620 = vmatprep.subr.bf16.mxu0 %v2884
    %3621 = vmatpush1.bf16.msra.mxu0 %v2883
    %3622 = vmatprep.subr.bf16.mxu0 %v2886
    %3623 = vmatpush1.bf16.msra.mxu0 %v2885
    %3624 = vmatprep.subr.bf16.mxu0 %v2888
    %3625 = vmatpush1.bf16.msra.mxu0 %v2887
    %3626 = vmatprep.subr.bf16.mxu0 %v2890
    %3627 = vmatpush1.bf16.msra.mxu0 %v2889
    %3628 = vmatprep.subr.bf16.mxu0 %v2892
    %3629 = vmatpush1.bf16.msra.mxu0 %v2891
    %3630 = vmatprep.subr.bf16.mxu0 %v2894
    %3631 = vmatpush1.bf16.msra.mxu0 %v2893
    %3632 = vmatprep.subr.bf16.mxu0 %v2896
    %3633 = vmatpush1.bf16.msra.mxu0 %v2895
    %3634 = vmatprep.subr.bf16.mxu0 %v2898
    %3635 = vmatpush1.bf16.msra.mxu0 %v2897
    %3636 = vmatprep.subr.bf16.mxu0 %v2900
    %3637 = vmatpush1.bf16.msra.mxu0 %v2899
    %3638 = vmatprep.mubr.bf16.mxu0 %v3288
    %3639 = vmatmul.mubr.bf16.gmra.mrb[0].mxu0 %v3287
    %v3640 = vpop.f32.mrb[0].mxu0
    %v3641 = vadd.f32 %v3448, %v3640
    %v3642 = vpop.f32.mrb[0].mxu0
    %v3643 = vadd.f32 %v3450, %v3642
    %v3644 = vpop.f32.mrb[0].mxu0
    %v3645 = vadd.f32 %v3452, %v3644
    %v3646 = vpop.f32.mrb[0].mxu0
    %v3647 = vadd.f32 %v3454, %v3646
    %3648 = vmatprep.mubr.bf16.mxu0 %v3292
    %3649 = vmatmul.mubr.bf16.gmra.mrb[0].mxu0 %v3291
    %v3650 = vpop.f32.mrb[0].mxu0
    %v3651 = vadd.f32 %v3458, %v3650
    %v3652 = vpop.f32.mrb[0].mxu0
    %v3653 = vadd.f32 %v3460, %v3652
    %v3654 = vpop.f32.mrb[0].mxu0
    %v3655 = vadd.f32 %v3462, %v3654
    %v3656 = vpop.f32.mrb[0].mxu0
    %v3657 = vadd.f32 %v3464, %v3656
    %3658 = vmatprep.mubr.bf16.mxu0 %v3296
    %3659 = vmatmul.mubr.bf16.gmra.mrb[0].mxu0 %v3295
    %v3660 = vpop.f32.mrb[0].mxu0
    %v3661 = vadd.f32 %v3468, %v3660
    %v3662 = vpop.f32.mrb[0].mxu0
    %v3663 = vadd.f32 %v3470, %v3662
    %v3664 = vpop.f32.mrb[0].mxu0
    %v3665 = vadd.f32 %v3472, %v3664
    %v3666 = vpop.f32.mrb[0].mxu0
    %v3667 = vadd.f32 %v3474, %v3666
    %3668 = vmatprep.mubr.bf16.mxu0 %v3300
    %3669 = vmatmul.mubr.bf16.gmra.mrb[0].mxu0 %v3299
    %v3670 = vpop.f32.mrb[0].mxu0
    %v3671 = vadd.f32 %v3478, %v3670
    %v3672 = vpop.f32.mrb[0].mxu0
    %v3673 = vadd.f32 %v3480, %v3672
    %v3674 = vpop.f32.mrb[0].mxu0
    %v3675 = vadd.f32 %v3482, %v3674
    %v3676 = vpop.f32.mrb[0].mxu0
    %v3677 = vadd.f32 %v3484, %v3676
    %3678 = vmatprep.mubr.bf16.mxu0 %v3304
    %3679 = vmatmul.mubr.bf16.gmra.mrb[0].mxu0 %v3303
    %v3680 = vpop.f32.mrb[0].mxu0
    %v3681 = vadd.f32 %v3488, %v3680
    %v3682 = vpop.f32.mrb[0].mxu0
    %v3683 = vadd.f32 %v3490, %v3682
    %v3684 = vpop.f32.mrb[0].mxu0
    %v3685 = vadd.f32 %v3492, %v3684
    %v3686 = vpop.f32.mrb[0].mxu0
    %v3687 = vadd.f32 %v3494, %v3686
    %3688 = vmatprep.mubr.bf16.mxu0 %v3308
    %3689 = vmatmul.mubr.bf16.gmra.mrb[0].mxu0 %v3307
    %v3690 = vpop.f32.mrb[0].mxu0
    %v3691 = vadd.f32 %v3498, %v3690
    %v3692 = vpop.f32.mrb[0].mxu0
    %v3693 = vadd.f32 %v3500, %v3692
    %v3694 = vpop.f32.mrb[0].mxu0
    %v3695 = vadd.f32 %v3502, %v3694
    %v3696 = vpop.f32.mrb[0].mxu0
    %v3697 = vadd.f32 %v3504, %v3696
    %3698 = vmatprep.mubr.bf16.mxu0 %v3312
    %3699 = vmatmul.mubr.bf16.gmra.mrb[0].mxu0 %v3311
    %v3700 = vpop.f32.mrb[0].mxu0
    %v3701 = vadd.f32 %v3508, %v3700
    %v3702 = vpop.f32.mrb[0].mxu0
    %v3703 = vadd.f32 %v3510, %v3702
    %v3704 = vpop.f32.mrb[0].mxu0
    %v3705 = vadd.f32 %v3512, %v3704
    %v3706 = vpop.f32.mrb[0].mxu0
    %v3707 = vadd.f32 %v3514, %v3706
    %3708 = vmatprep.mubr.bf16.mxu0 %v3316
    %3709 = vmatmul.mubr.bf16.gmra.mrb[0].mxu0 %v3315
    %v3710 = vpop.f32.mrb[0].mxu0
    %v3711 = vadd.f32 %v3518, %v3710
    %v3712 = vpop.f32.mrb[0].mxu0
    %v3713 = vadd.f32 %v3520, %v3712
    %v3714 = vpop.f32.mrb[0].mxu0
    %v3715 = vadd.f32 %v3522, %v3714
    %v3716 = vpop.f32.mrb[0].mxu0
    %v3717 = vadd.f32 %v3524, %v3716
    %3718 = vmatprep.mubr.bf16.mxu0 %v3320
    %3719 = vmatmul.mubr.bf16.gmra.mrb[0].mxu0 %v3319
    %v3720 = vpop.f32.mrb[0].mxu0
    %v3721 = vadd.f32 %v3528, %v3720
    %v3722 = vpop.f32.mrb[0].mxu0
    %v3723 = vadd.f32 %v3530, %v3722
    %v3724 = vpop.f32.mrb[0].mxu0
    %v3725 = vadd.f32 %v3532, %v3724
    %v3726 = vpop.f32.mrb[0].mxu0
    %v3727 = vadd.f32 %v3534, %v3726
    %3728 = vmatprep.mubr.bf16.mxu0 %v3324
    %3729 = vmatmul.mubr.bf16.gmra.mrb[0].mxu0 %v3323
    %v3730 = vpop.f32.mrb[0].mxu0
    %v3731 = vadd.f32 %v3538, %v3730
    %v3732 = vpop.f32.mrb[0].mxu0
    %v3733 = vadd.f32 %v3540, %v3732
    %v3734 = vpop.f32.mrb[0].mxu0
    %v3735 = vadd.f32 %v3542, %v3734
    %v3736 = vpop.f32.mrb[0].mxu0
    %v3737 = vadd.f32 %v3544, %v3736
    %3738 = vmatprep.mubr.bf16.mxu0 %v3328
    %3739 = vmatmul.mubr.bf16.gmra.mrb[0].mxu0 %v3327
    %v3740 = vpop.f32.mrb[0].mxu0
    %v3741 = vadd.f32 %v3548, %v3740
    %v3742 = vpop.f32.mrb[0].mxu0
    %v3743 = vadd.f32 %v3550, %v3742
    %v3744 = vpop.f32.mrb[0].mxu0
    %v3745 = vadd.f32 %v3552, %v3744
    %v3746 = vpop.f32.mrb[0].mxu0
    %v3747 = vadd.f32 %v3554, %v3746
    %3748 = vmatprep.mubr.bf16.mxu0 %v3332
    %3749 = vmatmul.mubr.bf16.gmra.mrb[0].mxu0 %v3331
    %v3750 = vpop.f32.mrb[0].mxu0
    %v3751 = vadd.f32 %v3558, %v3750
    %v3752 = vpop.f32.mrb[0].mxu0
    %v3753 = vadd.f32 %v3560, %v3752
    %v3754 = vpop.f32.mrb[0].mxu0
    %v3755 = vadd.f32 %v3562, %v3754
    %v3756 = vpop.f32.mrb[0].mxu0
    %v3757 = vadd.f32 %v3564, %v3756
    %3758 = vmatprep.mubr.bf16.mxu0 %v3336
    %3759 = vmatmul.mubr.bf16.gmra.mrb[0].mxu0 %v3335
    %v3760 = vpop.f32.mrb[0].mxu0
    %v3761 = vadd.f32 %v3568, %v3760
    %v3762 = vpop.f32.mrb[0].mxu0
    %v3763 = vadd.f32 %v3570, %v3762
    %v3764 = vpop.f32.mrb[0].mxu0
    %v3765 = vadd.f32 %v3572, %v3764
    %v3766 = vpop.f32.mrb[0].mxu0
    %v3767 = vadd.f32 %v3574, %v3766
    %3768 = vmatprep.mubr.bf16.mxu0 %v3340
    %3769 = vmatmul.mubr.bf16.gmra.mrb[0].mxu0 %v3339
    %v3770 = vpop.f32.mrb[0].mxu0
    %v3771 = vadd.f32 %v3578, %v3770
    %v3772 = vpop.f32.mrb[0].mxu0
    %v3773 = vadd.f32 %v3580, %v3772
    %v3774 = vpop.f32.mrb[0].mxu0
    %v3775 = vadd.f32 %v3582, %v3774
    %v3776 = vpop.f32.mrb[0].mxu0
    %v3777 = vadd.f32 %v3584, %v3776
    %3778 = vmatprep.mubr.bf16.mxu0 %v3344
    %3779 = vmatmul.mubr.bf16.gmra.mrb[0].mxu0 %v3343
    %v3780 = vpop.f32.mrb[0].mxu0
    %v3781 = vadd.f32 %v3588, %v3780
    %v3782 = vpop.f32.mrb[0].mxu0
    %v3783 = vadd.f32 %v3590, %v3782
    %v3784 = vpop.f32.mrb[0].mxu0
    %v3785 = vadd.f32 %v3592, %v3784
    %v3786 = vpop.f32.mrb[0].mxu0
    %v3787 = vadd.f32 %v3594, %v3786
    %3788 = vmatprep.mubr.bf16.mxu0 %v3348
    %3789 = vmatmul.mubr.bf16.gmra.mrb[0].mxu0 %v3347
    %v3790 = vpop.f32.mrb[0].mxu0
    %v3791 = vadd.f32 %v3598, %v3790
    %v3792 = vpop.f32.mrb[0].mxu0
    %v3793 = vadd.f32 %v3600, %v3792
    %v3794 = vpop.f32.mrb[0].mxu0
    %v3795 = vadd.f32 %v3602, %v3794
    %v3796 = vpop.f32.mrb[0].mxu0
    %v3797 = vadd.f32 %v3604, %v3796
    %3798 = vdwg.mxu0
    %v3799 = vmax.f32 %v3641, 0.0
    %v3800 = vmax.f32 %v3643, 0.0
    %v3801 = vmax.f32 %v3645, 0.0
    %v3802 = vmax.f32 %v3647, 0.0
    %v3803 = vmax.f32 %v3651, 0.0
    %v3804 = vmax.f32 %v3653, 0.0
    %v3805 = vmax.f32 %v3655, 0.0
    %v3806 = vmax.f32 %v3657, 0.0
    %v3807 = vmax.f32 %v3661, 0.0
    %v3808 = vmax.f32 %v3663, 0.0
    %v3809 = vmax.f32 %v3665, 0.0
    %v3810 = vmax.f32 %v3667, 0.0
    %v3811 = vmax.f32 %v3671, 0.0
    %v3812 = vmax.f32 %v3673, 0.0
    %v3813 = vmax.f32 %v3675, 0.0
    %v3814 = vmax.f32 %v3677, 0.0
    %v3815 = vmax.f32 %v3681, 0.0
    %v3816 = vmax.f32 %v3683, 0.0
    %v3817 = vmax.f32 %v3685, 0.0
    %v3818 = vmax.f32 %v3687, 0.0
    %v3819 = vmax.f32 %v3691, 0.0
    %v3820 = vmax.f32 %v3693, 0.0
    %v3821 = vmax.f32 %v3695, 0.0
    %v3822 = vmax.f32 %v3697, 0.0
    %v3823 = vmax.f32 %v3701, 0.0
    %v3824 = vmax.f32 %v3703, 0.0
    %v3825 = vmax.f32 %v3705, 0.0
    %v3826 = vmax.f32 %v3707, 0.0
    %v3827 = vmax.f32 %v3711, 0.0
    %v3828 = vmax.f32 %v3713, 0.0
    %v3829 = vmax.f32 %v3715, 0.0
    %v3830 = vmax.f32 %v3717, 0.0
    %v3831 = vmax.f32 %v3721, 0.0
    %v3832 = vmax.f32 %v3723, 0.0
    %v3833 = vmax.f32 %v3725, 0.0
    %v3834 = vmax.f32 %v3727, 0.0
    %v3835 = vmax.f32 %v3731, 0.0
    %v3836 = vmax.f32 %v3733, 0.0
    %v3837 = vmax.f32 %v3735, 0.0
    %v3838 = vmax.f32 %v3737, 0.0
    %v3839 = vmax.f32 %v3741, 0.0
    %v3840 = vmax.f32 %v3743, 0.0
    %v3841 = vmax.f32 %v3745, 0.0
    %v3842 = vmax.f32 %v3747, 0.0
    %v3843 = vmax.f32 %v3751, 0.0
    %v3844 = vmax.f32 %v3753, 0.0
    %v3845 = vmax.f32 %v3755, 0.0
    %v3846 = vmax.f32 %v3757, 0.0
    %v3847 = vmax.f32 %v3761, 0.0
    %v3848 = vmax.f32 %v3763, 0.0
    %v3849 = vmax.f32 %v3765, 0.0
    %v3850 = vmax.f32 %v3767, 0.0
    %v3851 = vmax.f32 %v3771, 0.0
    %v3852 = vmax.f32 %v3773, 0.0
    %v3853 = vmax.f32 %v3775, 0.0
    %v3854 = vmax.f32 %v3777, 0.0
    %v3855 = vmax.f32 %v3781, 0.0
    %v3856 = vmax.f32 %v3783, 0.0
    %v3857 = vmax.f32 %v3785, 0.0
    %v3858 = vmax.f32 %v3787, 0.0
    %v3859 = vmax.f32 %v3791, 0.0
    %v3860 = vmax.f32 %v3793, 0.0
    %v3861 = vmax.f32 %v3795, 0.0
    %v3862 = vmax.f32 %v3797, 0.0
    %v3863 = vpack.c.bf16 %v3801, %v3799
    %v3864 = vpack.c.bf16 %v3802, %v3800
    %v3865 = vpack.c.bf16 %v3805, %v3803
    %v3866 = vpack.c.bf16 %v3806, %v3804
    %v3867 = vpack.c.bf16 %v3809, %v3807
    %v3868 = vpack.c.bf16 %v3810, %v3808
    %v3869 = vpack.c.bf16 %v3813, %v3811
    %v3870 = vpack.c.bf16 %v3814, %v3812
    %v3871 = vpack.c.bf16 %v3817, %v3815
    %v3872 = vpack.c.bf16 %v3818, %v3816
    %v3873 = vpack.c.bf16 %v3821, %v3819
    %v3874 = vpack.c.bf16 %v3822, %v3820
    %v3875 = vpack.c.bf16 %v3825, %v3823
    %v3876 = vpack.c.bf16 %v3826, %v3824
    %v3877 = vpack.c.bf16 %v3829, %v3827
    %v3878 = vpack.c.bf16 %v3830, %v3828
    %v3879 = vpack.c.bf16 %v3833, %v3831
    %v3880 = vpack.c.bf16 %v3834, %v3832
    %v3881 = vpack.c.bf16 %v3837, %v3835
    %v3882 = vpack.c.bf16 %v3838, %v3836
    %v3883 = vpack.c.bf16 %v3841, %v3839
    %v3884 = vpack.c.bf16 %v3842, %v3840
    %v3885 = vpack.c.bf16 %v3845, %v3843
    %v3886 = vpack.c.bf16 %v3846, %v3844
    %v3887 = vpack.c.bf16 %v3849, %v3847
    %v3888 = vpack.c.bf16 %v3850, %v3848
    %v3889 = vpack.c.bf16 %v3853, %v3851
    %v3890 = vpack.c.bf16 %v3854, %v3852
    %v3891 = vpack.c.bf16 %v3857, %v3855
    %v3892 = vpack.c.bf16 %v3858, %v3856
    %v3893 = vpack.c.bf16 %v3861, %v3859
    %v3894 = vpack.c.bf16 %v3862, %v3860
    %v3895 = vld [vmem:[%s7] sm:$0xff]
    %v3897 = vunpack.c.l.b16 %v3895
    %v3898 = vunpack.c.h.b16 %v3895
    %v3899 = vpack.c.b16 %v3897, %v3897
    %v3900 = vpack.c.b16 %v3898, %v3898
    %3903 = vmatprep.subr.bf16.mxu0 %v3864
    %3904 = vmatpush1.bf16.msra.mxu0 %v3863
    %3905 = vmatprep.subr.bf16.mxu0 %v3866
    %3906 = vmatpush1.bf16.msra.mxu0 %v3865
    %3907 = vmatprep.subr.bf16.mxu0 %v3868
    %3908 = vmatpush1.bf16.msra.mxu0 %v3867
    %3909 = vmatprep.subr.bf16.mxu0 %v3870
    %3910 = vmatpush1.bf16.msra.mxu0 %v3869
    %3911 = vmatprep.subr.bf16.mxu0 %v3872
    %3912 = vmatpush1.bf16.msra.mxu0 %v3871
    %3913 = vmatprep.subr.bf16.mxu0 %v3874
    %3914 = vmatpush1.bf16.msra.mxu0 %v3873
    %3915 = vmatprep.subr.bf16.mxu0 %v3876
    %3916 = vmatpush1.bf16.msra.mxu0 %v3875
    %3917 = vmatprep.subr.bf16.mxu0 %v3878
    %3918 = vmatpush1.bf16.msra.mxu0 %v3877
    %3919 = vmatprep.subr.bf16.mxu0 %v3880
    %3920 = vmatpush1.bf16.msra.mxu0 %v3879
    %3921 = vmatprep.subr.bf16.mxu0 %v3882
    %3922 = vmatpush1.bf16.msra.mxu0 %v3881
    %3923 = vmatprep.subr.bf16.mxu0 %v3884
    %3924 = vmatpush1.bf16.msra.mxu0 %v3883
    %3925 = vmatprep.subr.bf16.mxu0 %v3886
    %3926 = vmatpush1.bf16.msra.mxu0 %v3885
    %3927 = vmatprep.subr.bf16.mxu0 %v3888
    %3928 = vmatpush1.bf16.msra.mxu0 %v3887
    %3929 = vmatprep.subr.bf16.mxu0 %v3890
    %3930 = vmatpush1.bf16.msra.mxu0 %v3889
    %3931 = vmatprep.subr.bf16.mxu0 %v3892
    %3932 = vmatpush1.bf16.msra.mxu0 %v3891
    %3933 = vmatprep.subr.bf16.mxu0 %v3894
    %3934 = vmatpush1.bf16.msra.mxu0 %v3893
    %3935 = vmatprep.mubr.bf16.mxu0 %v3900
    %3936 = vmatmul.mubr.bf16.gmra.mrb[0].mxu0 %v3899
    %v3937 = vpop.f32.mrb[0].mxu0
    %v3938 = vadd.f32 0.0, %v3937
    %v3939 = vpop.f32.mrb[0].mxu0
    %v3940 = vadd.f32 0.0, %v3939
    %v3941 = vpop.f32.mrb[0].mxu0
    %v3942 = vpop.f32.mrb[0].mxu0
    %3943 = vdwg.mxu0
    %3945 = vset.pattern.permute.xlu0 4
    %3946 = vperm.xlu0 %3945, %v126
    %v3947 = vpop.permute.xlu0 %3946
    %v3949 = vadd.f32 %v3938, %v3947
    %v3950 = vadd.f32 %v3940, %v3947
    %v3953 = vcombine.low %v3949, %v3950
    %v3955 = vunpack.c.l.s4 1966171168
    %v3956 = vunpack.c.0.s8 %v3955
    %v3957 = vlaneseq
    %v3958 = vshrl.u32 %v3957, 7
    %v3959 = vsub.s32 %v3956, %v3958
    %v3960 = vrot.slane %v3953, %v3959
    %v3962 = vunpack.c.l.s4 1966171168
    %v3963 = vunpack.c.0.s8 %v3962
    %v3964 = vlaneseq
    %v3965 = vshrl.u32 %v3964, 7
    %v3966 = vsub.s32 %v3963, %v3965
    %v3967 = vrot.slane %v3960, %v3966
    %v3969 = vlaneseq
    %vm3970 = vcmp.ge.s32.totalorder %v3969, 0
    %vm3971 = vcmp.lt.s32.totalorder %v3969, 256
    %vm3972 = vmand %vm3970, %vm3971
    %3973 = vst.msk [vmem:[#allocation7] sm:$0x3] %vm3972, %v3967
    // Predicated region
    $region46: #{tpu_custom_call.1} parent=1 // pred_check
      _
    $region47: #{tpu_custom_call.1} parent=1 // pred_check_branch
      %3975 = sbr.rel (0) target = $region49
    $region48: #{tpu_custom_call.1} parent=1 // pred_region
      %s3977 = ssub.s32 32, 32
      %3978 = vsyncadd [#allocation4], %s3977
      %s3980 = sshll.u32 [#allocation7], 4
      %s3981 = int_to_ptr.vmem [resolvable:$true] %s3980
      %3983 = dma.vmem_to_hbm [thread:$0]  %s3981, 32, %s9, [#allocation4]
    $region49: #{tpu_custom_call.1} parent=1 // pred_fallthru
      _
    // Predicated region
    $region50: #{tpu_custom_call.1} parent=1 // pred_check
      _
    $region51: #{tpu_custom_call.1} parent=1 // pred_check_branch
      %3985 = sbr.rel (0) target = $region53
    $region52: #{tpu_custom_call.1} parent=1 // pred_region
      %3986 = dma.done [#allocation4], 32
    $region53: #{tpu_custom_call.1} parent=1 // pred_fallthru
      _
    %3987 = vsyncpa [#allocation3], 1
    %3988 = vsyncpa [#allocation6], 1
    %3989 = vsyncpa [#allocation4], 1

</llo_original>
